<compile_context>
chip_gen: v5e
topology: v5e:2x2
jax: 0.10.0
libtpu: 0.0.40
codegen_flags: <defaults>
</compile_context>

<pallas_src>
import functools

import jax
import jax.numpy as jnp
from jax.experimental import pallas as pl
from jax.experimental.pallas import tpu as pltpu

K = 3            # kernel_size
EPS = 1e-5       # BatchNorm eps (PyTorch default)
LANE = 128       # TPU lane width
SUBLANE = 8      # TPU sublane width


def _round_up(x, m):
    return (x + m - 1) // m * m


def _vmem_limit_bytes():
    # Per-generation VMEM budget: ~48 MiB on v7x (64 MiB physical/TC), up to
    # ~96-100 MiB on v5e/v6e (128 MiB physical).  Never the full capacity.
    try:
        cap = int(pltpu.get_tpu_info().vmem_capacity_bytes)
    except Exception:
        cap = 128 * 1024 * 1024
    return min(cap * 3 // 4, 100 * 1024 * 1024)


def acb_kernel(x_ref, w_ref, b_ref, o_ref, xs_ref, *, w, wr, mc,
               fill_every_step):
    # x_ref : (1, H*Wr, Cin)        bf16 width-padded, flattened image (pitch Wr)
    # w_ref : (9, Cin, TCO)         bf16 fused (branch + BN-scale) weights
    # b_ref : (1, TCO)              f32 fused bias
    # o_ref : (1, H*Wr, TCO)        bf16 output, flat with the same pitch Wr
    # xs_ref: (3, H*Wr + 2*Wr, Cin) bf16 kw-shifted zero-padded activation views
    hwr = x_ref.shape[1]
    cin = x_ref.shape[2]
    tco = o_ref.shape[2]
    rt = xs_ref.shape[1]

    def fill_scratch():
        # (Re)zero only the 2*Wr halo rows; the interior is fully overwritten
        # every fill, so this stays correct under any grid order / sharding.
        zhalo = jnp.zeros((K, wr, cin), jnp.bfloat16)
        xs_ref[:, 0:wr, :] = zhalo
        xs_ref[:, wr + hwr:rt, :] = zhalo

        xf = x_ref[0]                                   # (H*Wr, Cin) bf16
        xs_ref[1, wr:wr + hwr, :] = xf                  # kw=1 view: the image

        # Column index (within the Wr row pitch) of every flat row.
        col = jax.lax.broadcasted_iota(jnp.int32, (hwr, cin), 0) % wr
        # kw=0 view: image shifted right by one column, zeros in column 0.
        x_r = xs_ref[1, wr - 1:wr - 1 + hwr, :]
        xs_ref[0, wr:wr + hwr, :] = jnp.where(col == 0, jnp.zeros_like(x_r), x_r)
        # kw=2 view: image shifted left by one column, zeros in column W-1.
        x_l = xs_ref[1, wr + 1:wr + 1 + hwr, :]
        xs_ref[2, wr:wr + hwr, :] = jnp.where(col == w - 1,
                                              jnp.zeros_like(x_l), x_l)

    if fill_every_step:
        # Weight-resident grid order (co outer, batch inner): the image block
        # changes every step, so the shifted views are rebuilt every step.
        fill_scratch()
    else:
        # Image-resident grid order (batch outer, co inner): build the shifted
        # views once per image and reuse them across all Cout tiles.
        @pl.when(pl.program_id(1) == 0)
        def _():
            fill_scratch()

    bias = b_ref[...]                                   # (1, TCO) f32
    # Chunked accumulation: mc output rows at a time keeps the f32 partial sum
    # small (vregs / a few KB) and lets one chunk's bias+ReLU+store epilogue
    # overlap the next chunk's matmuls.
    for ms in range(0, hwr, mc):
        mlen = min(mc, hwr - ms)
        acc = jnp.zeros((mlen, tco), jnp.float32)
        for kh in range(K):
            base = kh * wr + ms                         # sublane-aligned start
            for kw in range(K):
                acc = acc + jnp.dot(xs_ref[kw, base:base + mlen, :],
                                    w_ref[kh * K + kw],
                                    preferred_element_type=jnp.float32)
        o_ref[0, ms:ms + mlen, :] = jnp.maximum(acc + bias, 0.0).astype(o_ref.dtype)


def acb_forward(x_nchw, params, *, tco=None, mc=256, weight_resident=None):
    """x_nchw: (N, Cin, H, W) float32. Returns (N, Cout, H, W) bfloat16."""
    wk1, bk1, w1k, b1k, w33, gamma, beta, rmean, rvar = params
    N, Cin, H, W = x_nchw.shape
    Cout = wk1.shape[0]

    # ---- one-time parameter reparameterization (plain JAX) ----
    # BN(z) = (z - rmean) * scale + beta, scale = gamma / sqrt(rvar + eps).
    # The shared BN lets the three branches collapse exactly into one 3x3 conv
    # with the BN scale folded into the weights and a single fused bias.
    scale = gamma / jnp.sqrt(rvar + EPS)                       # (Cout,)
    w_f = w33
    w_f = w_f.at[:, :, :, 1].add(wk1[:, :, :, 0])              # (3,1) -> centre column
    w_f = w_f.at[:, :, 1, :].add(w1k[:, :, 0, :])              # (1,3) -> centre row
    w_f = w_f * scale[:, None, None, None]                     # fold BN scale
    bias = scale * (bk1 + b1k) + 3.0 * (beta - scale * rmean)  # fused bias

    # ---- lane/sublane-aligned geometry ----
    Cin_p = _round_up(Cin, LANE)
    Cout_p = _round_up(Cout, LANE)
    if tco is None:
        tco = Cout_p if Cout_p <= 256 else 256   # TODO(synk): 128 on v5e
    TCO = min(tco, Cout_p)
    Cout_p = _round_up(Cout_p, TCO)
    cob = Cout_p // TCO

    Wr = _round_up(W, SUBLANE)       # aligned spatial row pitch
    HWr = H * Wr
    MC = min(_round_up(mc, SUBLANE), HWr)

    # ---- weights / bias ----
    w_k = jnp.transpose(w_f, (2, 3, 1, 0)).reshape(K * K, Cin, Cout)
    w_k = jnp.pad(w_k, ((0, 0), (0, Cin_p - Cin), (0, Cout_p - Cout)))
    w_k = w_k.astype(jnp.bfloat16)                             # (9, Cin_p, Cout_p)
    b_k = jnp.pad(bias, (0, Cout_p - Cout)).reshape(1, Cout_p).astype(jnp.float32)

    # ---- activations: NHWC, bf16, width padded to Wr, flattened ----
    x = jnp.transpose(x_nchw, (0, 2, 3, 1)).astype(jnp.bfloat16)
    x = jnp.pad(x, ((0, 0), (0, 0), (0, Wr - W), (0, Cin_p - Cin)))
    x = x.reshape(N, HWr, Cin_p)

    # ---- operand residency: weights resident (batch innermost) for the deep /
    # small-spatial layers, image resident across Cout tiles otherwise ----
    x_bytes = HWr * Cin_p * 2
    w_bytes = K * K * Cin_p * Cout_p * 2
    if weight_resident is None:
        weight_resident = (cob - 1) * x_bytes * N < w_bytes * (N - 1)

    if weight_resident:
        grid = (cob, N)
        x_map = lambda co, n: (n, 0, 0)
        w_map = lambda co, n: (0, 0, co)
        b_map = lambda co, n: (0, co)
        o_map = lambda co, n: (n, 0, co)
    else:
        grid = (N, cob)
        x_map = lambda n, co: (n, 0, 0)
        w_map = lambda n, co: (0, 0, co)
        b_map = lambda n, co: (0, co)
        o_map = lambda n, co: (n, 0, co)

    flops = 2 * N * HWr * K * K * Cin_p * Cout_p
    bytes_accessed = ((cob if weight_resident else 1) * N * x_bytes
                      + (1 if weight_resident else N) * w_bytes
                      + N * HWr * Cout_p * 2 + 4 * Cout_p)

    out_flat = pl.pallas_call(
        functools.partial(acb_kernel, w=W, wr=Wr, mc=MC,
                          fill_every_step=weight_resident),
        out_shape=jax.ShapeDtypeStruct((N, HWr, Cout_p), jnp.bfloat16),
        grid_spec=pltpu.PrefetchScalarGridSpec(
            num_scalar_prefetch=0,
            grid=grid,
            in_specs=[
                pl.BlockSpec((1, HWr, Cin_p), x_map),
                pl.BlockSpec((K * K, Cin_p, TCO), w_map),
                pl.BlockSpec((1, TCO), b_map),
            ],
            out_specs=pl.BlockSpec((1, HWr, TCO), o_map),
            scratch_shapes=[pltpu.VMEM((K, HWr + 2 * Wr, Cin_p), jnp.bfloat16)],
        ),
        compiler_params=pltpu.CompilerParams(
            dimension_semantics=("parallel", "arbitrary"),
            vmem_limit_bytes=_vmem_limit_bytes()),
        cost_estimate=pl.CostEstimate(flops=int(flops), transcendentals=0,
                                      bytes_accessed=int(bytes_accessed)),
    )(x, w_k, b_k)

    # Metadata-only reshape; strip the pitch-padding columns and lane padding.
    out = out_flat.reshape(N, H, Wr, Cout_p)[:, :, :W, :Cout]
    return jnp.transpose(out, (0, 3, 1, 2))                    # NCHW, bf16


def ref_forward(x_nchw, params):
    """Pure-JAX reference matching the PyTorch forward (eval-mode BN), f32."""
    wk1, bk1, w1k, b1k, w33, gamma, beta, rmean, rvar = params
    x = jnp.transpose(x_nchw, (0, 2, 3, 1))

    def conv(x, w_ocihw, pad):
        w = jnp.transpose(w_ocihw, (2, 3, 1, 0))               # HWIO
        return jax.lax.conv_general_dilated(
            x, w, (1, 1), pad, dimension_numbers=("NHWC", "HWIO", "NHWC"))

    x1 = conv(x, wk1, ((1, 1), (0, 0))) + bk1
    x2 = conv(x, w1k, ((0, 0), (1, 1))) + b1k
    x3 = conv(x, w33, ((1, 1), (1, 1)))

    def bn(z):
        return (z - rmean) / jnp.sqrt(rvar + EPS) * gamma + beta

    y = jax.nn.relu(bn(x1) + bn(x2) + bn(x3))
    return jnp.transpose(y, (0, 3, 1, 2))


if __name__ == "__main__":
    key = jax.random.PRNGKey(0)
    N, Cin, Cout, H, W = 2, 4, 8, 16, 16

    ks = jax.random.split(key, 10)
    x = jax.random.normal(ks[0], (N, Cin, H, W), jnp.float32)

    # deterministic parameter init (PyTorch conv weight layout: O, C, kh, kw)
    wk1 = 0.1 * jax.random.normal(ks[1], (Cout, Cin, K, 1), jnp.float32)
    bk1 = 0.1 * jax.random.normal(ks[2], (Cout,), jnp.float32)
    w1k = 0.1 * jax.random.normal(ks[3], (Cout, Cin, 1, K), jnp.float32)
    b1k = 0.1 * jax.random.normal(ks[4], (Cout,), jnp.float32)
    w33 = 0.1 * jax.random.normal(ks[5], (Cout, Cin, K, K), jnp.float32)
    gamma = 1.0 + 0.1 * jax.random.normal(ks[6], (Cout,), jnp.float32)
    beta = 0.1 * jax.random.normal(ks[7], (Cout,), jnp.float32)
    rmean = 0.1 * jax.random.normal(ks[8], (Cout,), jnp.float32)
    rvar = 0.5 + jnp.abs(jax.random.normal(ks[9], (Cout,), jnp.float32))

    params = (wk1, bk1, w1k, b1k, w33, gamma, beta, rmean, rvar)
    ref = ref_forward(x, params)

    # Default path (heuristic picks the weight-resident grid order here).
    out = acb_forward(x, params)
    out = jax.block_until_ready(out)
    assert out.shape == (N, Cout, H, W), out.shape
    err = float(jnp.max(jnp.abs(out.astype(jnp.float32) - ref)))
    # bf16 activations/weights/output (f32 accumulation) vs f32 reference.
    assert jnp.allclose(out.astype(jnp.float32), ref, atol=5e-2, rtol=5e-2), err

    # Exercise the image-resident (gated scratch fill) order and multi-chunk
    # accumulation as well.
    out2 = acb_forward(x, params, weight_resident=False, mc=128)
    out2 = jax.block_until_ready(out2)
    err2 = float(jnp.max(jnp.abs(out2.astype(jnp.float32) - ref)))
    assert jnp.allclose(out2.astype(jnp.float32), ref, atol=5e-2, rtol=5e-2), err2

    print("KERNEL_OK")
</pallas_src>

<mosaic_0001>
module attributes {stable_mosaic.version = 11 : i64} {
  func.func @acb_kernel(%arg0: i32, %arg1: i32, %arg2: memref<1x256x128xbf16, #tpu.memory_space<vmem>>, %arg3: memref<9x128x128xbf16, #tpu.memory_space<vmem>>, %arg4: memref<1x128xf32, #tpu.memory_space<vmem>>, %arg5: memref<1x256x128xbf16, #tpu.memory_space<vmem>>, %arg6: memref<3x288x128xbf16, #tpu.memory_space<vmem>>) attributes {dimension_semantics = [#tpu.dimension_semantics<parallel>, #tpu.dimension_semantics<arbitrary>], iteration_bounds = array<i64: 1, 2>, scalar_prefetch = 0 : i64, scratch_operands = 1 : i64, tpu.core_type = #tpu.core_type<tc>, window_params = [{transform_indices = @transform_0, window_bounds = array<i64: 1, 256, 128>}, {transform_indices = @transform_1, window_bounds = array<i64: 9, 128, 128>}, {transform_indices = @transform_2, window_bounds = array<i64: 1, 128>}, {transform_indices = @transform_3, window_bounds = array<i64: 1, 256, 128>}]} {
    %cst = arith.constant 0.000000e+00 : bf16
    %0 = vector.broadcast %cst : bf16 to vector<3x16x128xbf16>
    %c0 = arith.constant 0 : index
    %c0_0 = arith.constant 0 : index
    %c0_1 = arith.constant 0 : index
    %1 = vector.load %arg6[%c0, %c0_0, %c0_1] : memref<3x288x128xbf16, #tpu.memory_space<vmem>>, vector<3x16x128xbf16>
    tpu.vector_store %arg6[%c0, %c0_0, %c0_1], %0 {strides = array<i32>} : memref<3x288x128xbf16, #tpu.memory_space<vmem>>, vector<3x16x128xbf16>,
    %c0_2 = arith.constant 0 : index
    %c272 = arith.constant 272 : index
    %c0_3 = arith.constant 0 : index
    %2 = vector.load %arg6[%c0_2, %c272, %c0_3] : memref<3x288x128xbf16, #tpu.memory_space<vmem>>, vector<3x16x128xbf16>
    tpu.vector_store %arg6[%c0_2, %c272, %c0_3], %0 {strides = array<i32>} : memref<3x288x128xbf16, #tpu.memory_space<vmem>>, vector<3x16x128xbf16>,
    %c0_4 = arith.constant 0 : index
    %c0_5 = arith.constant 0 : index
    %c0_6 = arith.constant 0 : index
    %3 = vector.load %arg2[%c0_4, %c0_5, %c0_6] : memref<1x256x128xbf16, #tpu.memory_space<vmem>>, vector<1x256x128xbf16>
    %4 = vector.shape_cast %3 : vector<1x256x128xbf16> to vector<256x128xbf16>
    %c1 = arith.constant 1 : index
    %c16 = arith.constant 16 : index
    %c0_7 = arith.constant 0 : index
    %5 = vector.load %arg6[%c1, %c16, %c0_7] : memref<3x288x128xbf16, #tpu.memory_space<vmem>>, vector<1x256x128xbf16>
    %6 = vector.shape_cast %5 : vector<1x256x128xbf16> to vector<256x128xbf16>
    %7 = vector.shape_cast %4 : vector<256x128xbf16> to vector<1x256x128xbf16>
    tpu.vector_store %arg6[%c1, %c16, %c0_7], %7 {strides = array<i32>} : memref<3x288x128xbf16, #tpu.memory_space<vmem>>, vector<1x256x128xbf16>,
    %8 = tpu.iota {dimensions = array<i32: 0>} : vector<256x128xi32>
    %c16_i32 = arith.constant 16 : i32
    %c0_i32 = arith.constant 0 : i32
    %9 = arith.cmpi eq, %c16_i32, %c0_i32 : i32
    %c1_i32 = arith.constant 1 : i32
    %10 = arith.select %9, %c1_i32, %c16_i32 : i32
    %11 = vector.broadcast %10 : i32 to vector<256x128xi32>
    %12 = arith.remsi %8, %11 : vector<256x128xi32>
    %c0_i32_8 = arith.constant 0 : i32
    %13 = vector.broadcast %c0_i32_8 : i32 to vector<256x128xi32>
    %14 = arith.cmpi ne, %12, %13 : vector<256x128xi32>
    %c0_i32_9 = arith.constant 0 : i32
    %15 = vector.broadcast %c0_i32_9 : i32 to vector<256x128xi32>
    %16 = arith.cmpi slt, %12, %15 : vector<256x128xi32>
    %c0_i32_10 = arith.constant 0 : i32
    %17 = arith.cmpi slt, %10, %c0_i32_10 : i32
    %18 = vector.broadcast %17 : i1 to vector<256x128xi1>
    %19 = vector.broadcast %18 : vector<256x128xi1> to vector<256x128xi1>
    %20 = arith.xori %16, %19 : vector<256x128xi1>
    %21 = arith.andi %20, %14 : vector<256x128xi1>
    %22 = vector.broadcast %10 : i32 to vector<256x128xi32>
    %23 = arith.addi %12, %22 : vector<256x128xi32>
    %24 = arith.select %21, %23, %12 : vector<256x128xi1>, vector<256x128xi32>
    %c1_11 = arith.constant 1 : index
    %c15 = arith.constant 15 : index
    %c0_12 = arith.constant 0 : index
    %25 = vector.load %arg6[%c1_11, %c15, %c0_12] : memref<3x288x128xbf16, #tpu.memory_space<vmem>>, vector<1x256x128xbf16>
    %26 = vector.shape_cast %25 : vector<1x256x128xbf16> to vector<256x128xbf16>
    %c0_i32_13 = arith.constant 0 : i32
    %27 = vector.broadcast %c0_i32_13 : i32 to vector<256x128xi32>
    %28 = arith.cmpi eq, %24, %27 : vector<256x128xi32>
    %cst_14 = arith.constant 0.000000e+00 : bf16
    %29 = vector.broadcast %cst_14 : bf16 to vector<256x128xbf16>
    %30 = arith.select %28, %29, %26 : vector<256x128xi1>, vector<256x128xbf16>
    %c0_15 = arith.constant 0 : index
    %c16_16 = arith.constant 16 : index
    %c0_17 = arith.constant 0 : index
    %31 = vector.load %arg6[%c0_15, %c16_16, %c0_17] : memref<3x288x128xbf16, #tpu.memory_space<vmem>>, vector<1x256x128xbf16>
    %32 = vector.shape_cast %31 : vector<1x256x128xbf16> to vector<256x128xbf16>
    %33 = vector.shape_cast %30 : vector<256x128xbf16> to vector<1x256x128xbf16>
    tpu.vector_store %arg6[%c0_15, %c16_16, %c0_17], %33 {strides = array<i32>} : memref<3x288x128xbf16, #tpu.memory_space<vmem>>, vector<1x256x128xbf16>,
    %c1_18 = arith.constant 1 : index
    %c17 = arith.constant 17 : index
    %c0_19 = arith.constant 0 : index
    %34 = vector.load %arg6[%c1_18, %c17, %c0_19] : memref<3x288x128xbf16, #tpu.memory_space<vmem>>, vector<1x256x128xbf16>
    %35 = vector.shape_cast %34 : vector<1x256x128xbf16> to vector<256x128xbf16>
    %c15_i32 = arith.constant 15 : i32
    %36 = vector.broadcast %c15_i32 : i32 to vector<256x128xi32>
    %37 = arith.cmpi eq, %24, %36 : vector<256x128xi32>
    %cst_20 = arith.constant 0.000000e+00 : bf16
    %38 = vector.broadcast %cst_20 : bf16 to vector<256x128xbf16>
    %39 = arith.select %37, %38, %35 : vector<256x128xi1>, vector<256x128xbf16>
    %c2 = arith.constant 2 : index
    %c16_21 = arith.constant 16 : index
    %c0_22 = arith.constant 0 : index
    %40 = vector.load %arg6[%c2, %c16_21, %c0_22] : memref<3x288x128xbf16, #tpu.memory_space<vmem>>, vector<1x256x128xbf16>
    %41 = vector.shape_cast %40 : vector<1x256x128xbf16> to vector<256x128xbf16>
    %42 = vector.shape_cast %39 : vector<256x128xbf16> to vector<1x256x128xbf16>
    tpu.vector_store %arg6[%c2, %c16_21, %c0_22], %42 {strides = array<i32>} : memref<3x288x128xbf16, #tpu.memory_space<vmem>>, vector<1x256x128xbf16>,
    %c0_23 = arith.constant 0 : index
    %c0_24 = arith.constant 0 : index
    %43 = vector.load %arg4[%c0_23, %c0_24] : memref<1x128xf32, #tpu.memory_space<vmem>>, vector<1x128xf32>
    %cst_25 = arith.constant 0.000000e+00 : f32
    %44 = vector.broadcast %cst_25 : f32 to vector<256x128xf32>
    %c0_26 = arith.constant 0 : index
    %c0_27 = arith.constant 0 : index
    %c0_28 = arith.constant 0 : index
    %45 = vector.load %arg6[%c0_26, %c0_27, %c0_28] : memref<3x288x128xbf16, #tpu.memory_space<vmem>>, vector<1x256x128xbf16>
    %46 = vector.shape_cast %45 : vector<1x256x128xbf16> to vector<256x128xbf16>
    %c0_29 = arith.constant 0 : index
    %c0_30 = arith.constant 0 : index
    %c0_31 = arith.constant 0 : index
    %47 = vector.load %arg3[%c0_29, %c0_30, %c0_31] : memref<9x128x128xbf16, #tpu.memory_space<vmem>>, vector<1x128x128xbf16>
    %48 = vector.shape_cast %47 : vector<1x128x128xbf16> to vector<128x128xbf16>
    %cst_32 = arith.constant dense<0.000000e+00> : vector<256x128xf32>
    %49 = tpu.matmul %46, %48, %cst_32 {dimension_numbers = #tpu.dot_dimension_numbers<[1], [0], [0], [1], [0, 0, 1, 1], [], []>} : vector<256x128xbf16>, vector<128x128xbf16>, vector<256x128xf32> -> vector<256x128xf32>
    %50 = arith.addf %44, %49 : vector<256x128xf32>
    %c1_33 = arith.constant 1 : index
    %c0_34 = arith.constant 0 : index
    %c0_35 = arith.constant 0 : index
    %51 = vector.load %arg6[%c1_33, %c0_34, %c0_35] : memref<3x288x128xbf16, #tpu.memory_space<vmem>>, vector<1x256x128xbf16>
    %52 = vector.shape_cast %51 : vector<1x256x128xbf16> to vector<256x128xbf16>
    %c1_36 = arith.constant 1 : index
    %c0_37 = arith.constant 0 : index
    %c0_38 = arith.constant 0 : index
    %53 = vector.load %arg3[%c1_36, %c0_37, %c0_38] : memref<9x128x128xbf16, #tpu.memory_space<vmem>>, vector<1x128x128xbf16>
    %54 = vector.shape_cast %53 : vector<1x128x128xbf16> to vector<128x128xbf16>
    %cst_39 = arith.constant dense<0.000000e+00> : vector<256x128xf32>
    %55 = tpu.matmul %52, %54, %cst_39 {dimension_numbers = #tpu.dot_dimension_numbers<[1], [0], [0], [1], [0, 0, 1, 1], [], []>} : vector<256x128xbf16>, vector<128x128xbf16>, vector<256x128xf32> -> vector<256x128xf32>
    %56 = arith.addf %50, %55 : vector<256x128xf32>
    %c2_40 = arith.constant 2 : index
    %c0_41 = arith.constant 0 : index
    %c0_42 = arith.constant 0 : index
    %57 = vector.load %arg6[%c2_40, %c0_41, %c0_42] : memref<3x288x128xbf16, #tpu.memory_space<vmem>>, vector<1x256x128xbf16>
    %58 = vector.shape_cast %57 : vector<1x256x128xbf16> to vector<256x128xbf16>
    %c2_43 = arith.constant 2 : index
    %c0_44 = arith.constant 0 : index
    %c0_45 = arith.constant 0 : index
    %59 = vector.load %arg3[%c2_43, %c0_44, %c0_45] : memref<9x128x128xbf16, #tpu.memory_space<vmem>>, vector<1x128x128xbf16>
    %60 = vector.shape_cast %59 : vector<1x128x128xbf16> to vector<128x128xbf16>
    %cst_46 = arith.constant dense<0.000000e+00> : vector<256x128xf32>
    %61 = tpu.matmul %58, %60, %cst_46 {dimension_numbers = #tpu.dot_dimension_numbers<[1], [0], [0], [1], [0, 0, 1, 1], [], []>} : vector<256x128xbf16>, vector<128x128xbf16>, vector<256x128xf32> -> vector<256x128xf32>
    %62 = arith.addf %56, %61 : vector<256x128xf32>
    %c0_47 = arith.constant 0 : index
    %c16_48 = arith.constant 16 : index
    %c0_49 = arith.constant 0 : index
    %63 = vector.load %arg6[%c0_47, %c16_48, %c0_49] : memref<3x288x128xbf16, #tpu.memory_space<vmem>>, vector<1x256x128xbf16>
    %64 = vector.shape_cast %63 : vector<1x256x128xbf16> to vector<256x128xbf16>
    %c3 = arith.constant 3 : index
    %c0_50 = arith.constant 0 : index
    %c0_51 = arith.constant 0 : index
    %65 = vector.load %arg3[%c3, %c0_50, %c0_51] : memref<9x128x128xbf16, #tpu.memory_space<vmem>>, vector<1x128x128xbf16>
    %66 = vector.shape_cast %65 : vector<1x128x128xbf16> to vector<128x128xbf16>
    %cst_52 = arith.constant dense<0.000000e+00> : vector<256x128xf32>
    %67 = tpu.matmul %64, %66, %cst_52 {dimension_numbers = #tpu.dot_dimension_numbers<[1], [0], [0], [1], [0, 0, 1, 1], [], []>} : vector<256x128xbf16>, vector<128x128xbf16>, vector<256x128xf32> -> vector<256x128xf32>
    %68 = arith.addf %62, %67 : vector<256x128xf32>
    %c1_53 = arith.constant 1 : index
    %c16_54 = arith.constant 16 : index
    %c0_55 = arith.constant 0 : index
    %69 = vector.load %arg6[%c1_53, %c16_54, %c0_55] : memref<3x288x128xbf16, #tpu.memory_space<vmem>>, vector<1x256x128xbf16>
    %70 = vector.shape_cast %69 : vector<1x256x128xbf16> to vector<256x128xbf16>
    %c4 = arith.constant 4 : index
    %c0_56 = arith.constant 0 : index
    %c0_57 = arith.constant 0 : index
    %71 = vector.load %arg3[%c4, %c0_56, %c0_57] : memref<9x128x128xbf16, #tpu.memory_space<vmem>>, vector<1x128x128xbf16>
    %72 = vector.shape_cast %71 : vector<1x128x128xbf16> to vector<128x128xbf16>
    %cst_58 = arith.constant dense<0.000000e+00> : vector<256x128xf32>
    %73 = tpu.matmul %70, %72, %cst_58 {dimension_numbers = #tpu.dot_dimension_numbers<[1], [0], [0], [1], [0, 0, 1, 1], [], []>} : vector<256x128xbf16>, vector<128x128xbf16>, vector<256x128xf32> -> vector<256x128xf32>
    %74 = arith.addf %68, %73 : vector<256x128xf32>
    %c2_59 = arith.constant 2 : index
    %c16_60 = arith.constant 16 : index
    %c0_61 = arith.constant 0 : index
    %75 = vector.load %arg6[%c2_59, %c16_60, %c0_61] : memref<3x288x128xbf16, #tpu.memory_space<vmem>>, vector<1x256x128xbf16>
    %76 = vector.shape_cast %75 : vector<1x256x128xbf16> to vector<256x128xbf16>
    %c5 = arith.constant 5 : index
    %c0_62 = arith.constant 0 : index
    %c0_63 = arith.constant 0 : index
    %77 = vector.load %arg3[%c5, %c0_62, %c0_63] : memref<9x128x128xbf16, #tpu.memory_space<vmem>>, vector<1x128x128xbf16>
    %78 = vector.shape_cast %77 : vector<1x128x128xbf16> to vector<128x128xbf16>
    %cst_64 = arith.constant dense<0.000000e+00> : vector<256x128xf32>
    %79 = tpu.matmul %76, %78, %cst_64 {dimension_numbers = #tpu.dot_dimension_numbers<[1], [0], [0], [1], [0, 0, 1, 1], [], []>} : vector<256x128xbf16>, vector<128x128xbf16>, vector<256x128xf32> -> vector<256x128xf32>
    %80 = arith.addf %74, %79 : vector<256x128xf32>
    %c0_65 = arith.constant 0 : index
    %c32 = arith.constant 32 : index
    %c0_66 = arith.constant 0 : index
    %81 = vector.load %arg6[%c0_65, %c32, %c0_66] : memref<3x288x128xbf16, #tpu.memory_space<vmem>>, vector<1x256x128xbf16>
    %82 = vector.shape_cast %81 : vector<1x256x128xbf16> to vector<256x128xbf16>
    %c6 = arith.constant 6 : index
    %c0_67 = arith.constant 0 : index
    %c0_68 = arith.constant 0 : index
    %83 = vector.load %arg3[%c6, %c0_67, %c0_68] : memref<9x128x128xbf16, #tpu.memory_space<vmem>>, vector<1x128x128xbf16>
    %84 = vector.shape_cast %83 : vector<1x128x128xbf16> to vector<128x128xbf16>
    %cst_69 = arith.constant dense<0.000000e+00> : vector<256x128xf32>
    %85 = tpu.matmul %82, %84, %cst_69 {dimension_numbers = #tpu.dot_dimension_numbers<[1], [0], [0], [1], [0, 0, 1, 1], [], []>} : vector<256x128xbf16>, vector<128x128xbf16>, vector<256x128xf32> -> vector<256x128xf32>
    %86 = arith.addf %80, %85 : vector<256x128xf32>
    %c1_70 = arith.constant 1 : index
    %c32_71 = arith.constant 32 : index
    %c0_72 = arith.constant 0 : index
    %87 = vector.load %arg6[%c1_70, %c32_71, %c0_72] : memref<3x288x128xbf16, #tpu.memory_space<vmem>>, vector<1x256x128xbf16>
    %88 = vector.shape_cast %87 : vector<1x256x128xbf16> to vector<256x128xbf16>
    %c7 = arith.constant 7 : index
    %c0_73 = arith.constant 0 : index
    %c0_74 = arith.constant 0 : index
    %89 = vector.load %arg3[%c7, %c0_73, %c0_74] : memref<9x128x128xbf16, #tpu.memory_space<vmem>>, vector<1x128x128xbf16>
    %90 = vector.shape_cast %89 : vector<1x128x128xbf16> to vector<128x128xbf16>
    %cst_75 = arith.constant dense<0.000000e+00> : vector<256x128xf32>
    %91 = tpu.matmul %88, %90, %cst_75 {dimension_numbers = #tpu.dot_dimension_numbers<[1], [0], [0], [1], [0, 0, 1, 1], [], []>} : vector<256x128xbf16>, vector<128x128xbf16>, vector<256x128xf32> -> vector<256x128xf32>
    %92 = arith.addf %86, %91 : vector<256x128xf32>
    %c2_76 = arith.constant 2 : index
    %c32_77 = arith.constant 32 : index
    %c0_78 = arith.constant 0 : index
    %93 = vector.load %arg6[%c2_76, %c32_77, %c0_78] : memref<3x288x128xbf16, #tpu.memory_space<vmem>>, vector<1x256x128xbf16>
    %94 = vector.shape_cast %93 : vector<1x256x128xbf16> to vector<256x128xbf16>
    %c8 = arith.constant 8 : index
    %c0_79 = arith.constant 0 : index
    %c0_80 = arith.constant 0 : index
    %95 = vector.load %arg3[%c8, %c0_79, %c0_80] : memref<9x128x128xbf16, #tpu.memory_space<vmem>>, vector<1x128x128xbf16>
    %96 = vector.shape_cast %95 : vector<1x128x128xbf16> to vector<128x128xbf16>
    %cst_81 = arith.constant dense<0.000000e+00> : vector<256x128xf32>
    %97 = tpu.matmul %94, %96, %cst_81 {dimension_numbers = #tpu.dot_dimension_numbers<[1], [0], [0], [1], [0, 0, 1, 1], [], []>} : vector<256x128xbf16>, vector<128x128xbf16>, vector<256x128xf32> -> vector<256x128xf32>
    %98 = arith.addf %92, %97 : vector<256x128xf32>
    %99 = vector.broadcast %43 : vector<1x128xf32> to vector<256x128xf32>
    %100 = arith.addf %98, %99 : vector<256x128xf32>
    %cst_82 = arith.constant 0.000000e+00 : f32
    %101 = vector.broadcast %cst_82 : f32 to vector<256x128xf32>
    %102 = arith.maximumf %100, %101 : vector<256x128xf32>
    %103 = arith.truncf %102 : vector<256x128xf32> to vector<256x128xbf16>
    %c0_83 = arith.constant 0 : index
    %c0_84 = arith.constant 0 : index
    %c0_85 = arith.constant 0 : index
    %104 = vector.load %arg5[%c0_83, %c0_84, %c0_85] : memref<1x256x128xbf16, #tpu.memory_space<vmem>>, vector<1x256x128xbf16>
    %105 = vector.shape_cast %104 : vector<1x256x128xbf16> to vector<256x128xbf16>
    %106 = vector.shape_cast %103 : vector<256x128xbf16> to vector<1x256x128xbf16>
    tpu.vector_store %arg5[%c0_83, %c0_84, %c0_85], %106 {strides = array<i32>} : memref<1x256x128xbf16, #tpu.memory_space<vmem>>, vector<1x256x128xbf16>,
    return
  }
  func.func @transform_0(%arg0: i32, %arg1: i32) -> (i32, i32, i32) {
    %c0_i32 = arith.constant 0 : i32
    %c0_i32_0 = arith.constant 0 : i32
    %c0_i32_1 = arith.constant 0 : i32
    return %arg1, %c0_i32, %c0_i32_0 : i32, i32, i32
  }
  func.func @transform_1(%arg0: i32, %arg1: i32) -> (i32, i32, i32) {
    %c0_i32 = arith.constant 0 : i32
    %c0_i32_0 = arith.constant 0 : i32
    %c0_i32_1 = arith.constant 0 : i32
    return %c0_i32, %c0_i32_0, %arg0 : i32, i32, i32
  }
  func.func @transform_2(%arg0: i32, %arg1: i32) -> (i32, i32) {
    %c0_i32 = arith.constant 0 : i32
    %c0_i32_0 = arith.constant 0 : i32
    return %c0_i32, %arg0 : i32, i32
  }
  func.func @transform_3(%arg0: i32, %arg1: i32) -> (i32, i32, i32) {
    %c0_i32 = arith.constant 0 : i32
    %c0_i32_0 = arith.constant 0 : i32
    return %arg1, %c0_i32, %arg0 : i32, i32, i32
  }
}

</mosaic_0001>

<llo_original>
// kernel: tpu_custom_call.1
$region0: #{tpu_custom_call.1}
  #allocation0 [shape = 'u32[]', space=smem, size = 0x4, offset = 0x4, fixed_abs, tag = 'smem constant byte address 0x4 - core index']
  #allocation1 [shape = 'u32[72,128]{1,0:T(1,128)}', space=vmem, size = 0x9000, scoped, tag = 'internal scratch']
  #allocation2 [shape = 'bf16[3,288,128]{2,1,0:T(8,128)(2,1)}', space=vmem, size = 0x36000, scoped, tag = 'scratch operand']
  %s0 = inlined_call_operand.hbm [shape: bf16[2,256,128], index: 0, kind: input, shape index: {}]
  %s1 = inlined_call_operand.hbm [shape: bf16[9,128,128], index: 1, kind: input, shape index: {}]
  %s2 = inlined_call_operand.vmem [shape: f32[1,128], index: 2, kind: input, shape index: {}]
  %s3 = inlined_call_operand.hbm [shape: bf16[2,256,128], index: 3, kind: output, shape index: {}]
  %s4 = sld [smem:[#allocation0]]
  $region53: #{tpu_custom_call.1} parent=0
    _
  %s6 = ssub.s32 1, %s4
  %s7 = scalar_select 0, %s6, %s4
  $region1: #{tpu_custom_call.1} parent=0
    #allocation3 [shape = 'u8[131072]{0}', space=vmem, size = 0x20000, scoped, tag = 'input window, operand 0']
    #allocation4 [shape = 's32[2]{0}', space=sflag, size = 0x8, scoped, tag = 'scoped memory for tpu_custom_call.1']
    #allocation5 [shape = 's32[2]{0}', space=sflag, size = 0x8, scoped, tag = 'scoped memory for tpu_custom_call.1']
    #allocation6 [shape = 'u8[294912]{0}', space=vmem, size = 0x48000, scoped, tag = 'input window, operand 1, single buffered']
    #allocation7 [shape = 's32[1]{0}', space=sflag, size = 0x4, scoped, tag = 'scoped memory for tpu_custom_call.1']
    #allocation8 [shape = 'u8[131072]{0}', space=vmem, size = 0x20000, scoped, tag = 'output window, operand 0']
    %8 = vsyncpa [#allocation4], 0
    %s9 = scalar_lea.sflag [#allocation4], 1
    %10 = vsyncpa %s9, 0
    %11 = vsyncpa [#allocation7], 0
    %12 = vsyncpa [#allocation5], 0
    %s13 = scalar_lea.sflag [#allocation5], 1
    %14 = vsyncpa %s13, 0
    loop: start=0, step=1, limit=4
    $region2: #{tpu_custom_call.1} parent=1 // loop_pre_header
      _
    $region3: #{tpu_custom_call.1} parent=1 // loop_header
      %s16 = sphi 0, %s20
      %p17 = scmp.ge.s32.totalorder %s16, 4
      %s23 = sphi 0, %s35
      %s24 = sphi 0, %s31
      %s25 = sphi 0, %s23
      %s26 = sphi 0, %s24
      %s27 = sphi 0, %s25
      %s28 = sphi 0, %s26
      %s38 = sphi 0, %s40
      %s41 = sphi 0, %s38
      %s42 = sphi 0, %s41
      %s58 = sphi 0, %s42
      %s64 = sphi 0, %s66
      %s67 = sphi 0, %s64
      %s68 = sphi 0, %s67
      %s84 = sphi 0, %s68
      %s90 = sphi 0, %s92
      %s93 = sphi 0, %s90
      %s94 = sphi 0, %s93
      %s110 = sphi 0, %s94
      %s118 = sphi 0, %s120
      %s121 = sphi 0, %s118
      %s122 = sphi 0, %s121
      %s138 = sphi 0, %s122
    $region4: #{tpu_custom_call.1} parent=1 // loop_header_branch
      %19 = sbr.rel (%p17) target = $region8
    $region5: #{tpu_custom_call.1} parent=1 // loop_body
      %s21 = ssub.s32 %s16, 1
      %s22 = ssub.s32 %s16, 2
      %s29 = sadd.s32 1, %s24
      %p30 = scmp.ge.s32.totalorder %s29, 2
      %s31 = scalar_select %p30, 0, %s29
      %s32 = sadd.s32 1, %s23
      %s33 = scalar_select %p30, %s32, %s23
      %p34 = scmp.ge.s32.totalorder %s33, 1
      %s35 = scalar_select %p34, 0, %s33
      %s36 = ssub.s32 %s24, %s31
      %p37 = scmp.eq.s32.totalorder %s36, 0
      %s39 = sadd.s32 %s38, 1
      %s40 = scalar_select %p37, %s38, %s39
      %p43 = pneg %p37
      %p44 = scmp.eq.s32.totalorder %s16, 1
      %p45 = por %p43, %p44
      %p46 = scmp.ne.s32.totalorder %s38, %s41
      %p47 = scmp.eq.s32.totalorder %s16, 0
      %p48 = por %p46, %p47
      %p49 = scmp.ne.s32.totalorder %s38, %s41
      %p50 = scmp.eq.s32.totalorder %s21, 1
      %p51 = por %p49, %p50
      %p52 = scmp.ne.s32.totalorder %s41, %s42
      %p53 = scmp.eq.s32.totalorder %s21, 0
      %p54 = por %p52, %p53
      %p55 = scmp.ne.s32.totalorder %s41, %s42
      %p56 = scmp.eq.s32.totalorder %s22, 1
      %p57 = por %p55, %p56
      %p59 = scmp.ne.s32.totalorder %s42, %s58
      %p60 = scmp.eq.s32.totalorder %s22, 0
      %p61 = por %p59, %p60
      %s62 = ssub.s32 %s23, %s35
      %p63 = scmp.eq.s32.totalorder %s62, 0
      %s65 = sadd.s32 %s64, 1
      %s66 = scalar_select %p63, %s64, %s65
      %p69 = pneg %p63
      %p70 = scmp.eq.s32.totalorder %s16, 1
      %p71 = por %p69, %p70
      %p72 = scmp.ne.s32.totalorder %s64, %s67
      %p73 = scmp.eq.s32.totalorder %s16, 0
      %p74 = por %p72, %p73
      %p75 = scmp.ne.s32.totalorder %s64, %s67
      %p76 = scmp.eq.s32.totalorder %s21, 1
      %p77 = por %p75, %p76
      %p78 = scmp.ne.s32.totalorder %s67, %s68
      %p79 = scmp.eq.s32.totalorder %s21, 0
      %p80 = por %p78, %p79
      %p81 = scmp.ne.s32.totalorder %s67, %s68
      %p82 = scmp.eq.s32.totalorder %s22, 1
      %p83 = por %p81, %p82
      %p85 = scmp.ne.s32.totalorder %s68, %s84
      %p86 = scmp.eq.s32.totalorder %s22, 0
      %p87 = por %p85, %p86
      %s88 = ssub.s32 %s23, %s35
      %p89 = scmp.eq.s32.totalorder %s88, 0
      %s91 = sadd.s32 %s90, 1
      %s92 = scalar_select %p89, %s90, %s91
      %p95 = pneg %p89
      %p96 = scmp.eq.s32.totalorder %s16, 1
      %p97 = por %p95, %p96
      %p98 = scmp.ne.s32.totalorder %s90, %s93
      %p99 = scmp.eq.s32.totalorder %s16, 0
      %p100 = por %p98, %p99
      %p101 = scmp.ne.s32.totalorder %s90, %s93
      %p102 = scmp.eq.s32.totalorder %s21, 1
      %p103 = por %p101, %p102
      %p104 = scmp.ne.s32.totalorder %s93, %s94
      %p105 = scmp.eq.s32.totalorder %s21, 0
      %p106 = por %p104, %p105
      %p107 = scmp.ne.s32.totalorder %s93, %s94
      %p108 = scmp.eq.s32.totalorder %s22, 1
      %p109 = por %p107, %p108
      %p111 = scmp.ne.s32.totalorder %s94, %s110
      %p112 = scmp.eq.s32.totalorder %s22, 0
      %p113 = por %p111, %p112
      %s114 = ssub.s32 %s24, %s31
      %s115 = ssub.s32 %s23, %s35
      %s116 = sor.u32 %s114, %s115
      %p117 = scmp.eq.s32.totalorder %s116, 0
      %s119 = sadd.s32 %s118, 1
      %s120 = scalar_select %p117, %s118, %s119
      %p123 = pneg %p117
      %p124 = scmp.eq.s32.totalorder %s16, 1
      %p125 = por %p123, %p124
      %p126 = scmp.ne.s32.totalorder %s118, %s121
      %p127 = scmp.eq.s32.totalorder %s16, 0
      %p128 = por %p126, %p127
      %p129 = scmp.ne.s32.totalorder %s118, %s121
      %p130 = scmp.eq.s32.totalorder %s21, 1
      %p131 = por %p129, %p130
      %p132 = scmp.ne.s32.totalorder %s121, %s122
      %p133 = scmp.eq.s32.totalorder %s21, 0
      %p134 = por %p132, %p133
      %p135 = scmp.ne.s32.totalorder %s121, %s122
      %p136 = scmp.eq.s32.totalorder %s22, 1
      %p137 = por %p135, %p136
      %p139 = scmp.ne.s32.totalorder %s122, %s138
      %p140 = scmp.eq.s32.totalorder %s22, 0
      %p141 = por %p139, %p140
      %p142 = scmp.le.s32.totalorder 1, %s16
      %p143 = scmp.lt.s32.totalorder %s16, 3
      %p144 = pnand %p142, %p143
      %p145 = pneg %p144
      // Predicated region
      $region9: #{tpu_custom_call.1} parent=5 // pred_check
        _
      $region10: #{tpu_custom_call.1} parent=5 // pred_check_branch
        %147 = sbr.rel (%p144) target = $region12
      $region11: #{tpu_custom_call.1} parent=5 // pred_region
        %s148 = ssub.s32 %s16, 1
        // Predicated region
        $region13: #{tpu_custom_call.1} parent=11 // pred_check
          %p149 = pneg %p80
        $region14: #{tpu_custom_call.1} parent=11 // pred_check_branch
          %151 = sbr.rel (%p149) target = $region16
        $region15: #{tpu_custom_call.1} parent=11 // pred_region
          %153 = vsyncadd [#allocation7], 0
          %s154 = smul.addr %s25, 4
          %s155 = scalar_lea.hbm %s1, %s154
          %s156 = sshll.u32 %s155, 4
          %s157 = int_to_ptr.hbm [resolvable:$true] %s156
          %s158 = sshll.u32 [#allocation6], 4
          %s159 = int_to_ptr.vmem [resolvable:$true] %s158
          %164 = dma.hbm_to_vmem [thread:$0]  %s157, 9216, %s159, [#allocation7], 64, 64, 4
        $region16: #{tpu_custom_call.1} parent=11 // pred_fallthru
          _
        // Predicated region
        $region17: #{tpu_custom_call.1} parent=11 // pred_check
          %p165 = pneg %p106
        $region18: #{tpu_custom_call.1} parent=11 // pred_check_branch
          %167 = sbr.rel (%p165) target = $region20
        $region19: #{tpu_custom_call.1} parent=11 // pred_region
          %p168 = scmp.lt.s32.totalorder %s25, 0
          %s169 = scalar_select %p168, %s25, 0
          %s170 = scalar_lea.vmem %s2, %s169
        $region20: #{tpu_custom_call.1} parent=11 // pred_fallthru
          _
      $region12: #{tpu_custom_call.1} parent=5 // pred_fallthru
        _
      %p171 = scmp.lt.s32.totalorder %s16, 2
      // Predicated region
      $region21: #{tpu_custom_call.1} parent=5 // pred_check
        %p172 = pneg %p171
      $region22: #{tpu_custom_call.1} parent=5 // pred_check_branch
        %174 = sbr.rel (%p172) target = $region24
      $region23: #{tpu_custom_call.1} parent=5 // pred_region
        // Predicated region
        $region25: #{tpu_custom_call.1} parent=23 // pred_check
          %p175 = pneg %p48
        $region26: #{tpu_custom_call.1} parent=23 // pred_check_branch
          %177 = sbr.rel (%p175) target = $region28
        $region27: #{tpu_custom_call.1} parent=23 // pred_region
          %s178 = sand.u32 %s38, 1
          %s179 = scalar_lea.sflag [#allocation4], %s178
          %s180 = sand.u32 %s38, 1
          %s181 = smul.addr %s180, 128
          %s182 = scalar_lea.vmem [#allocation3], %s181
          %184 = vsyncadd %s179, 0
          %s185 = smul.addr %s24, 32
          %s186 = smul.addr %s185, 4
          %s187 = scalar_lea.hbm %s0, %s186
          %s188 = sshll.u32 %s187, 4
          %s189 = int_to_ptr.hbm [resolvable:$true] %s188
          %s190 = sshll.u32 %s182, 4
          %s191 = int_to_ptr.vmem [resolvable:$true] %s190
          %196 = dma.hbm_to_vmem [thread:$0]  %s189, 2048, %s191, %s179, 64, 64, 4
        $region28: #{tpu_custom_call.1} parent=23 // pred_fallthru
          _
      $region24: #{tpu_custom_call.1} parent=5 // pred_fallthru
        _
      %p197 = scmp.le.s32.totalorder 1, %s16
      %p198 = scmp.lt.s32.totalorder %s16, 3
      %p199 = pnand %p197, %p198
      %p200 = pneg %p199
      // Predicated region
      $region29: #{tpu_custom_call.1} parent=5 // pred_check
        _
      $region30: #{tpu_custom_call.1} parent=5 // pred_check_branch
        %202 = sbr.rel (%p199) target = $region32
      $region31: #{tpu_custom_call.1} parent=5 // pred_region
        %s203 = ssub.s32 %s16, 1
        %s204 = sand.u32 %s41, 1
        %s205 = scalar_lea.sflag [#allocation4], %s204
        %s206 = sand.u32 %s41, 1
        %s207 = smul.addr %s206, 128
        %s208 = scalar_lea.vmem [#allocation3], %s207
        // Predicated region
        $region33: #{tpu_custom_call.1} parent=31 // pred_check
          %p209 = pneg %p54
        $region34: #{tpu_custom_call.1} parent=31 // pred_check_branch
          %211 = sbr.rel (%p209) target = $region36
        $region35: #{tpu_custom_call.1} parent=31 // pred_region
          %213 = dma.done %s205, 2048
        $region36: #{tpu_custom_call.1} parent=31 // pred_fallthru
          _
        // Predicated region
        $region37: #{tpu_custom_call.1} parent=31 // pred_check
          %p214 = pneg %p80
        $region38: #{tpu_custom_call.1} parent=31 // pred_check_branch
          %216 = sbr.rel (%p214) target = $region40
        $region39: #{tpu_custom_call.1} parent=31 // pred_region
          %218 = dma.done [#allocation7], 9216
        $region40: #{tpu_custom_call.1} parent=31 // pred_fallthru
          _
        %s219 = sand.u32 %s41, 1
        %s220 = scalar_lea.sflag [#allocation4], %s219
        %s221 = sand.u32 %s41, 1
        %s222 = smul.addr %s221, 128
        %s223 = scalar_lea.vmem [#allocation3], %s222
        %p224 = pneg %p54
        %p225 = pneg %p51
        %p226 = pneg %p80
        %p227 = pneg %p77
        %p228 = scmp.lt.s32.totalorder %s25, 0
        %s229 = scalar_select %p228, %s25, 0
        %s230 = scalar_lea.vmem %s2, %s229
        %p231 = pneg %p106
        %p232 = pneg %p103
        %p233 = pneg %p134
        %p234 = pneg %p131
        %s235 = sand.u32 %s121, 1
        %s236 = scalar_lea.sflag [#allocation5], %s235
        %s237 = sand.u32 %s121, 1
        %s238 = smul.addr %s237, 128
        %s239 = scalar_lea.vmem [#allocation8], %s238
        %p240 = scmp.lt.s32.totalorder %s25, 0
        %s241 = scalar_select %p240, %s25, 0
        %s242 = scalar_lea.vmem %s2, %s241
        %246 = vst [vmem:[#allocation2] sm:$0xf] 0
        %247 = vst [vmem:[#allocation2 + $0x4] sm:$0xf] 0
        %248 = vst [vmem:[#allocation2 + $0x90] sm:$0xf] 0
        %249 = vst [vmem:[#allocation2 + $0x94] sm:$0xf] 0
        %250 = vst [vmem:[#allocation2 + $0x120] sm:$0xf] 0
        %251 = vst [vmem:[#allocation2 + $0x124] sm:$0xf] 0
        %252 = vst [vmem:[#allocation2 + $0x88] sm:$0xf] 0
        %253 = vst [vmem:[#allocation2 + $0x8c] sm:$0xf] 0
        %254 = vst [vmem:[#allocation2 + $0x118] sm:$0xf] 0
        %255 = vst [vmem:[#allocation2 + $0x11c] sm:$0xf] 0
        %256 = vst [vmem:[#allocation2 + $0x1a8] sm:$0xf] 0
        %257 = vst [vmem:[#allocation2 + $0x1ac] sm:$0xf] 0
        %v258 = vld [vmem:[%s208] sm:$0xf]
        %v259 = vld [vmem:[%s208 + $0x4] sm:$0xf]
        %v260 = vld [vmem:[%s208 + $0x8] sm:$0xf]
        %v261 = vld [vmem:[%s208 + $0xc] sm:$0xf]
        %v262 = vld [vmem:[%s208 + $0x10] sm:$0xf]
        %v263 = vld [vmem:[%s208 + $0x14] sm:$0xf]
        %v264 = vld [vmem:[%s208 + $0x18] sm:$0xf]
        %v265 = vld [vmem:[%s208 + $0x1c] sm:$0xf]
        %v266 = vld [vmem:[%s208 + $0x20] sm:$0xf]
        %v267 = vld [vmem:[%s208 + $0x24] sm:$0xf]
        %v268 = vld [vmem:[%s208 + $0x28] sm:$0xf]
        %v269 = vld [vmem:[%s208 + $0x2c] sm:$0xf]
        %v270 = vld [vmem:[%s208 + $0x30] sm:$0xf]
        %v271 = vld [vmem:[%s208 + $0x34] sm:$0xf]
        %v272 = vld [vmem:[%s208 + $0x38] sm:$0xf]
        %v273 = vld [vmem:[%s208 + $0x3c] sm:$0xf]
        %v274 = vld [vmem:[%s208 + $0x40] sm:$0xf]
        %v275 = vld [vmem:[%s208 + $0x44] sm:$0xf]
        %v276 = vld [vmem:[%s208 + $0x48] sm:$0xf]
        %v277 = vld [vmem:[%s208 + $0x4c] sm:$0xf]
        %v278 = vld [vmem:[%s208 + $0x50] sm:$0xf]
        %v279 = vld [vmem:[%s208 + $0x54] sm:$0xf]
        %v280 = vld [vmem:[%s208 + $0x58] sm:$0xf]
        %v281 = vld [vmem:[%s208 + $0x5c] sm:$0xf]
        %v282 = vld [vmem:[%s208 + $0x60] sm:$0xf]
        %v283 = vld [vmem:[%s208 + $0x64] sm:$0xf]
        %v284 = vld [vmem:[%s208 + $0x68] sm:$0xf]
        %v285 = vld [vmem:[%s208 + $0x6c] sm:$0xf]
        %v286 = vld [vmem:[%s208 + $0x70] sm:$0xf]
        %v287 = vld [vmem:[%s208 + $0x74] sm:$0xf]
        %v288 = vld [vmem:[%s208 + $0x78] sm:$0xf]
        %v289 = vld [vmem:[%s208 + $0x7c] sm:$0xf]
        %s290 = scalar_lea.vmem [#allocation2], 144
        %291 = vst [vmem:[%s290 + $0x8] sm:$0xf] %v258
        %292 = vst [vmem:[%s290 + $0xc] sm:$0xf] %v259
        %293 = vst [vmem:[%s290 + $0x10] sm:$0xf] %v260
        %294 = vst [vmem:[%s290 + $0x14] sm:$0xf] %v261
        %295 = vst [vmem:[%s290 + $0x18] sm:$0xf] %v262
        %296 = vst [vmem:[%s290 + $0x1c] sm:$0xf] %v263
        %297 = vst [vmem:[%s290 + $0x20] sm:$0xf] %v264
        %298 = vst [vmem:[%s290 + $0x24] sm:$0xf] %v265
        %299 = vst [vmem:[%s290 + $0x28] sm:$0xf] %v266
        %300 = vst [vmem:[%s290 + $0x2c] sm:$0xf] %v267
        %301 = vst [vmem:[%s290 + $0x30] sm:$0xf] %v268
        %302 = vst [vmem:[%s290 + $0x34] sm:$0xf] %v269
        %303 = vst [vmem:[%s290 + $0x38] sm:$0xf] %v270
        %304 = vst [vmem:[%s290 + $0x3c] sm:$0xf] %v271
        %305 = vst [vmem:[%s290 + $0x40] sm:$0xf] %v272
        %306 = vst [vmem:[%s290 + $0x44] sm:$0xf] %v273
        %307 = vst [vmem:[%s290 + $0x48] sm:$0xf] %v274
        %308 = vst [vmem:[%s290 + $0x4c] sm:$0xf] %v275
        %309 = vst [vmem:[%s290 + $0x50] sm:$0xf] %v276
        %310 = vst [vmem:[%s290 + $0x54] sm:$0xf] %v277
        %311 = vst [vmem:[%s290 + $0x58] sm:$0xf] %v278
        %312 = vst [vmem:[%s290 + $0x5c] sm:$0xf] %v279
        %313 = vst [vmem:[%s290 + $0x60] sm:$0xf] %v280
        %314 = vst [vmem:[%s290 + $0x64] sm:$0xf] %v281
        %315 = vst [vmem:[%s290 + $0x68] sm:$0xf] %v282
        %316 = vst [vmem:[%s290 + $0x6c] sm:$0xf] %v283
        %317 = vst [vmem:[%s290 + $0x70] sm:$0xf] %v284
        %318 = vst [vmem:[%s290 + $0x74] sm:$0xf] %v285
        %319 = vst [vmem:[%s290 + $0x78] sm:$0xf] %v286
        %320 = vst [vmem:[%s290 + $0x7c] sm:$0xf] %v287
        %321 = vst [vmem:[%s290 + $0x80] sm:$0xf] %v288
        %322 = vst [vmem:[%s290 + $0x84] sm:$0xf] %v289
        %v323 = vlaneseq
        %v324 = vshrl.u32 %v323, 7
        %v325 = vadd.s32 %v324, 8
        %v326 = vadd.s32 %v324, 16
        %v327 = vadd.s32 %v324, 24
        %v328 = vadd.s32 %v324, 32
        %v329 = vadd.s32 %v324, 40
        %v330 = vadd.s32 %v324, 48
        %v331 = vadd.s32 %v324, 56
        %v332 = vadd.s32 %v324, 64
        %v333 = vadd.s32 %v324, 72
        %v334 = vadd.s32 %v324, 80
        %v335 = vadd.s32 %v324, 88
        %v336 = vadd.s32 %v324, 96
        %v337 = vadd.s32 %v324, 104
        %v338 = vadd.s32 %v324, 112
        %v339 = vadd.s32 %v324, 120
        %v340 = vadd.s32 %v324, 128
        %v341 = vadd.s32 %v324, 136
        %v342 = vadd.s32 %v324, 144
        %v343 = vadd.s32 %v324, 152
        %v344 = vadd.s32 %v324, 160
        %v345 = vadd.s32 %v324, 168
        %v346 = vadd.s32 %v324, 176
        %v347 = vadd.s32 %v324, 184
        %v348 = vadd.s32 %v324, 192
        %v349 = vadd.s32 %v324, 200
        %v350 = vadd.s32 %v324, 208
        %v351 = vadd.s32 %v324, 216
        %v352 = vadd.s32 %v324, 224
        %v353 = vadd.s32 %v324, 232
        %v354 = vadd.s32 %v324, 240
        %v355 = vadd.s32 %v324, 248
        %vm356 = vcmp.lt.s32.totalorder %v324, 0
        %v357 = vsub.s32 0, %v324
        %v358 = vsel %vm356, %v357, %v324
        %v359 = vshrl.u32 %v358, 4
        %v360 = vand.u32 %v358, 15
        %v361 = vsub.s32 0, %v360
        %v362 = vsel %vm356, %v361, %v360
        %vm363 = vcmp.lt.s32.totalorder %v325, 0
        %v364 = vsub.s32 0, %v325
        %v365 = vsel %vm363, %v364, %v325
        %v366 = vshrl.u32 %v365, 4
        %v367 = vand.u32 %v365, 15
        %v368 = vsub.s32 0, %v367
        %v369 = vsel %vm363, %v368, %v367
        %vm370 = vcmp.lt.s32.totalorder %v326, 0
        %v371 = vsub.s32 0, %v326
        %v372 = vsel %vm370, %v371, %v326
        %v373 = vshrl.u32 %v372, 4
        %v374 = vand.u32 %v372, 15
        %v375 = vsub.s32 0, %v374
        %v376 = vsel %vm370, %v375, %v374
        %vm377 = vcmp.lt.s32.totalorder %v327, 0
        %v378 = vsub.s32 0, %v327
        %v379 = vsel %vm377, %v378, %v327
        %v380 = vshrl.u32 %v379, 4
        %v381 = vand.u32 %v379, 15
        %v382 = vsub.s32 0, %v381
        %v383 = vsel %vm377, %v382, %v381
        %vm384 = vcmp.lt.s32.totalorder %v328, 0
        %v385 = vsub.s32 0, %v328
        %v386 = vsel %vm384, %v385, %v328
        %v387 = vshrl.u32 %v386, 4
        %v388 = vand.u32 %v386, 15
        %v389 = vsub.s32 0, %v388
        %v390 = vsel %vm384, %v389, %v388
        %vm391 = vcmp.lt.s32.totalorder %v329, 0
        %v392 = vsub.s32 0, %v329
        %v393 = vsel %vm391, %v392, %v329
        %v394 = vshrl.u32 %v393, 4
        %v395 = vand.u32 %v393, 15
        %v396 = vsub.s32 0, %v395
        %v397 = vsel %vm391, %v396, %v395
        %vm398 = vcmp.lt.s32.totalorder %v330, 0
        %v399 = vsub.s32 0, %v330
        %v400 = vsel %vm398, %v399, %v330
        %v401 = vshrl.u32 %v400, 4
        %v402 = vand.u32 %v400, 15
        %v403 = vsub.s32 0, %v402
        %v404 = vsel %vm398, %v403, %v402
        %vm405 = vcmp.lt.s32.totalorder %v331, 0
        %v406 = vsub.s32 0, %v331
        %v407 = vsel %vm405, %v406, %v331
        %v408 = vshrl.u32 %v407, 4
        %v409 = vand.u32 %v407, 15
        %v410 = vsub.s32 0, %v409
        %v411 = vsel %vm405, %v410, %v409
        %vm412 = vcmp.lt.s32.totalorder %v332, 0
        %v413 = vsub.s32 0, %v332
        %v414 = vsel %vm412, %v413, %v332
        %v415 = vshrl.u32 %v414, 4
        %v416 = vand.u32 %v414, 15
        %v417 = vsub.s32 0, %v416
        %v418 = vsel %vm412, %v417, %v416
        %vm419 = vcmp.lt.s32.totalorder %v333, 0
        %v420 = vsub.s32 0, %v333
        %v421 = vsel %vm419, %v420, %v333
        %v422 = vshrl.u32 %v421, 4
        %v423 = vand.u32 %v421, 15
        %v424 = vsub.s32 0, %v423
        %v425 = vsel %vm419, %v424, %v423
        %vm426 = vcmp.lt.s32.totalorder %v334, 0
        %v427 = vsub.s32 0, %v334
        %v428 = vsel %vm426, %v427, %v334
        %v429 = vshrl.u32 %v428, 4
        %v430 = vand.u32 %v428, 15
        %v431 = vsub.s32 0, %v430
        %v432 = vsel %vm426, %v431, %v430
        %vm433 = vcmp.lt.s32.totalorder %v335, 0
        %v434 = vsub.s32 0, %v335
        %v435 = vsel %vm433, %v434, %v335
        %v436 = vshrl.u32 %v435, 4
        %v437 = vand.u32 %v435, 15
        %v438 = vsub.s32 0, %v437
        %v439 = vsel %vm433, %v438, %v437
        %vm440 = vcmp.lt.s32.totalorder %v336, 0
        %v441 = vsub.s32 0, %v336
        %v442 = vsel %vm440, %v441, %v336
        %v443 = vshrl.u32 %v442, 4
        %v444 = vand.u32 %v442, 15
        %v445 = vsub.s32 0, %v444
        %v446 = vsel %vm440, %v445, %v444
        %vm447 = vcmp.lt.s32.totalorder %v337, 0
        %v448 = vsub.s32 0, %v337
        %v449 = vsel %vm447, %v448, %v337
        %v450 = vshrl.u32 %v449, 4
        %v451 = vand.u32 %v449, 15
        %v452 = vsub.s32 0, %v451
        %v453 = vsel %vm447, %v452, %v451
        %vm454 = vcmp.lt.s32.totalorder %v338, 0
        %v455 = vsub.s32 0, %v338
        %v456 = vsel %vm454, %v455, %v338
        %v457 = vshrl.u32 %v456, 4
        %v458 = vand.u32 %v456, 15
        %v459 = vsub.s32 0, %v458
        %v460 = vsel %vm454, %v459, %v458
        %vm461 = vcmp.lt.s32.totalorder %v339, 0
        %v462 = vsub.s32 0, %v339
        %v463 = vsel %vm461, %v462, %v339
        %v464 = vshrl.u32 %v463, 4
        %v465 = vand.u32 %v463, 15
        %v466 = vsub.s32 0, %v465
        %v467 = vsel %vm461, %v466, %v465
        %vm468 = vcmp.lt.s32.totalorder %v340, 0
        %v469 = vsub.s32 0, %v340
        %v470 = vsel %vm468, %v469, %v340
        %v471 = vshrl.u32 %v470, 4
        %v472 = vand.u32 %v470, 15
        %v473 = vsub.s32 0, %v472
        %v474 = vsel %vm468, %v473, %v472
        %vm475 = vcmp.lt.s32.totalorder %v341, 0
        %v476 = vsub.s32 0, %v341
        %v477 = vsel %vm475, %v476, %v341
        %v478 = vshrl.u32 %v477, 4
        %v479 = vand.u32 %v477, 15
        %v480 = vsub.s32 0, %v479
        %v481 = vsel %vm475, %v480, %v479
        %vm482 = vcmp.lt.s32.totalorder %v342, 0
        %v483 = vsub.s32 0, %v342
        %v484 = vsel %vm482, %v483, %v342
        %v485 = vshrl.u32 %v484, 4
        %v486 = vand.u32 %v484, 15
        %v487 = vsub.s32 0, %v486
        %v488 = vsel %vm482, %v487, %v486
        %vm489 = vcmp.lt.s32.totalorder %v343, 0
        %v490 = vsub.s32 0, %v343
        %v491 = vsel %vm489, %v490, %v343
        %v492 = vshrl.u32 %v491, 4
        %v493 = vand.u32 %v491, 15
        %v494 = vsub.s32 0, %v493
        %v495 = vsel %vm489, %v494, %v493
        %vm496 = vcmp.lt.s32.totalorder %v344, 0
        %v497 = vsub.s32 0, %v344
        %v498 = vsel %vm496, %v497, %v344
        %v499 = vshrl.u32 %v498, 4
        %v500 = vand.u32 %v498, 15
        %v501 = vsub.s32 0, %v500
        %v502 = vsel %vm496, %v501, %v500
        %vm503 = vcmp.lt.s32.totalorder %v345, 0
        %v504 = vsub.s32 0, %v345
        %v505 = vsel %vm503, %v504, %v345
        %v506 = vshrl.u32 %v505, 4
        %v507 = vand.u32 %v505, 15
        %v508 = vsub.s32 0, %v507
        %v509 = vsel %vm503, %v508, %v507
        %vm510 = vcmp.lt.s32.totalorder %v346, 0
        %v511 = vsub.s32 0, %v346
        %v512 = vsel %vm510, %v511, %v346
        %v513 = vshrl.u32 %v512, 4
        %v514 = vand.u32 %v512, 15
        %v515 = vsub.s32 0, %v514
        %v516 = vsel %vm510, %v515, %v514
        %vm517 = vcmp.lt.s32.totalorder %v347, 0
        %v518 = vsub.s32 0, %v347
        %v519 = vsel %vm517, %v518, %v347
        %v520 = vshrl.u32 %v519, 4
        %v521 = vand.u32 %v519, 15
        %v522 = vsub.s32 0, %v521
        %v523 = vsel %vm517, %v522, %v521
        %vm524 = vcmp.lt.s32.totalorder %v348, 0
        %v525 = vsub.s32 0, %v348
        %v526 = vsel %vm524, %v525, %v348
        %v527 = vshrl.u32 %v526, 4
        %v528 = vand.u32 %v526, 15
        %v529 = vsub.s32 0, %v528
        %v530 = vsel %vm524, %v529, %v528
        %vm531 = vcmp.lt.s32.totalorder %v349, 0
        %v532 = vsub.s32 0, %v349
        %v533 = vsel %vm531, %v532, %v349
        %v534 = vshrl.u32 %v533, 4
        %v535 = vand.u32 %v533, 15
        %v536 = vsub.s32 0, %v535
        %v537 = vsel %vm531, %v536, %v535
        %vm538 = vcmp.lt.s32.totalorder %v350, 0
        %v539 = vsub.s32 0, %v350
        %v540 = vsel %vm538, %v539, %v350
        %v541 = vshrl.u32 %v540, 4
        %v542 = vand.u32 %v540, 15
        %v543 = vsub.s32 0, %v542
        %v544 = vsel %vm538, %v543, %v542
        %vm545 = vcmp.lt.s32.totalorder %v351, 0
        %v546 = vsub.s32 0, %v351
        %v547 = vsel %vm545, %v546, %v351
        %v548 = vshrl.u32 %v547, 4
        %v549 = vand.u32 %v547, 15
        %v550 = vsub.s32 0, %v549
        %v551 = vsel %vm545, %v550, %v549
        %vm552 = vcmp.lt.s32.totalorder %v352, 0
        %v553 = vsub.s32 0, %v352
        %v554 = vsel %vm552, %v553, %v352
        %v555 = vshrl.u32 %v554, 4
        %v556 = vand.u32 %v554, 15
        %v557 = vsub.s32 0, %v556
        %v558 = vsel %vm552, %v557, %v556
        %vm559 = vcmp.lt.s32.totalorder %v353, 0
        %v560 = vsub.s32 0, %v353
        %v561 = vsel %vm559, %v560, %v353
        %v562 = vshrl.u32 %v561, 4
        %v563 = vand.u32 %v561, 15
        %v564 = vsub.s32 0, %v563
        %v565 = vsel %vm559, %v564, %v563
        %vm566 = vcmp.lt.s32.totalorder %v354, 0
        %v567 = vsub.s32 0, %v354
        %v568 = vsel %vm566, %v567, %v354
        %v569 = vshrl.u32 %v568, 4
        %v570 = vand.u32 %v568, 15
        %v571 = vsub.s32 0, %v570
        %v572 = vsel %vm566, %v571, %v570
        %vm573 = vcmp.lt.s32.totalorder %v355, 0
        %v574 = vsub.s32 0, %v355
        %v575 = vsel %vm573, %v574, %v355
        %v576 = vshrl.u32 %v575, 4
        %v577 = vand.u32 %v575, 15
        %v578 = vsub.s32 0, %v577
        %v579 = vsel %vm573, %v578, %v577
        %vm580 = vcmp.ne.s32.totalorder %v362, 0
        %vm581 = vcmp.ne.s32.totalorder %v369, 0
        %vm582 = vcmp.ne.s32.totalorder %v376, 0
        %vm583 = vcmp.ne.s32.totalorder %v383, 0
        %vm584 = vcmp.ne.s32.totalorder %v390, 0
        %vm585 = vcmp.ne.s32.totalorder %v397, 0
        %vm586 = vcmp.ne.s32.totalorder %v404, 0
        %vm587 = vcmp.ne.s32.totalorder %v411, 0
        %vm588 = vcmp.ne.s32.totalorder %v418, 0
        %vm589 = vcmp.ne.s32.totalorder %v425, 0
        %vm590 = vcmp.ne.s32.totalorder %v432, 0
        %vm591 = vcmp.ne.s32.totalorder %v439, 0
        %vm592 = vcmp.ne.s32.totalorder %v446, 0
        %vm593 = vcmp.ne.s32.totalorder %v453, 0
        %vm594 = vcmp.ne.s32.totalorder %v460, 0
        %vm595 = vcmp.ne.s32.totalorder %v467, 0
        %vm596 = vcmp.ne.s32.totalorder %v474, 0
        %vm597 = vcmp.ne.s32.totalorder %v481, 0
        %vm598 = vcmp.ne.s32.totalorder %v488, 0
        %vm599 = vcmp.ne.s32.totalorder %v495, 0
        %vm600 = vcmp.ne.s32.totalorder %v502, 0
        %vm601 = vcmp.ne.s32.totalorder %v509, 0
        %vm602 = vcmp.ne.s32.totalorder %v516, 0
        %vm603 = vcmp.ne.s32.totalorder %v523, 0
        %vm604 = vcmp.ne.s32.totalorder %v530, 0
        %vm605 = vcmp.ne.s32.totalorder %v537, 0
        %vm606 = vcmp.ne.s32.totalorder %v544, 0
        %vm607 = vcmp.ne.s32.totalorder %v551, 0
        %vm608 = vcmp.ne.s32.totalorder %v558, 0
        %vm609 = vcmp.ne.s32.totalorder %v565, 0
        %vm610 = vcmp.ne.s32.totalorder %v572, 0
        %vm611 = vcmp.ne.s32.totalorder %v579, 0
        %vm612 = vcmp.lt.s32.totalorder %v362, 0
        %vm613 = vcmp.lt.s32.totalorder %v369, 0
        %vm614 = vcmp.lt.s32.totalorder %v376, 0
        %vm615 = vcmp.lt.s32.totalorder %v383, 0
        %vm616 = vcmp.lt.s32.totalorder %v390, 0
        %vm617 = vcmp.lt.s32.totalorder %v397, 0
        %vm618 = vcmp.lt.s32.totalorder %v404, 0
        %vm619 = vcmp.lt.s32.totalorder %v411, 0
        %vm620 = vcmp.lt.s32.totalorder %v418, 0
        %vm621 = vcmp.lt.s32.totalorder %v425, 0
        %vm622 = vcmp.lt.s32.totalorder %v432, 0
        %vm623 = vcmp.lt.s32.totalorder %v439, 0
        %vm624 = vcmp.lt.s32.totalorder %v446, 0
        %vm625 = vcmp.lt.s32.totalorder %v453, 0
        %vm626 = vcmp.lt.s32.totalorder %v460, 0
        %vm627 = vcmp.lt.s32.totalorder %v467, 0
        %vm628 = vcmp.lt.s32.totalorder %v474, 0
        %vm629 = vcmp.lt.s32.totalorder %v481, 0
        %vm630 = vcmp.lt.s32.totalorder %v488, 0
        %vm631 = vcmp.lt.s32.totalorder %v495, 0
        %vm632 = vcmp.lt.s32.totalorder %v502, 0
        %vm633 = vcmp.lt.s32.totalorder %v509, 0
        %vm634 = vcmp.lt.s32.totalorder %v516, 0
        %vm635 = vcmp.lt.s32.totalorder %v523, 0
        %vm636 = vcmp.lt.s32.totalorder %v530, 0
        %vm637 = vcmp.lt.s32.totalorder %v537, 0
        %vm638 = vcmp.lt.s32.totalorder %v544, 0
        %vm639 = vcmp.lt.s32.totalorder %v551, 0
        %vm640 = vcmp.lt.s32.totalorder %v558, 0
        %vm641 = vcmp.lt.s32.totalorder %v565, 0
        %vm642 = vcmp.lt.s32.totalorder %v572, 0
        %vm643 = vcmp.lt.s32.totalorder %v579, 0
        %vm644 = vmand %vm612, %vm580
        %vm645 = vmand %vm613, %vm581
        %vm646 = vmand %vm614, %vm582
        %vm647 = vmand %vm615, %vm583
        %vm648 = vmand %vm616, %vm584
        %vm649 = vmand %vm617, %vm585
        %vm650 = vmand %vm618, %vm586
        %vm651 = vmand %vm619, %vm587
        %vm652 = vmand %vm620, %vm588
        %vm653 = vmand %vm621, %vm589
        %vm654 = vmand %vm622, %vm590
        %vm655 = vmand %vm623, %vm591
        %vm656 = vmand %vm624, %vm592
        %vm657 = vmand %vm625, %vm593
        %vm658 = vmand %vm626, %vm594
        %vm659 = vmand %vm627, %vm595
        %vm660 = vmand %vm628, %vm596
        %vm661 = vmand %vm629, %vm597
        %vm662 = vmand %vm630, %vm598
        %vm663 = vmand %vm631, %vm599
        %vm664 = vmand %vm632, %vm600
        %vm665 = vmand %vm633, %vm601
        %vm666 = vmand %vm634, %vm602
        %vm667 = vmand %vm635, %vm603
        %vm668 = vmand %vm636, %vm604
        %vm669 = vmand %vm637, %vm605
        %vm670 = vmand %vm638, %vm606
        %vm671 = vmand %vm639, %vm607
        %vm672 = vmand %vm640, %vm608
        %vm673 = vmand %vm641, %vm609
        %vm674 = vmand %vm642, %vm610
        %vm675 = vmand %vm643, %vm611
        %v676 = vadd.s32 %v362, 16
        %v677 = vadd.s32 %v369, 16
        %v678 = vadd.s32 %v376, 16
        %v679 = vadd.s32 %v383, 16
        %v680 = vadd.s32 %v390, 16
        %v681 = vadd.s32 %v397, 16
        %v682 = vadd.s32 %v404, 16
        %v683 = vadd.s32 %v411, 16
        %v684 = vadd.s32 %v418, 16
        %v685 = vadd.s32 %v425, 16
        %v686 = vadd.s32 %v432, 16
        %v687 = vadd.s32 %v439, 16
        %v688 = vadd.s32 %v446, 16
        %v689 = vadd.s32 %v453, 16
        %v690 = vadd.s32 %v460, 16
        %v691 = vadd.s32 %v467, 16
        %v692 = vadd.s32 %v474, 16
        %v693 = vadd.s32 %v481, 16
        %v694 = vadd.s32 %v488, 16
        %v695 = vadd.s32 %v495, 16
        %v696 = vadd.s32 %v502, 16
        %v697 = vadd.s32 %v509, 16
        %v698 = vadd.s32 %v516, 16
        %v699 = vadd.s32 %v523, 16
        %v700 = vadd.s32 %v530, 16
        %v701 = vadd.s32 %v537, 16
        %v702 = vadd.s32 %v544, 16
        %v703 = vadd.s32 %v551, 16
        %v704 = vadd.s32 %v558, 16
        %v705 = vadd.s32 %v565, 16
        %v706 = vadd.s32 %v572, 16
        %v707 = vadd.s32 %v579, 16
        %v708 = vsel %vm644, %v676, %v362
        %v709 = vsel %vm645, %v677, %v369
        %v710 = vsel %vm646, %v678, %v376
        %v711 = vsel %vm647, %v679, %v383
        %v712 = vsel %vm648, %v680, %v390
        %v713 = vsel %vm649, %v681, %v397
        %v714 = vsel %vm650, %v682, %v404
        %v715 = vsel %vm651, %v683, %v411
        %v716 = vsel %vm652, %v684, %v418
        %v717 = vsel %vm653, %v685, %v425
        %v718 = vsel %vm654, %v686, %v432
        %v719 = vsel %vm655, %v687, %v439
        %v720 = vsel %vm656, %v688, %v446
        %v721 = vsel %vm657, %v689, %v453
        %v722 = vsel %vm658, %v690, %v460
        %v723 = vsel %vm659, %v691, %v467
        %v724 = vsel %vm660, %v692, %v474
        %v725 = vsel %vm661, %v693, %v481
        %v726 = vsel %vm662, %v694, %v488
        %v727 = vsel %vm663, %v695, %v495
        %v728 = vsel %vm664, %v696, %v502
        %v729 = vsel %vm665, %v697, %v509
        %v730 = vsel %vm666, %v698, %v516
        %v731 = vsel %vm667, %v699, %v523
        %v732 = vsel %vm668, %v700, %v530
        %v733 = vsel %vm669, %v701, %v537
        %v734 = vsel %vm670, %v702, %v544
        %v735 = vsel %vm671, %v703, %v551
        %v736 = vsel %vm672, %v704, %v558
        %v737 = vsel %vm673, %v705, %v565
        %v738 = vsel %vm674, %v706, %v572
        %v739 = vsel %vm675, %v707, %v579
        %v740 = vld [vmem:[%s290 + $0x4] sm:$0x8]
        %v741 = vld [vmem:[%s290 + $0x8] sm:$0xf]
        %v742 = vld [vmem:[%s290 + $0xc] sm:$0xf]
        %v743 = vld [vmem:[%s290 + $0x10] sm:$0xf]
        %v744 = vld [vmem:[%s290 + $0x14] sm:$0xf]
        %v745 = vld [vmem:[%s290 + $0x18] sm:$0xf]
        %v746 = vld [vmem:[%s290 + $0x1c] sm:$0xf]
        %v747 = vld [vmem:[%s290 + $0x20] sm:$0xf]
        %v748 = vld [vmem:[%s290 + $0x24] sm:$0xf]
        %v749 = vld [vmem:[%s290 + $0x28] sm:$0xf]
        %v750 = vld [vmem:[%s290 + $0x2c] sm:$0xf]
        %v751 = vld [vmem:[%s290 + $0x30] sm:$0xf]
        %v752 = vld [vmem:[%s290 + $0x34] sm:$0xf]
        %v753 = vld [vmem:[%s290 + $0x38] sm:$0xf]
        %v754 = vld [vmem:[%s290 + $0x3c] sm:$0xf]
        %v755 = vld [vmem:[%s290 + $0x40] sm:$0xf]
        %v756 = vld [vmem:[%s290 + $0x44] sm:$0xf]
        %v757 = vld [vmem:[%s290 + $0x48] sm:$0xf]
        %v758 = vld [vmem:[%s290 + $0x4c] sm:$0xf]
        %v759 = vld [vmem:[%s290 + $0x50] sm:$0xf]
        %v760 = vld [vmem:[%s290 + $0x54] sm:$0xf]
        %v761 = vld [vmem:[%s290 + $0x58] sm:$0xf]
        %v762 = vld [vmem:[%s290 + $0x5c] sm:$0xf]
        %v763 = vld [vmem:[%s290 + $0x60] sm:$0xf]
        %v764 = vld [vmem:[%s290 + $0x64] sm:$0xf]
        %v765 = vld [vmem:[%s290 + $0x68] sm:$0xf]
        %v766 = vld [vmem:[%s290 + $0x6c] sm:$0xf]
        %v767 = vld [vmem:[%s290 + $0x70] sm:$0xf]
        %v768 = vld [vmem:[%s290 + $0x74] sm:$0xf]
        %v769 = vld [vmem:[%s290 + $0x78] sm:$0xf]
        %v770 = vld [vmem:[%s290 + $0x7c] sm:$0xf]
        %v771 = vld [vmem:[%s290 + $0x80] sm:$0xf]
        %v772 = vld [vmem:[%s290 + $0x84] sm:$0xf]
        %vm773 = vcmp.eq.s32.totalorder %v708, 0
        %vm774 = vcmp.eq.s32.totalorder %v709, 0
        %vm775 = vcmp.eq.s32.totalorder %v710, 0
        %vm776 = vcmp.eq.s32.totalorder %v711, 0
        %vm777 = vcmp.eq.s32.totalorder %v712, 0
        %vm778 = vcmp.eq.s32.totalorder %v713, 0
        %vm779 = vcmp.eq.s32.totalorder %v714, 0
        %vm780 = vcmp.eq.s32.totalorder %v715, 0
        %vm781 = vcmp.eq.s32.totalorder %v716, 0
        %vm782 = vcmp.eq.s32.totalorder %v717, 0
        %vm783 = vcmp.eq.s32.totalorder %v718, 0
        %vm784 = vcmp.eq.s32.totalorder %v719, 0
        %vm785 = vcmp.eq.s32.totalorder %v720, 0
        %vm786 = vcmp.eq.s32.totalorder %v721, 0
        %vm787 = vcmp.eq.s32.totalorder %v722, 0
        %vm788 = vcmp.eq.s32.totalorder %v723, 0
        %vm789 = vcmp.eq.s32.totalorder %v724, 0
        %vm790 = vcmp.eq.s32.totalorder %v725, 0
        %vm791 = vcmp.eq.s32.totalorder %v726, 0
        %vm792 = vcmp.eq.s32.totalorder %v727, 0
        %vm793 = vcmp.eq.s32.totalorder %v728, 0
        %vm794 = vcmp.eq.s32.totalorder %v729, 0
        %vm795 = vcmp.eq.s32.totalorder %v730, 0
        %vm796 = vcmp.eq.s32.totalorder %v731, 0
        %vm797 = vcmp.eq.s32.totalorder %v732, 0
        %vm798 = vcmp.eq.s32.totalorder %v733, 0
        %vm799 = vcmp.eq.s32.totalorder %v734, 0
        %vm800 = vcmp.eq.s32.totalorder %v735, 0
        %vm801 = vcmp.eq.s32.totalorder %v736, 0
        %vm802 = vcmp.eq.s32.totalorder %v737, 0
        %vm803 = vcmp.eq.s32.totalorder %v738, 0
        %vm804 = vcmp.eq.s32.totalorder %v739, 0
        %vm805 = vmpackc.low %vm773, %vm773
        %vm806 = vmpackc.low %vm774, %vm774
        %vm807 = vmpackc.low %vm775, %vm775
        %vm808 = vmpackc.low %vm776, %vm776
        %vm809 = vmpackc.low %vm777, %vm777
        %vm810 = vmpackc.low %vm778, %vm778
        %vm811 = vmpackc.low %vm779, %vm779
        %vm812 = vmpackc.low %vm780, %vm780
        %vm813 = vmpackc.low %vm781, %vm781
        %vm814 = vmpackc.low %vm782, %vm782
        %vm815 = vmpackc.low %vm783, %vm783
        %vm816 = vmpackc.low %vm784, %vm784
        %vm817 = vmpackc.low %vm785, %vm785
        %vm818 = vmpackc.low %vm786, %vm786
        %vm819 = vmpackc.low %vm787, %vm787
        %vm820 = vmpackc.low %vm788, %vm788
        %vm821 = vmpackc.low %vm789, %vm789
        %vm822 = vmpackc.low %vm790, %vm790
        %vm823 = vmpackc.low %vm791, %vm791
        %vm824 = vmpackc.low %vm792, %vm792
        %vm825 = vmpackc.low %vm793, %vm793
        %vm826 = vmpackc.low %vm794, %vm794
        %vm827 = vmpackc.low %vm795, %vm795
        %vm828 = vmpackc.low %vm796, %vm796
        %vm829 = vmpackc.low %vm797, %vm797
        %vm830 = vmpackc.low %vm798, %vm798
        %vm831 = vmpackc.low %vm799, %vm799
        %vm832 = vmpackc.low %vm800, %vm800
        %vm833 = vmpackc.low %vm801, %vm801
        %vm834 = vmpackc.low %vm802, %vm802
        %vm835 = vmpackc.low %vm803, %vm803
        %vm836 = vmpackc.low %vm804, %vm804
        %v837 = vsel %vm805, 65537, 0
        %v838 = vsel %vm806, 65537, 0
        %v839 = vsel %vm807, 65537, 0
        %v840 = vsel %vm808, 65537, 0
        %v841 = vsel %vm809, 65537, 0
        %v842 = vsel %vm810, 65537, 0
        %v843 = vsel %vm811, 65537, 0
        %v844 = vsel %vm812, 65537, 0
        %v845 = vsel %vm813, 65537, 0
        %v846 = vsel %vm814, 65537, 0
        %v847 = vsel %vm815, 65537, 0
        %v848 = vsel %vm816, 65537, 0
        %v849 = vsel %vm817, 65537, 0
        %v850 = vsel %vm818, 65537, 0
        %v851 = vsel %vm819, 65537, 0
        %v852 = vsel %vm820, 65537, 0
        %v853 = vsel %vm821, 65537, 0
        %v854 = vsel %vm822, 65537, 0
        %v855 = vsel %vm823, 65537, 0
        %v856 = vsel %vm824, 65537, 0
        %v857 = vsel %vm825, 65537, 0
        %v858 = vsel %vm826, 65537, 0
        %v859 = vsel %vm827, 65537, 0
        %v860 = vsel %vm828, 65537, 0
        %v861 = vsel %vm829, 65537, 0
        %v862 = vsel %vm830, 65537, 0
        %v863 = vsel %vm831, 65537, 0
        %v864 = vsel %vm832, 65537, 0
        %v865 = vsel %vm833, 65537, 0
        %v866 = vsel %vm834, 65537, 0
        %v867 = vsel %vm835, 65537, 0
        %v868 = vsel %vm836, 65537, 0
        %vm869 = vsmask.f32 3328
        %vm870 = vsmask.f32 7440
        %vm871 = vmor %vm869, %vm870
        %v873 = vshll.u32 %v837, 16
        %v875 = vrot.slane %v873, 5
        %v876 = vshrl.u32 %v837, 16
        %v878 = vrot.slane %v876, 4
        %v879 = vor.u32 %v878, %v875
        %v880 = vrot.slane %v879, 4
        %v882 = vshll.u32 %v838, 16
        %v884 = vrot.slane %v882, 5
        %v885 = vsel %vm871, %v880, %v884
        %v886 = vshrl.u32 %v838, 16
        %v888 = vrot.slane %v886, 4
        %v889 = vor.u32 %v888, %v884
        %v890 = vrot.slane %v889, 4
        %v892 = vshll.u32 %v839, 16
        %v894 = vrot.slane %v892, 5
        %v895 = vsel %vm871, %v890, %v894
        %v896 = vshrl.u32 %v839, 16
        %v898 = vrot.slane %v896, 4
        %v899 = vor.u32 %v898, %v894
        %v900 = vrot.slane %v899, 4
        %v902 = vshll.u32 %v840, 16
        %v904 = vrot.slane %v902, 5
        %v905 = vsel %vm871, %v900, %v904
        %v906 = vshrl.u32 %v840, 16
        %v908 = vrot.slane %v906, 4
        %v909 = vor.u32 %v908, %v904
        %v910 = vrot.slane %v909, 4
        %v912 = vshll.u32 %v841, 16
        %v914 = vrot.slane %v912, 5
        %v915 = vsel %vm871, %v910, %v914
        %v916 = vshrl.u32 %v841, 16
        %v918 = vrot.slane %v916, 4
        %v919 = vor.u32 %v918, %v914
        %v920 = vrot.slane %v919, 4
        %v922 = vshll.u32 %v842, 16
        %v924 = vrot.slane %v922, 5
        %v925 = vsel %vm871, %v920, %v924
        %v926 = vshrl.u32 %v842, 16
        %v928 = vrot.slane %v926, 4
        %v929 = vor.u32 %v928, %v924
        %v930 = vrot.slane %v929, 4
        %v932 = vshll.u32 %v843, 16
        %v934 = vrot.slane %v932, 5
        %v935 = vsel %vm871, %v930, %v934
        %v936 = vshrl.u32 %v843, 16
        %v938 = vrot.slane %v936, 4
        %v939 = vor.u32 %v938, %v934
        %v940 = vrot.slane %v939, 4
        %v942 = vshll.u32 %v844, 16
        %v944 = vrot.slane %v942, 5
        %v945 = vsel %vm871, %v940, %v944
        %v946 = vshrl.u32 %v844, 16
        %v948 = vrot.slane %v946, 4
        %v949 = vor.u32 %v948, %v944
        %v950 = vrot.slane %v949, 4
        %v952 = vshll.u32 %v845, 16
        %v954 = vrot.slane %v952, 5
        %v955 = vsel %vm871, %v950, %v954
        %v956 = vshrl.u32 %v845, 16
        %v958 = vrot.slane %v956, 4
        %v959 = vor.u32 %v958, %v954
        %v960 = vrot.slane %v959, 4
        %v962 = vshll.u32 %v846, 16
        %v964 = vrot.slane %v962, 5
        %v965 = vsel %vm871, %v960, %v964
        %v966 = vshrl.u32 %v846, 16
        %v968 = vrot.slane %v966, 4
        %v969 = vor.u32 %v968, %v964
        %v970 = vrot.slane %v969, 4
        %v972 = vshll.u32 %v847, 16
        %v974 = vrot.slane %v972, 5
        %v975 = vsel %vm871, %v970, %v974
        %v976 = vshrl.u32 %v847, 16
        %v978 = vrot.slane %v976, 4
        %v979 = vor.u32 %v978, %v974
        %v980 = vrot.slane %v979, 4
        %v982 = vshll.u32 %v848, 16
        %v984 = vrot.slane %v982, 5
        %v985 = vsel %vm871, %v980, %v984
        %v986 = vshrl.u32 %v848, 16
        %v988 = vrot.slane %v986, 4
        %v989 = vor.u32 %v988, %v984
        %v990 = vrot.slane %v989, 4
        %v992 = vshll.u32 %v849, 16
        %v994 = vrot.slane %v992, 5
        %v995 = vsel %vm871, %v990, %v994
        %v996 = vshrl.u32 %v849, 16
        %v998 = vrot.slane %v996, 4
        %v999 = vor.u32 %v998, %v994
        %v1000 = vrot.slane %v999, 4
        %v1002 = vshll.u32 %v850, 16
        %v1004 = vrot.slane %v1002, 5
        %v1005 = vsel %vm871, %v1000, %v1004
        %v1006 = vshrl.u32 %v850, 16
        %v1008 = vrot.slane %v1006, 4
        %v1009 = vor.u32 %v1008, %v1004
        %v1010 = vrot.slane %v1009, 4
        %v1012 = vshll.u32 %v851, 16
        %v1014 = vrot.slane %v1012, 5
        %v1015 = vsel %vm871, %v1010, %v1014
        %v1016 = vshrl.u32 %v851, 16
        %v1018 = vrot.slane %v1016, 4
        %v1019 = vor.u32 %v1018, %v1014
        %v1020 = vrot.slane %v1019, 4
        %v1022 = vshll.u32 %v852, 16
        %v1024 = vrot.slane %v1022, 5
        %v1025 = vsel %vm871, %v1020, %v1024
        %v1026 = vshrl.u32 %v852, 16
        %v1028 = vrot.slane %v1026, 4
        %v1029 = vor.u32 %v1028, %v1024
        %v1030 = vrot.slane %v1029, 4
        %v1032 = vshll.u32 %v853, 16
        %v1034 = vrot.slane %v1032, 5
        %v1035 = vsel %vm871, %v1030, %v1034
        %v1036 = vshrl.u32 %v853, 16
        %v1038 = vrot.slane %v1036, 4
        %v1039 = vor.u32 %v1038, %v1034
        %v1040 = vrot.slane %v1039, 4
        %v1042 = vshll.u32 %v854, 16
        %v1044 = vrot.slane %v1042, 5
        %v1045 = vsel %vm871, %v1040, %v1044
        %v1046 = vshrl.u32 %v854, 16
        %v1048 = vrot.slane %v1046, 4
        %v1049 = vor.u32 %v1048, %v1044
        %v1050 = vrot.slane %v1049, 4
        %v1052 = vshll.u32 %v855, 16
        %v1054 = vrot.slane %v1052, 5
        %v1055 = vsel %vm871, %v1050, %v1054
        %v1056 = vshrl.u32 %v855, 16
        %v1058 = vrot.slane %v1056, 4
        %v1059 = vor.u32 %v1058, %v1054
        %v1060 = vrot.slane %v1059, 4
        %v1062 = vshll.u32 %v856, 16
        %v1064 = vrot.slane %v1062, 5
        %v1065 = vsel %vm871, %v1060, %v1064
        %v1066 = vshrl.u32 %v856, 16
        %v1068 = vrot.slane %v1066, 4
        %v1069 = vor.u32 %v1068, %v1064
        %v1070 = vrot.slane %v1069, 4
        %v1072 = vshll.u32 %v857, 16
        %v1074 = vrot.slane %v1072, 5
        %v1075 = vsel %vm871, %v1070, %v1074
        %v1076 = vshrl.u32 %v857, 16
        %v1078 = vrot.slane %v1076, 4
        %v1079 = vor.u32 %v1078, %v1074
        %v1080 = vrot.slane %v1079, 4
        %v1082 = vshll.u32 %v858, 16
        %v1084 = vrot.slane %v1082, 5
        %v1085 = vsel %vm871, %v1080, %v1084
        %v1086 = vshrl.u32 %v858, 16
        %v1088 = vrot.slane %v1086, 4
        %v1089 = vor.u32 %v1088, %v1084
        %v1090 = vrot.slane %v1089, 4
        %v1092 = vshll.u32 %v859, 16
        %v1094 = vrot.slane %v1092, 5
        %v1095 = vsel %vm871, %v1090, %v1094
        %v1096 = vshrl.u32 %v859, 16
        %v1098 = vrot.slane %v1096, 4
        %v1099 = vor.u32 %v1098, %v1094
        %v1100 = vrot.slane %v1099, 4
        %v1102 = vshll.u32 %v860, 16
        %v1104 = vrot.slane %v1102, 5
        %v1105 = vsel %vm871, %v1100, %v1104
        %v1106 = vshrl.u32 %v860, 16
        %v1108 = vrot.slane %v1106, 4
        %v1109 = vor.u32 %v1108, %v1104
        %v1110 = vrot.slane %v1109, 4
        %v1112 = vshll.u32 %v861, 16
        %v1114 = vrot.slane %v1112, 5
        %v1115 = vsel %vm871, %v1110, %v1114
        %v1116 = vshrl.u32 %v861, 16
        %v1118 = vrot.slane %v1116, 4
        %v1119 = vor.u32 %v1118, %v1114
        %v1120 = vrot.slane %v1119, 4
        %v1122 = vshll.u32 %v862, 16
        %v1124 = vrot.slane %v1122, 5
        %v1125 = vsel %vm871, %v1120, %v1124
        %v1126 = vshrl.u32 %v862, 16
        %v1128 = vrot.slane %v1126, 4
        %v1129 = vor.u32 %v1128, %v1124
        %v1130 = vrot.slane %v1129, 4
        %v1132 = vshll.u32 %v863, 16
        %v1134 = vrot.slane %v1132, 5
        %v1135 = vsel %vm871, %v1130, %v1134
        %v1136 = vshrl.u32 %v863, 16
        %v1138 = vrot.slane %v1136, 4
        %v1139 = vor.u32 %v1138, %v1134
        %v1140 = vrot.slane %v1139, 4
        %v1142 = vshll.u32 %v864, 16
        %v1144 = vrot.slane %v1142, 5
        %v1145 = vsel %vm871, %v1140, %v1144
        %v1146 = vshrl.u32 %v864, 16
        %v1148 = vrot.slane %v1146, 4
        %v1149 = vor.u32 %v1148, %v1144
        %v1150 = vrot.slane %v1149, 4
        %v1152 = vshll.u32 %v865, 16
        %v1154 = vrot.slane %v1152, 5
        %v1155 = vsel %vm871, %v1150, %v1154
        %v1156 = vshrl.u32 %v865, 16
        %v1158 = vrot.slane %v1156, 4
        %v1159 = vor.u32 %v1158, %v1154
        %v1160 = vrot.slane %v1159, 4
        %v1162 = vshll.u32 %v866, 16
        %v1164 = vrot.slane %v1162, 5
        %v1165 = vsel %vm871, %v1160, %v1164
        %v1166 = vshrl.u32 %v866, 16
        %v1168 = vrot.slane %v1166, 4
        %v1169 = vor.u32 %v1168, %v1164
        %v1170 = vrot.slane %v1169, 4
        %v1172 = vshll.u32 %v867, 16
        %v1174 = vrot.slane %v1172, 5
        %v1175 = vsel %vm871, %v1170, %v1174
        %v1176 = vshrl.u32 %v867, 16
        %v1178 = vrot.slane %v1176, 4
        %v1179 = vor.u32 %v1178, %v1174
        %v1180 = vrot.slane %v1179, 4
        %v1182 = vshll.u32 %v868, 16
        %v1184 = vrot.slane %v1182, 5
        %v1185 = vsel %vm871, %v1180, %v1184
        %v1186 = vshrl.u32 %v868, 16
        %v1188 = vrot.slane %v1186, 4
        %v1189 = vor.u32 %v1188, %v1184
        %v1190 = vrot.slane %v1189, 4
        %v1191 = vunpack.c.l.b16 %v875
        %v1192 = vunpack.c.h.b16 %v875
        %v1193 = vunpack.c.l.b16 0
        %v1194 = vunpack.c.h.b16 0
        %vm1195 = vcmp.ne.s32.totalorder %v1191, %v1193
        %vm1196 = vcmp.ne.s32.totalorder %v1192, %v1194
        %vm1197 = vmpackc.low %vm1196, %vm1195
        %v1198 = vunpack.c.l.b16 %v885
        %v1199 = vunpack.c.h.b16 %v885
        %v1200 = vunpack.c.l.b16 0
        %v1201 = vunpack.c.h.b16 0
        %vm1202 = vcmp.ne.s32.totalorder %v1198, %v1200
        %vm1203 = vcmp.ne.s32.totalorder %v1199, %v1201
        %vm1204 = vmpackc.low %vm1203, %vm1202
        %v1205 = vunpack.c.l.b16 %v895
        %v1206 = vunpack.c.h.b16 %v895
        %v1207 = vunpack.c.l.b16 0
        %v1208 = vunpack.c.h.b16 0
        %vm1209 = vcmp.ne.s32.totalorder %v1205, %v1207
        %vm1210 = vcmp.ne.s32.totalorder %v1206, %v1208
        %vm1211 = vmpackc.low %vm1210, %vm1209
        %v1212 = vunpack.c.l.b16 %v905
        %v1213 = vunpack.c.h.b16 %v905
        %v1214 = vunpack.c.l.b16 0
        %v1215 = vunpack.c.h.b16 0
        %vm1216 = vcmp.ne.s32.totalorder %v1212, %v1214
        %vm1217 = vcmp.ne.s32.totalorder %v1213, %v1215
        %vm1218 = vmpackc.low %vm1217, %vm1216
        %v1219 = vunpack.c.l.b16 %v915
        %v1220 = vunpack.c.h.b16 %v915
        %v1221 = vunpack.c.l.b16 0
        %v1222 = vunpack.c.h.b16 0
        %vm1223 = vcmp.ne.s32.totalorder %v1219, %v1221
        %vm1224 = vcmp.ne.s32.totalorder %v1220, %v1222
        %vm1225 = vmpackc.low %vm1224, %vm1223
        %v1226 = vunpack.c.l.b16 %v925
        %v1227 = vunpack.c.h.b16 %v925
        %v1228 = vunpack.c.l.b16 0
        %v1229 = vunpack.c.h.b16 0
        %vm1230 = vcmp.ne.s32.totalorder %v1226, %v1228
        %vm1231 = vcmp.ne.s32.totalorder %v1227, %v1229
        %vm1232 = vmpackc.low %vm1231, %vm1230
        %v1233 = vunpack.c.l.b16 %v935
        %v1234 = vunpack.c.h.b16 %v935
        %v1235 = vunpack.c.l.b16 0
        %v1236 = vunpack.c.h.b16 0
        %vm1237 = vcmp.ne.s32.totalorder %v1233, %v1235
        %vm1238 = vcmp.ne.s32.totalorder %v1234, %v1236
        %vm1239 = vmpackc.low %vm1238, %vm1237
        %v1240 = vunpack.c.l.b16 %v945
        %v1241 = vunpack.c.h.b16 %v945
        %v1242 = vunpack.c.l.b16 0
        %v1243 = vunpack.c.h.b16 0
        %vm1244 = vcmp.ne.s32.totalorder %v1240, %v1242
        %vm1245 = vcmp.ne.s32.totalorder %v1241, %v1243
        %vm1246 = vmpackc.low %vm1245, %vm1244
        %v1247 = vunpack.c.l.b16 %v955
        %v1248 = vunpack.c.h.b16 %v955
        %v1249 = vunpack.c.l.b16 0
        %v1250 = vunpack.c.h.b16 0
        %vm1251 = vcmp.ne.s32.totalorder %v1247, %v1249
        %vm1252 = vcmp.ne.s32.totalorder %v1248, %v1250
        %vm1253 = vmpackc.low %vm1252, %vm1251
        %v1254 = vunpack.c.l.b16 %v965
        %v1255 = vunpack.c.h.b16 %v965
        %v1256 = vunpack.c.l.b16 0
        %v1257 = vunpack.c.h.b16 0
        %vm1258 = vcmp.ne.s32.totalorder %v1254, %v1256
        %vm1259 = vcmp.ne.s32.totalorder %v1255, %v1257
        %vm1260 = vmpackc.low %vm1259, %vm1258
        %v1261 = vunpack.c.l.b16 %v975
        %v1262 = vunpack.c.h.b16 %v975
        %v1263 = vunpack.c.l.b16 0
        %v1264 = vunpack.c.h.b16 0
        %vm1265 = vcmp.ne.s32.totalorder %v1261, %v1263
        %vm1266 = vcmp.ne.s32.totalorder %v1262, %v1264
        %vm1267 = vmpackc.low %vm1266, %vm1265
        %v1268 = vunpack.c.l.b16 %v985
        %v1269 = vunpack.c.h.b16 %v985
        %v1270 = vunpack.c.l.b16 0
        %v1271 = vunpack.c.h.b16 0
        %vm1272 = vcmp.ne.s32.totalorder %v1268, %v1270
        %vm1273 = vcmp.ne.s32.totalorder %v1269, %v1271
        %vm1274 = vmpackc.low %vm1273, %vm1272
        %v1275 = vunpack.c.l.b16 %v995
        %v1276 = vunpack.c.h.b16 %v995
        %v1277 = vunpack.c.l.b16 0
        %v1278 = vunpack.c.h.b16 0
        %vm1279 = vcmp.ne.s32.totalorder %v1275, %v1277
        %vm1280 = vcmp.ne.s32.totalorder %v1276, %v1278
        %vm1281 = vmpackc.low %vm1280, %vm1279
        %v1282 = vunpack.c.l.b16 %v1005
        %v1283 = vunpack.c.h.b16 %v1005
        %v1284 = vunpack.c.l.b16 0
        %v1285 = vunpack.c.h.b16 0
        %vm1286 = vcmp.ne.s32.totalorder %v1282, %v1284
        %vm1287 = vcmp.ne.s32.totalorder %v1283, %v1285
        %vm1288 = vmpackc.low %vm1287, %vm1286
        %v1289 = vunpack.c.l.b16 %v1015
        %v1290 = vunpack.c.h.b16 %v1015
        %v1291 = vunpack.c.l.b16 0
        %v1292 = vunpack.c.h.b16 0
        %vm1293 = vcmp.ne.s32.totalorder %v1289, %v1291
        %vm1294 = vcmp.ne.s32.totalorder %v1290, %v1292
        %vm1295 = vmpackc.low %vm1294, %vm1293
        %v1296 = vunpack.c.l.b16 %v1025
        %v1297 = vunpack.c.h.b16 %v1025
        %v1298 = vunpack.c.l.b16 0
        %v1299 = vunpack.c.h.b16 0
        %vm1300 = vcmp.ne.s32.totalorder %v1296, %v1298
        %vm1301 = vcmp.ne.s32.totalorder %v1297, %v1299
        %vm1302 = vmpackc.low %vm1301, %vm1300
        %v1303 = vunpack.c.l.b16 %v1035
        %v1304 = vunpack.c.h.b16 %v1035
        %v1305 = vunpack.c.l.b16 0
        %v1306 = vunpack.c.h.b16 0
        %vm1307 = vcmp.ne.s32.totalorder %v1303, %v1305
        %vm1308 = vcmp.ne.s32.totalorder %v1304, %v1306
        %vm1309 = vmpackc.low %vm1308, %vm1307
        %v1310 = vunpack.c.l.b16 %v1045
        %v1311 = vunpack.c.h.b16 %v1045
        %v1312 = vunpack.c.l.b16 0
        %v1313 = vunpack.c.h.b16 0
        %vm1314 = vcmp.ne.s32.totalorder %v1310, %v1312
        %vm1315 = vcmp.ne.s32.totalorder %v1311, %v1313
        %vm1316 = vmpackc.low %vm1315, %vm1314
        %v1317 = vunpack.c.l.b16 %v1055
        %v1318 = vunpack.c.h.b16 %v1055
        %v1319 = vunpack.c.l.b16 0
        %v1320 = vunpack.c.h.b16 0
        %vm1321 = vcmp.ne.s32.totalorder %v1317, %v1319
        %vm1322 = vcmp.ne.s32.totalorder %v1318, %v1320
        %vm1323 = vmpackc.low %vm1322, %vm1321
        %v1324 = vunpack.c.l.b16 %v1065
        %v1325 = vunpack.c.h.b16 %v1065
        %v1326 = vunpack.c.l.b16 0
        %v1327 = vunpack.c.h.b16 0
        %vm1328 = vcmp.ne.s32.totalorder %v1324, %v1326
        %vm1329 = vcmp.ne.s32.totalorder %v1325, %v1327
        %vm1330 = vmpackc.low %vm1329, %vm1328
        %v1331 = vunpack.c.l.b16 %v1075
        %v1332 = vunpack.c.h.b16 %v1075
        %v1333 = vunpack.c.l.b16 0
        %v1334 = vunpack.c.h.b16 0
        %vm1335 = vcmp.ne.s32.totalorder %v1331, %v1333
        %vm1336 = vcmp.ne.s32.totalorder %v1332, %v1334
        %vm1337 = vmpackc.low %vm1336, %vm1335
        %v1338 = vunpack.c.l.b16 %v1085
        %v1339 = vunpack.c.h.b16 %v1085
        %v1340 = vunpack.c.l.b16 0
        %v1341 = vunpack.c.h.b16 0
        %vm1342 = vcmp.ne.s32.totalorder %v1338, %v1340
        %vm1343 = vcmp.ne.s32.totalorder %v1339, %v1341
        %vm1344 = vmpackc.low %vm1343, %vm1342
        %v1345 = vunpack.c.l.b16 %v1095
        %v1346 = vunpack.c.h.b16 %v1095
        %v1347 = vunpack.c.l.b16 0
        %v1348 = vunpack.c.h.b16 0
        %vm1349 = vcmp.ne.s32.totalorder %v1345, %v1347
        %vm1350 = vcmp.ne.s32.totalorder %v1346, %v1348
        %vm1351 = vmpackc.low %vm1350, %vm1349
        %v1352 = vunpack.c.l.b16 %v1105
        %v1353 = vunpack.c.h.b16 %v1105
        %v1354 = vunpack.c.l.b16 0
        %v1355 = vunpack.c.h.b16 0
        %vm1356 = vcmp.ne.s32.totalorder %v1352, %v1354
        %vm1357 = vcmp.ne.s32.totalorder %v1353, %v1355
        %vm1358 = vmpackc.low %vm1357, %vm1356
        %v1359 = vunpack.c.l.b16 %v1115
        %v1360 = vunpack.c.h.b16 %v1115
        %v1361 = vunpack.c.l.b16 0
        %v1362 = vunpack.c.h.b16 0
        %vm1363 = vcmp.ne.s32.totalorder %v1359, %v1361
        %vm1364 = vcmp.ne.s32.totalorder %v1360, %v1362
        %vm1365 = vmpackc.low %vm1364, %vm1363
        %v1366 = vunpack.c.l.b16 %v1125
        %v1367 = vunpack.c.h.b16 %v1125
        %v1368 = vunpack.c.l.b16 0
        %v1369 = vunpack.c.h.b16 0
        %vm1370 = vcmp.ne.s32.totalorder %v1366, %v1368
        %vm1371 = vcmp.ne.s32.totalorder %v1367, %v1369
        %vm1372 = vmpackc.low %vm1371, %vm1370
        %v1373 = vunpack.c.l.b16 %v1135
        %v1374 = vunpack.c.h.b16 %v1135
        %v1375 = vunpack.c.l.b16 0
        %v1376 = vunpack.c.h.b16 0
        %vm1377 = vcmp.ne.s32.totalorder %v1373, %v1375
        %vm1378 = vcmp.ne.s32.totalorder %v1374, %v1376
        %vm1379 = vmpackc.low %vm1378, %vm1377
        %v1380 = vunpack.c.l.b16 %v1145
        %v1381 = vunpack.c.h.b16 %v1145
        %v1382 = vunpack.c.l.b16 0
        %v1383 = vunpack.c.h.b16 0
        %vm1384 = vcmp.ne.s32.totalorder %v1380, %v1382
        %vm1385 = vcmp.ne.s32.totalorder %v1381, %v1383
        %vm1386 = vmpackc.low %vm1385, %vm1384
        %v1387 = vunpack.c.l.b16 %v1155
        %v1388 = vunpack.c.h.b16 %v1155
        %v1389 = vunpack.c.l.b16 0
        %v1390 = vunpack.c.h.b16 0
        %vm1391 = vcmp.ne.s32.totalorder %v1387, %v1389
        %vm1392 = vcmp.ne.s32.totalorder %v1388, %v1390
        %vm1393 = vmpackc.low %vm1392, %vm1391
        %v1394 = vunpack.c.l.b16 %v1165
        %v1395 = vunpack.c.h.b16 %v1165
        %v1396 = vunpack.c.l.b16 0
        %v1397 = vunpack.c.h.b16 0
        %vm1398 = vcmp.ne.s32.totalorder %v1394, %v1396
        %vm1399 = vcmp.ne.s32.totalorder %v1395, %v1397
        %vm1400 = vmpackc.low %vm1399, %vm1398
        %v1401 = vunpack.c.l.b16 %v1175
        %v1402 = vunpack.c.h.b16 %v1175
        %v1403 = vunpack.c.l.b16 0
        %v1404 = vunpack.c.h.b16 0
        %vm1405 = vcmp.ne.s32.totalorder %v1401, %v1403
        %vm1406 = vcmp.ne.s32.totalorder %v1402, %v1404
        %vm1407 = vmpackc.low %vm1406, %vm1405
        %v1408 = vunpack.c.l.b16 %v1185
        %v1409 = vunpack.c.h.b16 %v1185
        %v1410 = vunpack.c.l.b16 0
        %v1411 = vunpack.c.h.b16 0
        %vm1412 = vcmp.ne.s32.totalorder %v1408, %v1410
        %vm1413 = vcmp.ne.s32.totalorder %v1409, %v1411
        %vm1414 = vmpackc.low %vm1413, %vm1412
        %v1415 = vunpack.c.l.b16 %v1190
        %v1416 = vunpack.c.h.b16 %v1190
        %v1417 = vunpack.c.l.b16 0
        %v1418 = vunpack.c.h.b16 0
        %vm1419 = vcmp.ne.s32.totalorder %v1415, %v1417
        %vm1420 = vcmp.ne.s32.totalorder %v1416, %v1418
        %vm1421 = vmpackc.low %vm1420, %vm1419
        %v1422 = vsel %vm1197, 0, %v740
        %v1423 = vsel %vm1204, 0, %v741
        %v1424 = vsel %vm1211, 0, %v742
        %v1425 = vsel %vm1218, 0, %v743
        %v1426 = vsel %vm1225, 0, %v744
        %v1427 = vsel %vm1232, 0, %v745
        %v1428 = vsel %vm1239, 0, %v746
        %v1429 = vsel %vm1246, 0, %v747
        %v1430 = vsel %vm1253, 0, %v748
        %v1431 = vsel %vm1260, 0, %v749
        %v1432 = vsel %vm1267, 0, %v750
        %v1433 = vsel %vm1274, 0, %v751
        %v1434 = vsel %vm1281, 0, %v752
        %v1435 = vsel %vm1288, 0, %v753
        %v1436 = vsel %vm1295, 0, %v754
        %v1437 = vsel %vm1302, 0, %v755
        %v1438 = vsel %vm1309, 0, %v756
        %v1439 = vsel %vm1316, 0, %v757
        %v1440 = vsel %vm1323, 0, %v758
        %v1441 = vsel %vm1330, 0, %v759
        %v1442 = vsel %vm1337, 0, %v760
        %v1443 = vsel %vm1344, 0, %v761
        %v1444 = vsel %vm1351, 0, %v762
        %v1445 = vsel %vm1358, 0, %v763
        %v1446 = vsel %vm1365, 0, %v764
        %v1447 = vsel %vm1372, 0, %v765
        %v1448 = vsel %vm1379, 0, %v766
        %v1449 = vsel %vm1386, 0, %v767
        %v1450 = vsel %vm1393, 0, %v768
        %v1451 = vsel %vm1400, 0, %v769
        %v1452 = vsel %vm1407, 0, %v770
        %v1453 = vsel %vm1414, 0, %v771
        %v1454 = vsel %vm1421, 0, %v772
        %vm1455 = vsmask.f32 256
        %vm1456 = vsmask.f32 4368
        %vm1457 = vmor %vm1455, %vm1456
        %v1459 = vshrl.u32 %v1422, 16
        %v1461 = vrot.slane %v1459, 7
        %v1462 = vrot.slane %v1461, 4
        %v1464 = vshrl.u32 %v1423, 16
        %v1466 = vrot.slane %v1464, 7
        %v1467 = vshll.u32 %v1423, 16
        %v1469 = vor.u32 %v1466, %v1467
        %v1470 = vsel %vm1457, %v1462, %v1469
        %v1471 = vrot.slane %v1466, 4
        %v1473 = vshrl.u32 %v1424, 16
        %v1475 = vrot.slane %v1473, 7
        %v1476 = vshll.u32 %v1424, 16
        %v1478 = vor.u32 %v1475, %v1476
        %v1479 = vsel %vm1457, %v1471, %v1478
        %v1480 = vrot.slane %v1475, 4
        %v1482 = vshrl.u32 %v1425, 16
        %v1484 = vrot.slane %v1482, 7
        %v1485 = vshll.u32 %v1425, 16
        %v1487 = vor.u32 %v1484, %v1485
        %v1488 = vsel %vm1457, %v1480, %v1487
        %v1489 = vrot.slane %v1484, 4
        %v1491 = vshrl.u32 %v1426, 16
        %v1493 = vrot.slane %v1491, 7
        %v1494 = vshll.u32 %v1426, 16
        %v1496 = vor.u32 %v1493, %v1494
        %v1497 = vsel %vm1457, %v1489, %v1496
        %v1498 = vrot.slane %v1493, 4
        %v1500 = vshrl.u32 %v1427, 16
        %v1502 = vrot.slane %v1500, 7
        %v1503 = vshll.u32 %v1427, 16
        %v1505 = vor.u32 %v1502, %v1503
        %v1506 = vsel %vm1457, %v1498, %v1505
        %v1507 = vrot.slane %v1502, 4
        %v1509 = vshrl.u32 %v1428, 16
        %v1511 = vrot.slane %v1509, 7
        %v1512 = vshll.u32 %v1428, 16
        %v1514 = vor.u32 %v1511, %v1512
        %v1515 = vsel %vm1457, %v1507, %v1514
        %v1516 = vrot.slane %v1511, 4
        %v1518 = vshrl.u32 %v1429, 16
        %v1520 = vrot.slane %v1518, 7
        %v1521 = vshll.u32 %v1429, 16
        %v1523 = vor.u32 %v1520, %v1521
        %v1524 = vsel %vm1457, %v1516, %v1523
        %v1525 = vrot.slane %v1520, 4
        %v1527 = vshrl.u32 %v1430, 16
        %v1529 = vrot.slane %v1527, 7
        %v1530 = vshll.u32 %v1430, 16
        %v1532 = vor.u32 %v1529, %v1530
        %v1533 = vsel %vm1457, %v1525, %v1532
        %v1534 = vrot.slane %v1529, 4
        %v1536 = vshrl.u32 %v1431, 16
        %v1538 = vrot.slane %v1536, 7
        %v1539 = vshll.u32 %v1431, 16
        %v1541 = vor.u32 %v1538, %v1539
        %v1542 = vsel %vm1457, %v1534, %v1541
        %v1543 = vrot.slane %v1538, 4
        %v1545 = vshrl.u32 %v1432, 16
        %v1547 = vrot.slane %v1545, 7
        %v1548 = vshll.u32 %v1432, 16
        %v1550 = vor.u32 %v1547, %v1548
        %v1551 = vsel %vm1457, %v1543, %v1550
        %v1552 = vrot.slane %v1547, 4
        %v1554 = vshrl.u32 %v1433, 16
        %v1556 = vrot.slane %v1554, 7
        %v1557 = vshll.u32 %v1433, 16
        %v1559 = vor.u32 %v1556, %v1557
        %v1560 = vsel %vm1457, %v1552, %v1559
        %v1561 = vrot.slane %v1556, 4
        %v1563 = vshrl.u32 %v1434, 16
        %v1565 = vrot.slane %v1563, 7
        %v1566 = vshll.u32 %v1434, 16
        %v1568 = vor.u32 %v1565, %v1566
        %v1569 = vsel %vm1457, %v1561, %v1568
        %v1570 = vrot.slane %v1565, 4
        %v1572 = vshrl.u32 %v1435, 16
        %v1574 = vrot.slane %v1572, 7
        %v1575 = vshll.u32 %v1435, 16
        %v1577 = vor.u32 %v1574, %v1575
        %v1578 = vsel %vm1457, %v1570, %v1577
        %v1579 = vrot.slane %v1574, 4
        %v1581 = vshrl.u32 %v1436, 16
        %v1583 = vrot.slane %v1581, 7
        %v1584 = vshll.u32 %v1436, 16
        %v1586 = vor.u32 %v1583, %v1584
        %v1587 = vsel %vm1457, %v1579, %v1586
        %v1588 = vrot.slane %v1583, 4
        %v1590 = vshrl.u32 %v1437, 16
        %v1592 = vrot.slane %v1590, 7
        %v1593 = vshll.u32 %v1437, 16
        %v1595 = vor.u32 %v1592, %v1593
        %v1596 = vsel %vm1457, %v1588, %v1595
        %v1597 = vrot.slane %v1592, 4
        %v1599 = vshrl.u32 %v1438, 16
        %v1601 = vrot.slane %v1599, 7
        %v1602 = vshll.u32 %v1438, 16
        %v1604 = vor.u32 %v1601, %v1602
        %v1605 = vsel %vm1457, %v1597, %v1604
        %v1606 = vrot.slane %v1601, 4
        %v1608 = vshrl.u32 %v1439, 16
        %v1610 = vrot.slane %v1608, 7
        %v1611 = vshll.u32 %v1439, 16
        %v1613 = vor.u32 %v1610, %v1611
        %v1614 = vsel %vm1457, %v1606, %v1613
        %v1615 = vrot.slane %v1610, 4
        %v1617 = vshrl.u32 %v1440, 16
        %v1619 = vrot.slane %v1617, 7
        %v1620 = vshll.u32 %v1440, 16
        %v1622 = vor.u32 %v1619, %v1620
        %v1623 = vsel %vm1457, %v1615, %v1622
        %v1624 = vrot.slane %v1619, 4
        %v1626 = vshrl.u32 %v1441, 16
        %v1628 = vrot.slane %v1626, 7
        %v1629 = vshll.u32 %v1441, 16
        %v1631 = vor.u32 %v1628, %v1629
        %v1632 = vsel %vm1457, %v1624, %v1631
        %v1633 = vrot.slane %v1628, 4
        %v1635 = vshrl.u32 %v1442, 16
        %v1637 = vrot.slane %v1635, 7
        %v1638 = vshll.u32 %v1442, 16
        %v1640 = vor.u32 %v1637, %v1638
        %v1641 = vsel %vm1457, %v1633, %v1640
        %v1642 = vrot.slane %v1637, 4
        %v1644 = vshrl.u32 %v1443, 16
        %v1646 = vrot.slane %v1644, 7
        %v1647 = vshll.u32 %v1443, 16
        %v1649 = vor.u32 %v1646, %v1647
        %v1650 = vsel %vm1457, %v1642, %v1649
        %v1651 = vrot.slane %v1646, 4
        %v1653 = vshrl.u32 %v1444, 16
        %v1655 = vrot.slane %v1653, 7
        %v1656 = vshll.u32 %v1444, 16
        %v1658 = vor.u32 %v1655, %v1656
        %v1659 = vsel %vm1457, %v1651, %v1658
        %v1660 = vrot.slane %v1655, 4
        %v1662 = vshrl.u32 %v1445, 16
        %v1664 = vrot.slane %v1662, 7
        %v1665 = vshll.u32 %v1445, 16
        %v1667 = vor.u32 %v1664, %v1665
        %v1668 = vsel %vm1457, %v1660, %v1667
        %v1669 = vrot.slane %v1664, 4
        %v1671 = vshrl.u32 %v1446, 16
        %v1673 = vrot.slane %v1671, 7
        %v1674 = vshll.u32 %v1446, 16
        %v1676 = vor.u32 %v1673, %v1674
        %v1677 = vsel %vm1457, %v1669, %v1676
        %v1678 = vrot.slane %v1673, 4
        %v1680 = vshrl.u32 %v1447, 16
        %v1682 = vrot.slane %v1680, 7
        %v1683 = vshll.u32 %v1447, 16
        %v1685 = vor.u32 %v1682, %v1683
        %v1686 = vsel %vm1457, %v1678, %v1685
        %v1687 = vrot.slane %v1682, 4
        %v1689 = vshrl.u32 %v1448, 16
        %v1691 = vrot.slane %v1689, 7
        %v1692 = vshll.u32 %v1448, 16
        %v1694 = vor.u32 %v1691, %v1692
        %v1695 = vsel %vm1457, %v1687, %v1694
        %v1696 = vrot.slane %v1691, 4
        %v1698 = vshrl.u32 %v1449, 16
        %v1700 = vrot.slane %v1698, 7
        %v1701 = vshll.u32 %v1449, 16
        %v1703 = vor.u32 %v1700, %v1701
        %v1704 = vsel %vm1457, %v1696, %v1703
        %v1705 = vrot.slane %v1700, 4
        %v1707 = vshrl.u32 %v1450, 16
        %v1709 = vrot.slane %v1707, 7
        %v1710 = vshll.u32 %v1450, 16
        %v1712 = vor.u32 %v1709, %v1710
        %v1713 = vsel %vm1457, %v1705, %v1712
        %v1714 = vrot.slane %v1709, 4
        %v1716 = vshrl.u32 %v1451, 16
        %v1718 = vrot.slane %v1716, 7
        %v1719 = vshll.u32 %v1451, 16
        %v1721 = vor.u32 %v1718, %v1719
        %v1722 = vsel %vm1457, %v1714, %v1721
        %v1723 = vrot.slane %v1718, 4
        %v1725 = vshrl.u32 %v1452, 16
        %v1727 = vrot.slane %v1725, 7
        %v1728 = vshll.u32 %v1452, 16
        %v1730 = vor.u32 %v1727, %v1728
        %v1731 = vsel %vm1457, %v1723, %v1730
        %v1732 = vrot.slane %v1727, 4
        %v1734 = vshrl.u32 %v1453, 16
        %v1736 = vrot.slane %v1734, 7
        %v1737 = vshll.u32 %v1453, 16
        %v1739 = vor.u32 %v1736, %v1737
        %v1740 = vsel %vm1457, %v1732, %v1739
        %v1741 = vrot.slane %v1736, 4
        %v1743 = vshrl.u32 %v1454, 16
        %v1745 = vrot.slane %v1743, 7
        %v1746 = vshll.u32 %v1454, 16
        %v1748 = vor.u32 %v1745, %v1746
        %v1749 = vsel %vm1457, %v1741, %v1748
        %1782 = vst [vmem:[#allocation2 + $0x8] sm:$0xf] %v1470
        %1783 = vst [vmem:[#allocation2 + $0xc] sm:$0xf] %v1479
        %1784 = vst [vmem:[#allocation2 + $0x10] sm:$0xf] %v1488
        %1785 = vst [vmem:[#allocation2 + $0x14] sm:$0xf] %v1497
        %1786 = vst [vmem:[#allocation2 + $0x18] sm:$0xf] %v1506
        %1787 = vst [vmem:[#allocation2 + $0x1c] sm:$0xf] %v1515
        %1788 = vst [vmem:[#allocation2 + $0x20] sm:$0xf] %v1524
        %1789 = vst [vmem:[#allocation2 + $0x24] sm:$0xf] %v1533
        %1790 = vst [vmem:[#allocation2 + $0x28] sm:$0xf] %v1542
        %1791 = vst [vmem:[#allocation2 + $0x2c] sm:$0xf] %v1551
        %1792 = vst [vmem:[#allocation2 + $0x30] sm:$0xf] %v1560
        %1793 = vst [vmem:[#allocation2 + $0x34] sm:$0xf] %v1569
        %1794 = vst [vmem:[#allocation2 + $0x38] sm:$0xf] %v1578
        %1795 = vst [vmem:[#allocation2 + $0x3c] sm:$0xf] %v1587
        %1796 = vst [vmem:[#allocation2 + $0x40] sm:$0xf] %v1596
        %1797 = vst [vmem:[#allocation2 + $0x44] sm:$0xf] %v1605
        %1798 = vst [vmem:[#allocation2 + $0x48] sm:$0xf] %v1614
        %1799 = vst [vmem:[#allocation2 + $0x4c] sm:$0xf] %v1623
        %1800 = vst [vmem:[#allocation2 + $0x50] sm:$0xf] %v1632
        %1801 = vst [vmem:[#allocation2 + $0x54] sm:$0xf] %v1641
        %1802 = vst [vmem:[#allocation2 + $0x58] sm:$0xf] %v1650
        %1803 = vst [vmem:[#allocation2 + $0x5c] sm:$0xf] %v1659
        %1804 = vst [vmem:[#allocation2 + $0x60] sm:$0xf] %v1668
        %1805 = vst [vmem:[#allocation2 + $0x64] sm:$0xf] %v1677
        %1806 = vst [vmem:[#allocation2 + $0x68] sm:$0xf] %v1686
        %1807 = vst [vmem:[#allocation2 + $0x6c] sm:$0xf] %v1695
        %1808 = vst [vmem:[#allocation2 + $0x70] sm:$0xf] %v1704
        %1809 = vst [vmem:[#allocation2 + $0x74] sm:$0xf] %v1713
        %1810 = vst [vmem:[#allocation2 + $0x78] sm:$0xf] %v1722
        %1811 = vst [vmem:[#allocation2 + $0x7c] sm:$0xf] %v1731
        %1812 = vst [vmem:[#allocation2 + $0x80] sm:$0xf] %v1740
        %1813 = vst [vmem:[#allocation2 + $0x84] sm:$0xf] %v1749
        %v1814 = vld [vmem:[%s290 + $0x8] sm:$0xf]
        %v1815 = vld [vmem:[%s290 + $0xc] sm:$0xf]
        %v1816 = vld [vmem:[%s290 + $0x10] sm:$0xf]
        %v1817 = vld [vmem:[%s290 + $0x14] sm:$0xf]
        %v1818 = vld [vmem:[%s290 + $0x18] sm:$0xf]
        %v1819 = vld [vmem:[%s290 + $0x1c] sm:$0xf]
        %v1820 = vld [vmem:[%s290 + $0x20] sm:$0xf]
        %v1821 = vld [vmem:[%s290 + $0x24] sm:$0xf]
        %v1822 = vld [vmem:[%s290 + $0x28] sm:$0xf]
        %v1823 = vld [vmem:[%s290 + $0x2c] sm:$0xf]
        %v1824 = vld [vmem:[%s290 + $0x30] sm:$0xf]
        %v1825 = vld [vmem:[%s290 + $0x34] sm:$0xf]
        %v1826 = vld [vmem:[%s290 + $0x38] sm:$0xf]
        %v1827 = vld [vmem:[%s290 + $0x3c] sm:$0xf]
        %v1828 = vld [vmem:[%s290 + $0x40] sm:$0xf]
        %v1829 = vld [vmem:[%s290 + $0x44] sm:$0xf]
        %v1830 = vld [vmem:[%s290 + $0x48] sm:$0xf]
        %v1831 = vld [vmem:[%s290 + $0x4c] sm:$0xf]
        %v1832 = vld [vmem:[%s290 + $0x50] sm:$0xf]
        %v1833 = vld [vmem:[%s290 + $0x54] sm:$0xf]
        %v1834 = vld [vmem:[%s290 + $0x58] sm:$0xf]
        %v1835 = vld [vmem:[%s290 + $0x5c] sm:$0xf]
        %v1836 = vld [vmem:[%s290 + $0x60] sm:$0xf]
        %v1837 = vld [vmem:[%s290 + $0x64] sm:$0xf]
        %v1838 = vld [vmem:[%s290 + $0x68] sm:$0xf]
        %v1839 = vld [vmem:[%s290 + $0x6c] sm:$0xf]
        %v1840 = vld [vmem:[%s290 + $0x70] sm:$0xf]
        %v1841 = vld [vmem:[%s290 + $0x74] sm:$0xf]
        %v1842 = vld [vmem:[%s290 + $0x78] sm:$0xf]
        %v1843 = vld [vmem:[%s290 + $0x7c] sm:$0xf]
        %v1844 = vld [vmem:[%s290 + $0x80] sm:$0xf]
        %v1845 = vld [vmem:[%s290 + $0x84] sm:$0xf]
        %v1846 = vld [vmem:[%s290 + $0x88] sm:$0x1]
        %vm1847 = vcmp.eq.s32.totalorder %v708, 15
        %vm1848 = vcmp.eq.s32.totalorder %v709, 15
        %vm1849 = vcmp.eq.s32.totalorder %v710, 15
        %vm1850 = vcmp.eq.s32.totalorder %v711, 15
        %vm1851 = vcmp.eq.s32.totalorder %v712, 15
        %vm1852 = vcmp.eq.s32.totalorder %v713, 15
        %vm1853 = vcmp.eq.s32.totalorder %v714, 15
        %vm1854 = vcmp.eq.s32.totalorder %v715, 15
        %vm1855 = vcmp.eq.s32.totalorder %v716, 15
        %vm1856 = vcmp.eq.s32.totalorder %v717, 15
        %vm1857 = vcmp.eq.s32.totalorder %v718, 15
        %vm1858 = vcmp.eq.s32.totalorder %v719, 15
        %vm1859 = vcmp.eq.s32.totalorder %v720, 15
        %vm1860 = vcmp.eq.s32.totalorder %v721, 15
        %vm1861 = vcmp.eq.s32.totalorder %v722, 15
        %vm1862 = vcmp.eq.s32.totalorder %v723, 15
        %vm1863 = vcmp.eq.s32.totalorder %v724, 15
        %vm1864 = vcmp.eq.s32.totalorder %v725, 15
        %vm1865 = vcmp.eq.s32.totalorder %v726, 15
        %vm1866 = vcmp.eq.s32.totalorder %v727, 15
        %vm1867 = vcmp.eq.s32.totalorder %v728, 15
        %vm1868 = vcmp.eq.s32.totalorder %v729, 15
        %vm1869 = vcmp.eq.s32.totalorder %v730, 15
        %vm1870 = vcmp.eq.s32.totalorder %v731, 15
        %vm1871 = vcmp.eq.s32.totalorder %v732, 15
        %vm1872 = vcmp.eq.s32.totalorder %v733, 15
        %vm1873 = vcmp.eq.s32.totalorder %v734, 15
        %vm1874 = vcmp.eq.s32.totalorder %v735, 15
        %vm1875 = vcmp.eq.s32.totalorder %v736, 15
        %vm1876 = vcmp.eq.s32.totalorder %v737, 15
        %vm1877 = vcmp.eq.s32.totalorder %v738, 15
        %vm1878 = vcmp.eq.s32.totalorder %v739, 15
        %vm1879 = vmpackc.low %vm1847, %vm1847
        %vm1880 = vmpackc.low %vm1848, %vm1848
        %vm1881 = vmpackc.low %vm1849, %vm1849
        %vm1882 = vmpackc.low %vm1850, %vm1850
        %vm1883 = vmpackc.low %vm1851, %vm1851
        %vm1884 = vmpackc.low %vm1852, %vm1852
        %vm1885 = vmpackc.low %vm1853, %vm1853
        %vm1886 = vmpackc.low %vm1854, %vm1854
        %vm1887 = vmpackc.low %vm1855, %vm1855
        %vm1888 = vmpackc.low %vm1856, %vm1856
        %vm1889 = vmpackc.low %vm1857, %vm1857
        %vm1890 = vmpackc.low %vm1858, %vm1858
        %vm1891 = vmpackc.low %vm1859, %vm1859
        %vm1892 = vmpackc.low %vm1860, %vm1860
        %vm1893 = vmpackc.low %vm1861, %vm1861
        %vm1894 = vmpackc.low %vm1862, %vm1862
        %vm1895 = vmpackc.low %vm1863, %vm1863
        %vm1896 = vmpackc.low %vm1864, %vm1864
        %vm1897 = vmpackc.low %vm1865, %vm1865
        %vm1898 = vmpackc.low %vm1866, %vm1866
        %vm1899 = vmpackc.low %vm1867, %vm1867
        %vm1900 = vmpackc.low %vm1868, %vm1868
        %vm1901 = vmpackc.low %vm1869, %vm1869
        %vm1902 = vmpackc.low %vm1870, %vm1870
        %vm1903 = vmpackc.low %vm1871, %vm1871
        %vm1904 = vmpackc.low %vm1872, %vm1872
        %vm1905 = vmpackc.low %vm1873, %vm1873
        %vm1906 = vmpackc.low %vm1874, %vm1874
        %vm1907 = vmpackc.low %vm1875, %vm1875
        %vm1908 = vmpackc.low %vm1876, %vm1876
        %vm1909 = vmpackc.low %vm1877, %vm1877
        %vm1910 = vmpackc.low %vm1878, %vm1878
        %v1911 = vsel %vm1879, 65537, 0
        %v1912 = vsel %vm1880, 65537, 0
        %v1913 = vsel %vm1881, 65537, 0
        %v1914 = vsel %vm1882, 65537, 0
        %v1915 = vsel %vm1883, 65537, 0
        %v1916 = vsel %vm1884, 65537, 0
        %v1917 = vsel %vm1885, 65537, 0
        %v1918 = vsel %vm1886, 65537, 0
        %v1919 = vsel %vm1887, 65537, 0
        %v1920 = vsel %vm1888, 65537, 0
        %v1921 = vsel %vm1889, 65537, 0
        %v1922 = vsel %vm1890, 65537, 0
        %v1923 = vsel %vm1891, 65537, 0
        %v1924 = vsel %vm1892, 65537, 0
        %v1925 = vsel %vm1893, 65537, 0
        %v1926 = vsel %vm1894, 65537, 0
        %v1927 = vsel %vm1895, 65537, 0
        %v1928 = vsel %vm1896, 65537, 0
        %v1929 = vsel %vm1897, 65537, 0
        %v1930 = vsel %vm1898, 65537, 0
        %v1931 = vsel %vm1899, 65537, 0
        %v1932 = vsel %vm1900, 65537, 0
        %v1933 = vsel %vm1901, 65537, 0
        %v1934 = vsel %vm1902, 65537, 0
        %v1935 = vsel %vm1903, 65537, 0
        %v1936 = vsel %vm1904, 65537, 0
        %v1937 = vsel %vm1905, 65537, 0
        %v1938 = vsel %vm1906, 65537, 0
        %v1939 = vsel %vm1907, 65537, 0
        %v1940 = vsel %vm1908, 65537, 0
        %v1941 = vsel %vm1909, 65537, 0
        %v1942 = vsel %vm1910, 65537, 0
        %v1944 = vshrl.u32 %v1911, 16
        %v1946 = vrot.slane %v1944, 7
        %v1947 = vshll.u32 %v1911, 16
        %v1949 = vor.u32 %v1946, %v1947
        %v1950 = vrot.slane %v1946, 4
        %v1952 = vshrl.u32 %v1912, 16
        %v1954 = vrot.slane %v1952, 7
        %v1955 = vshll.u32 %v1912, 16
        %v1957 = vor.u32 %v1954, %v1955
        %v1958 = vsel %vm1457, %v1950, %v1957
        %v1959 = vrot.slane %v1954, 4
        %v1961 = vshrl.u32 %v1913, 16
        %v1963 = vrot.slane %v1961, 7
        %v1964 = vshll.u32 %v1913, 16
        %v1966 = vor.u32 %v1963, %v1964
        %v1967 = vsel %vm1457, %v1959, %v1966
        %v1968 = vrot.slane %v1963, 4
        %v1970 = vshrl.u32 %v1914, 16
        %v1972 = vrot.slane %v1970, 7
        %v1973 = vshll.u32 %v1914, 16
        %v1975 = vor.u32 %v1972, %v1973
        %v1976 = vsel %vm1457, %v1968, %v1975
        %v1977 = vrot.slane %v1972, 4
        %v1979 = vshrl.u32 %v1915, 16
        %v1981 = vrot.slane %v1979, 7
        %v1982 = vshll.u32 %v1915, 16
        %v1984 = vor.u32 %v1981, %v1982
        %v1985 = vsel %vm1457, %v1977, %v1984
        %v1986 = vrot.slane %v1981, 4
        %v1988 = vshrl.u32 %v1916, 16
        %v1990 = vrot.slane %v1988, 7
        %v1991 = vshll.u32 %v1916, 16
        %v1993 = vor.u32 %v1990, %v1991
        %v1994 = vsel %vm1457, %v1986, %v1993
        %v1995 = vrot.slane %v1990, 4
        %v1997 = vshrl.u32 %v1917, 16
        %v1999 = vrot.slane %v1997, 7
        %v2000 = vshll.u32 %v1917, 16
        %v2002 = vor.u32 %v1999, %v2000
        %v2003 = vsel %vm1457, %v1995, %v2002
        %v2004 = vrot.slane %v1999, 4
        %v2006 = vshrl.u32 %v1918, 16
        %v2008 = vrot.slane %v2006, 7
        %v2009 = vshll.u32 %v1918, 16
        %v2011 = vor.u32 %v2008, %v2009
        %v2012 = vsel %vm1457, %v2004, %v2011
        %v2013 = vrot.slane %v2008, 4
        %v2015 = vshrl.u32 %v1919, 16
        %v2017 = vrot.slane %v2015, 7
        %v2018 = vshll.u32 %v1919, 16
        %v2020 = vor.u32 %v2017, %v2018
        %v2021 = vsel %vm1457, %v2013, %v2020
        %v2022 = vrot.slane %v2017, 4
        %v2024 = vshrl.u32 %v1920, 16
        %v2026 = vrot.slane %v2024, 7
        %v2027 = vshll.u32 %v1920, 16
        %v2029 = vor.u32 %v2026, %v2027
        %v2030 = vsel %vm1457, %v2022, %v2029
        %v2031 = vrot.slane %v2026, 4
        %v2033 = vshrl.u32 %v1921, 16
        %v2035 = vrot.slane %v2033, 7
        %v2036 = vshll.u32 %v1921, 16
        %v2038 = vor.u32 %v2035, %v2036
        %v2039 = vsel %vm1457, %v2031, %v2038
        %v2040 = vrot.slane %v2035, 4
        %v2042 = vshrl.u32 %v1922, 16
        %v2044 = vrot.slane %v2042, 7
        %v2045 = vshll.u32 %v1922, 16
        %v2047 = vor.u32 %v2044, %v2045
        %v2048 = vsel %vm1457, %v2040, %v2047
        %v2049 = vrot.slane %v2044, 4
        %v2051 = vshrl.u32 %v1923, 16
        %v2053 = vrot.slane %v2051, 7
        %v2054 = vshll.u32 %v1923, 16
        %v2056 = vor.u32 %v2053, %v2054
        %v2057 = vsel %vm1457, %v2049, %v2056
        %v2058 = vrot.slane %v2053, 4
        %v2060 = vshrl.u32 %v1924, 16
        %v2062 = vrot.slane %v2060, 7
        %v2063 = vshll.u32 %v1924, 16
        %v2065 = vor.u32 %v2062, %v2063
        %v2066 = vsel %vm1457, %v2058, %v2065
        %v2067 = vrot.slane %v2062, 4
        %v2069 = vshrl.u32 %v1925, 16
        %v2071 = vrot.slane %v2069, 7
        %v2072 = vshll.u32 %v1925, 16
        %v2074 = vor.u32 %v2071, %v2072
        %v2075 = vsel %vm1457, %v2067, %v2074
        %v2076 = vrot.slane %v2071, 4
        %v2078 = vshrl.u32 %v1926, 16
        %v2080 = vrot.slane %v2078, 7
        %v2081 = vshll.u32 %v1926, 16
        %v2083 = vor.u32 %v2080, %v2081
        %v2084 = vsel %vm1457, %v2076, %v2083
        %v2085 = vrot.slane %v2080, 4
        %v2087 = vshrl.u32 %v1927, 16
        %v2089 = vrot.slane %v2087, 7
        %v2090 = vshll.u32 %v1927, 16
        %v2092 = vor.u32 %v2089, %v2090
        %v2093 = vsel %vm1457, %v2085, %v2092
        %v2094 = vrot.slane %v2089, 4
        %v2096 = vshrl.u32 %v1928, 16
        %v2098 = vrot.slane %v2096, 7
        %v2099 = vshll.u32 %v1928, 16
        %v2101 = vor.u32 %v2098, %v2099
        %v2102 = vsel %vm1457, %v2094, %v2101
        %v2103 = vrot.slane %v2098, 4
        %v2105 = vshrl.u32 %v1929, 16
        %v2107 = vrot.slane %v2105, 7
        %v2108 = vshll.u32 %v1929, 16
        %v2110 = vor.u32 %v2107, %v2108
        %v2111 = vsel %vm1457, %v2103, %v2110
        %v2112 = vrot.slane %v2107, 4
        %v2114 = vshrl.u32 %v1930, 16
        %v2116 = vrot.slane %v2114, 7
        %v2117 = vshll.u32 %v1930, 16
        %v2119 = vor.u32 %v2116, %v2117
        %v2120 = vsel %vm1457, %v2112, %v2119
        %v2121 = vrot.slane %v2116, 4
        %v2123 = vshrl.u32 %v1931, 16
        %v2125 = vrot.slane %v2123, 7
        %v2126 = vshll.u32 %v1931, 16
        %v2128 = vor.u32 %v2125, %v2126
        %v2129 = vsel %vm1457, %v2121, %v2128
        %v2130 = vrot.slane %v2125, 4
        %v2132 = vshrl.u32 %v1932, 16
        %v2134 = vrot.slane %v2132, 7
        %v2135 = vshll.u32 %v1932, 16
        %v2137 = vor.u32 %v2134, %v2135
        %v2138 = vsel %vm1457, %v2130, %v2137
        %v2139 = vrot.slane %v2134, 4
        %v2141 = vshrl.u32 %v1933, 16
        %v2143 = vrot.slane %v2141, 7
        %v2144 = vshll.u32 %v1933, 16
        %v2146 = vor.u32 %v2143, %v2144
        %v2147 = vsel %vm1457, %v2139, %v2146
        %v2148 = vrot.slane %v2143, 4
        %v2150 = vshrl.u32 %v1934, 16
        %v2152 = vrot.slane %v2150, 7
        %v2153 = vshll.u32 %v1934, 16
        %v2155 = vor.u32 %v2152, %v2153
        %v2156 = vsel %vm1457, %v2148, %v2155
        %v2157 = vrot.slane %v2152, 4
        %v2159 = vshrl.u32 %v1935, 16
        %v2161 = vrot.slane %v2159, 7
        %v2162 = vshll.u32 %v1935, 16
        %v2164 = vor.u32 %v2161, %v2162
        %v2165 = vsel %vm1457, %v2157, %v2164
        %v2166 = vrot.slane %v2161, 4
        %v2168 = vshrl.u32 %v1936, 16
        %v2170 = vrot.slane %v2168, 7
        %v2171 = vshll.u32 %v1936, 16
        %v2173 = vor.u32 %v2170, %v2171
        %v2174 = vsel %vm1457, %v2166, %v2173
        %v2175 = vrot.slane %v2170, 4
        %v2177 = vshrl.u32 %v1937, 16
        %v2179 = vrot.slane %v2177, 7
        %v2180 = vshll.u32 %v1937, 16
        %v2182 = vor.u32 %v2179, %v2180
        %v2183 = vsel %vm1457, %v2175, %v2182
        %v2184 = vrot.slane %v2179, 4
        %v2186 = vshrl.u32 %v1938, 16
        %v2188 = vrot.slane %v2186, 7
        %v2189 = vshll.u32 %v1938, 16
        %v2191 = vor.u32 %v2188, %v2189
        %v2192 = vsel %vm1457, %v2184, %v2191
        %v2193 = vrot.slane %v2188, 4
        %v2195 = vshrl.u32 %v1939, 16
        %v2197 = vrot.slane %v2195, 7
        %v2198 = vshll.u32 %v1939, 16
        %v2200 = vor.u32 %v2197, %v2198
        %v2201 = vsel %vm1457, %v2193, %v2200
        %v2202 = vrot.slane %v2197, 4
        %v2204 = vshrl.u32 %v1940, 16
        %v2206 = vrot.slane %v2204, 7
        %v2207 = vshll.u32 %v1940, 16
        %v2209 = vor.u32 %v2206, %v2207
        %v2210 = vsel %vm1457, %v2202, %v2209
        %v2211 = vrot.slane %v2206, 4
        %v2213 = vshrl.u32 %v1941, 16
        %v2215 = vrot.slane %v2213, 7
        %v2216 = vshll.u32 %v1941, 16
        %v2218 = vor.u32 %v2215, %v2216
        %v2219 = vsel %vm1457, %v2211, %v2218
        %v2220 = vrot.slane %v2215, 4
        %v2222 = vshrl.u32 %v1942, 16
        %v2224 = vrot.slane %v2222, 7
        %v2225 = vshll.u32 %v1942, 16
        %v2227 = vor.u32 %v2224, %v2225
        %v2228 = vsel %vm1457, %v2220, %v2227
        %v2229 = vrot.slane %v2224, 4
        %v2230 = vunpack.c.l.b16 %v1949
        %v2231 = vunpack.c.h.b16 %v1949
        %v2232 = vunpack.c.l.b16 0
        %v2233 = vunpack.c.h.b16 0
        %vm2234 = vcmp.ne.s32.totalorder %v2230, %v2232
        %vm2235 = vcmp.ne.s32.totalorder %v2231, %v2233
        %vm2236 = vmpackc.low %vm2235, %vm2234
        %v2237 = vunpack.c.l.b16 %v1958
        %v2238 = vunpack.c.h.b16 %v1958
        %v2239 = vunpack.c.l.b16 0
        %v2240 = vunpack.c.h.b16 0
        %vm2241 = vcmp.ne.s32.totalorder %v2237, %v2239
        %vm2242 = vcmp.ne.s32.totalorder %v2238, %v2240
        %vm2243 = vmpackc.low %vm2242, %vm2241
        %v2244 = vunpack.c.l.b16 %v1967
        %v2245 = vunpack.c.h.b16 %v1967
        %v2246 = vunpack.c.l.b16 0
        %v2247 = vunpack.c.h.b16 0
        %vm2248 = vcmp.ne.s32.totalorder %v2244, %v2246
        %vm2249 = vcmp.ne.s32.totalorder %v2245, %v2247
        %vm2250 = vmpackc.low %vm2249, %vm2248
        %v2251 = vunpack.c.l.b16 %v1976
        %v2252 = vunpack.c.h.b16 %v1976
        %v2253 = vunpack.c.l.b16 0
        %v2254 = vunpack.c.h.b16 0
        %vm2255 = vcmp.ne.s32.totalorder %v2251, %v2253
        %vm2256 = vcmp.ne.s32.totalorder %v2252, %v2254
        %vm2257 = vmpackc.low %vm2256, %vm2255
        %v2258 = vunpack.c.l.b16 %v1985
        %v2259 = vunpack.c.h.b16 %v1985
        %v2260 = vunpack.c.l.b16 0
        %v2261 = vunpack.c.h.b16 0
        %vm2262 = vcmp.ne.s32.totalorder %v2258, %v2260
        %vm2263 = vcmp.ne.s32.totalorder %v2259, %v2261
        %vm2264 = vmpackc.low %vm2263, %vm2262
        %v2265 = vunpack.c.l.b16 %v1994
        %v2266 = vunpack.c.h.b16 %v1994
        %v2267 = vunpack.c.l.b16 0
        %v2268 = vunpack.c.h.b16 0
        %vm2269 = vcmp.ne.s32.totalorder %v2265, %v2267
        %vm2270 = vcmp.ne.s32.totalorder %v2266, %v2268
        %vm2271 = vmpackc.low %vm2270, %vm2269
        %v2272 = vunpack.c.l.b16 %v2003
        %v2273 = vunpack.c.h.b16 %v2003
        %v2274 = vunpack.c.l.b16 0
        %v2275 = vunpack.c.h.b16 0
        %vm2276 = vcmp.ne.s32.totalorder %v2272, %v2274
        %vm2277 = vcmp.ne.s32.totalorder %v2273, %v2275
        %vm2278 = vmpackc.low %vm2277, %vm2276
        %v2279 = vunpack.c.l.b16 %v2012
        %v2280 = vunpack.c.h.b16 %v2012
        %v2281 = vunpack.c.l.b16 0
        %v2282 = vunpack.c.h.b16 0
        %vm2283 = vcmp.ne.s32.totalorder %v2279, %v2281
        %vm2284 = vcmp.ne.s32.totalorder %v2280, %v2282
        %vm2285 = vmpackc.low %vm2284, %vm2283
        %v2286 = vunpack.c.l.b16 %v2021
        %v2287 = vunpack.c.h.b16 %v2021
        %v2288 = vunpack.c.l.b16 0
        %v2289 = vunpack.c.h.b16 0
        %vm2290 = vcmp.ne.s32.totalorder %v2286, %v2288
        %vm2291 = vcmp.ne.s32.totalorder %v2287, %v2289
        %vm2292 = vmpackc.low %vm2291, %vm2290
        %v2293 = vunpack.c.l.b16 %v2030
        %v2294 = vunpack.c.h.b16 %v2030
        %v2295 = vunpack.c.l.b16 0
        %v2296 = vunpack.c.h.b16 0
        %vm2297 = vcmp.ne.s32.totalorder %v2293, %v2295
        %vm2298 = vcmp.ne.s32.totalorder %v2294, %v2296
        %vm2299 = vmpackc.low %vm2298, %vm2297
        %v2300 = vunpack.c.l.b16 %v2039
        %v2301 = vunpack.c.h.b16 %v2039
        %v2302 = vunpack.c.l.b16 0
        %v2303 = vunpack.c.h.b16 0
        %vm2304 = vcmp.ne.s32.totalorder %v2300, %v2302
        %vm2305 = vcmp.ne.s32.totalorder %v2301, %v2303
        %vm2306 = vmpackc.low %vm2305, %vm2304
        %v2307 = vunpack.c.l.b16 %v2048
        %v2308 = vunpack.c.h.b16 %v2048
        %v2309 = vunpack.c.l.b16 0
        %v2310 = vunpack.c.h.b16 0
        %vm2311 = vcmp.ne.s32.totalorder %v2307, %v2309
        %vm2312 = vcmp.ne.s32.totalorder %v2308, %v2310
        %vm2313 = vmpackc.low %vm2312, %vm2311
        %v2314 = vunpack.c.l.b16 %v2057
        %v2315 = vunpack.c.h.b16 %v2057
        %v2316 = vunpack.c.l.b16 0
        %v2317 = vunpack.c.h.b16 0
        %vm2318 = vcmp.ne.s32.totalorder %v2314, %v2316
        %vm2319 = vcmp.ne.s32.totalorder %v2315, %v2317
        %vm2320 = vmpackc.low %vm2319, %vm2318
        %v2321 = vunpack.c.l.b16 %v2066
        %v2322 = vunpack.c.h.b16 %v2066
        %v2323 = vunpack.c.l.b16 0
        %v2324 = vunpack.c.h.b16 0
        %vm2325 = vcmp.ne.s32.totalorder %v2321, %v2323
        %vm2326 = vcmp.ne.s32.totalorder %v2322, %v2324
        %vm2327 = vmpackc.low %vm2326, %vm2325
        %v2328 = vunpack.c.l.b16 %v2075
        %v2329 = vunpack.c.h.b16 %v2075
        %v2330 = vunpack.c.l.b16 0
        %v2331 = vunpack.c.h.b16 0
        %vm2332 = vcmp.ne.s32.totalorder %v2328, %v2330
        %vm2333 = vcmp.ne.s32.totalorder %v2329, %v2331
        %vm2334 = vmpackc.low %vm2333, %vm2332
        %v2335 = vunpack.c.l.b16 %v2084
        %v2336 = vunpack.c.h.b16 %v2084
        %v2337 = vunpack.c.l.b16 0
        %v2338 = vunpack.c.h.b16 0
        %vm2339 = vcmp.ne.s32.totalorder %v2335, %v2337
        %vm2340 = vcmp.ne.s32.totalorder %v2336, %v2338
        %vm2341 = vmpackc.low %vm2340, %vm2339
        %v2342 = vunpack.c.l.b16 %v2093
        %v2343 = vunpack.c.h.b16 %v2093
        %v2344 = vunpack.c.l.b16 0
        %v2345 = vunpack.c.h.b16 0
        %vm2346 = vcmp.ne.s32.totalorder %v2342, %v2344
        %vm2347 = vcmp.ne.s32.totalorder %v2343, %v2345
        %vm2348 = vmpackc.low %vm2347, %vm2346
        %v2349 = vunpack.c.l.b16 %v2102
        %v2350 = vunpack.c.h.b16 %v2102
        %v2351 = vunpack.c.l.b16 0
        %v2352 = vunpack.c.h.b16 0
        %vm2353 = vcmp.ne.s32.totalorder %v2349, %v2351
        %vm2354 = vcmp.ne.s32.totalorder %v2350, %v2352
        %vm2355 = vmpackc.low %vm2354, %vm2353
        %v2356 = vunpack.c.l.b16 %v2111
        %v2357 = vunpack.c.h.b16 %v2111
        %v2358 = vunpack.c.l.b16 0
        %v2359 = vunpack.c.h.b16 0
        %vm2360 = vcmp.ne.s32.totalorder %v2356, %v2358
        %vm2361 = vcmp.ne.s32.totalorder %v2357, %v2359
        %vm2362 = vmpackc.low %vm2361, %vm2360
        %v2363 = vunpack.c.l.b16 %v2120
        %v2364 = vunpack.c.h.b16 %v2120
        %v2365 = vunpack.c.l.b16 0
        %v2366 = vunpack.c.h.b16 0
        %vm2367 = vcmp.ne.s32.totalorder %v2363, %v2365
        %vm2368 = vcmp.ne.s32.totalorder %v2364, %v2366
        %vm2369 = vmpackc.low %vm2368, %vm2367
        %v2370 = vunpack.c.l.b16 %v2129
        %v2371 = vunpack.c.h.b16 %v2129
        %v2372 = vunpack.c.l.b16 0
        %v2373 = vunpack.c.h.b16 0
        %vm2374 = vcmp.ne.s32.totalorder %v2370, %v2372
        %vm2375 = vcmp.ne.s32.totalorder %v2371, %v2373
        %vm2376 = vmpackc.low %vm2375, %vm2374
        %v2377 = vunpack.c.l.b16 %v2138
        %v2378 = vunpack.c.h.b16 %v2138
        %v2379 = vunpack.c.l.b16 0
        %v2380 = vunpack.c.h.b16 0
        %vm2381 = vcmp.ne.s32.totalorder %v2377, %v2379
        %vm2382 = vcmp.ne.s32.totalorder %v2378, %v2380
        %vm2383 = vmpackc.low %vm2382, %vm2381
        %v2384 = vunpack.c.l.b16 %v2147
        %v2385 = vunpack.c.h.b16 %v2147
        %v2386 = vunpack.c.l.b16 0
        %v2387 = vunpack.c.h.b16 0
        %vm2388 = vcmp.ne.s32.totalorder %v2384, %v2386
        %vm2389 = vcmp.ne.s32.totalorder %v2385, %v2387
        %vm2390 = vmpackc.low %vm2389, %vm2388
        %v2391 = vunpack.c.l.b16 %v2156
        %v2392 = vunpack.c.h.b16 %v2156
        %v2393 = vunpack.c.l.b16 0
        %v2394 = vunpack.c.h.b16 0
        %vm2395 = vcmp.ne.s32.totalorder %v2391, %v2393
        %vm2396 = vcmp.ne.s32.totalorder %v2392, %v2394
        %vm2397 = vmpackc.low %vm2396, %vm2395
        %v2398 = vunpack.c.l.b16 %v2165
        %v2399 = vunpack.c.h.b16 %v2165
        %v2400 = vunpack.c.l.b16 0
        %v2401 = vunpack.c.h.b16 0
        %vm2402 = vcmp.ne.s32.totalorder %v2398, %v2400
        %vm2403 = vcmp.ne.s32.totalorder %v2399, %v2401
        %vm2404 = vmpackc.low %vm2403, %vm2402
        %v2405 = vunpack.c.l.b16 %v2174
        %v2406 = vunpack.c.h.b16 %v2174
        %v2407 = vunpack.c.l.b16 0
        %v2408 = vunpack.c.h.b16 0
        %vm2409 = vcmp.ne.s32.totalorder %v2405, %v2407
        %vm2410 = vcmp.ne.s32.totalorder %v2406, %v2408
        %vm2411 = vmpackc.low %vm2410, %vm2409
        %v2412 = vunpack.c.l.b16 %v2183
        %v2413 = vunpack.c.h.b16 %v2183
        %v2414 = vunpack.c.l.b16 0
        %v2415 = vunpack.c.h.b16 0
        %vm2416 = vcmp.ne.s32.totalorder %v2412, %v2414
        %vm2417 = vcmp.ne.s32.totalorder %v2413, %v2415
        %vm2418 = vmpackc.low %vm2417, %vm2416
        %v2419 = vunpack.c.l.b16 %v2192
        %v2420 = vunpack.c.h.b16 %v2192
        %v2421 = vunpack.c.l.b16 0
        %v2422 = vunpack.c.h.b16 0
        %vm2423 = vcmp.ne.s32.totalorder %v2419, %v2421
        %vm2424 = vcmp.ne.s32.totalorder %v2420, %v2422
        %vm2425 = vmpackc.low %vm2424, %vm2423
        %v2426 = vunpack.c.l.b16 %v2201
        %v2427 = vunpack.c.h.b16 %v2201
        %v2428 = vunpack.c.l.b16 0
        %v2429 = vunpack.c.h.b16 0
        %vm2430 = vcmp.ne.s32.totalorder %v2426, %v2428
        %vm2431 = vcmp.ne.s32.totalorder %v2427, %v2429
        %vm2432 = vmpackc.low %vm2431, %vm2430
        %v2433 = vunpack.c.l.b16 %v2210
        %v2434 = vunpack.c.h.b16 %v2210
        %v2435 = vunpack.c.l.b16 0
        %v2436 = vunpack.c.h.b16 0
        %vm2437 = vcmp.ne.s32.totalorder %v2433, %v2435
        %vm2438 = vcmp.ne.s32.totalorder %v2434, %v2436
        %vm2439 = vmpackc.low %vm2438, %vm2437
        %v2440 = vunpack.c.l.b16 %v2219
        %v2441 = vunpack.c.h.b16 %v2219
        %v2442 = vunpack.c.l.b16 0
        %v2443 = vunpack.c.h.b16 0
        %vm2444 = vcmp.ne.s32.totalorder %v2440, %v2442
        %vm2445 = vcmp.ne.s32.totalorder %v2441, %v2443
        %vm2446 = vmpackc.low %vm2445, %vm2444
        %v2447 = vunpack.c.l.b16 %v2228
        %v2448 = vunpack.c.h.b16 %v2228
        %v2449 = vunpack.c.l.b16 0
        %v2450 = vunpack.c.h.b16 0
        %vm2451 = vcmp.ne.s32.totalorder %v2447, %v2449
        %vm2452 = vcmp.ne.s32.totalorder %v2448, %v2450
        %vm2453 = vmpackc.low %vm2452, %vm2451
        %v2454 = vunpack.c.l.b16 %v2229
        %v2455 = vunpack.c.h.b16 %v2229
        %v2456 = vunpack.c.l.b16 0
        %v2457 = vunpack.c.h.b16 0
        %vm2458 = vcmp.ne.s32.totalorder %v2454, %v2456
        %vm2459 = vcmp.ne.s32.totalorder %v2455, %v2457
        %vm2460 = vmpackc.low %vm2459, %vm2458
        %v2461 = vsel %vm2236, 0, %v1814
        %v2462 = vsel %vm2243, 0, %v1815
        %v2463 = vsel %vm2250, 0, %v1816
        %v2464 = vsel %vm2257, 0, %v1817
        %v2465 = vsel %vm2264, 0, %v1818
        %v2466 = vsel %vm2271, 0, %v1819
        %v2467 = vsel %vm2278, 0, %v1820
        %v2468 = vsel %vm2285, 0, %v1821
        %v2469 = vsel %vm2292, 0, %v1822
        %v2470 = vsel %vm2299, 0, %v1823
        %v2471 = vsel %vm2306, 0, %v1824
        %v2472 = vsel %vm2313, 0, %v1825
        %v2473 = vsel %vm2320, 0, %v1826
        %v2474 = vsel %vm2327, 0, %v1827
        %v2475 = vsel %vm2334, 0, %v1828
        %v2476 = vsel %vm2341, 0, %v1829
        %v2477 = vsel %vm2348, 0, %v1830
        %v2478 = vsel %vm2355, 0, %v1831
        %v2479 = vsel %vm2362, 0, %v1832
        %v2480 = vsel %vm2369, 0, %v1833
        %v2481 = vsel %vm2376, 0, %v1834
        %v2482 = vsel %vm2383, 0, %v1835
        %v2483 = vsel %vm2390, 0, %v1836
        %v2484 = vsel %vm2397, 0, %v1837
        %v2485 = vsel %vm2404, 0, %v1838
        %v2486 = vsel %vm2411, 0, %v1839
        %v2487 = vsel %vm2418, 0, %v1840
        %v2488 = vsel %vm2425, 0, %v1841
        %v2489 = vsel %vm2432, 0, %v1842
        %v2490 = vsel %vm2439, 0, %v1843
        %v2491 = vsel %vm2446, 0, %v1844
        %v2492 = vsel %vm2453, 0, %v1845
        %v2493 = vsel %vm2460, 0, %v1846
        %v2495 = vshrl.u32 %v2461, 16
        %v2497 = vrot.slane %v2495, 4
        %v2498 = vshll.u32 %v2461, 16
        %v2500 = vrot.slane %v2498, 5
        %v2501 = vor.u32 %v2497, %v2500
        %v2502 = vrot.slane %v2501, 4
        %v2504 = vshll.u32 %v2462, 16
        %v2506 = vrot.slane %v2504, 5
        %v2507 = vsel %vm871, %v2502, %v2506
        %v2508 = vshrl.u32 %v2462, 16
        %v2510 = vrot.slane %v2508, 4
        %v2511 = vor.u32 %v2510, %v2506
        %v2512 = vrot.slane %v2511, 4
        %v2514 = vshll.u32 %v2463, 16
        %v2516 = vrot.slane %v2514, 5
        %v2517 = vsel %vm871, %v2512, %v2516
        %v2518 = vshrl.u32 %v2463, 16
        %v2520 = vrot.slane %v2518, 4
        %v2521 = vor.u32 %v2520, %v2516
        %v2522 = vrot.slane %v2521, 4
        %v2524 = vshll.u32 %v2464, 16
        %v2526 = vrot.slane %v2524, 5
        %v2527 = vsel %vm871, %v2522, %v2526
        %v2528 = vshrl.u32 %v2464, 16
        %v2530 = vrot.slane %v2528, 4
        %v2531 = vor.u32 %v2530, %v2526
        %v2532 = vrot.slane %v2531, 4
        %v2534 = vshll.u32 %v2465, 16
        %v2536 = vrot.slane %v2534, 5
        %v2537 = vsel %vm871, %v2532, %v2536
        %v2538 = vshrl.u32 %v2465, 16
        %v2540 = vrot.slane %v2538, 4
        %v2541 = vor.u32 %v2540, %v2536
        %v2542 = vrot.slane %v2541, 4
        %v2544 = vshll.u32 %v2466, 16
        %v2546 = vrot.slane %v2544, 5
        %v2547 = vsel %vm871, %v2542, %v2546
        %v2548 = vshrl.u32 %v2466, 16
        %v2550 = vrot.slane %v2548, 4
        %v2551 = vor.u32 %v2550, %v2546
        %v2552 = vrot.slane %v2551, 4
        %v2554 = vshll.u32 %v2467, 16
        %v2556 = vrot.slane %v2554, 5
        %v2557 = vsel %vm871, %v2552, %v2556
        %v2558 = vshrl.u32 %v2467, 16
        %v2560 = vrot.slane %v2558, 4
        %v2561 = vor.u32 %v2560, %v2556
        %v2562 = vrot.slane %v2561, 4
        %v2564 = vshll.u32 %v2468, 16
        %v2566 = vrot.slane %v2564, 5
        %v2567 = vsel %vm871, %v2562, %v2566
        %v2568 = vshrl.u32 %v2468, 16
        %v2570 = vrot.slane %v2568, 4
        %v2571 = vor.u32 %v2570, %v2566
        %v2572 = vrot.slane %v2571, 4
        %v2574 = vshll.u32 %v2469, 16
        %v2576 = vrot.slane %v2574, 5
        %v2577 = vsel %vm871, %v2572, %v2576
        %v2578 = vshrl.u32 %v2469, 16
        %v2580 = vrot.slane %v2578, 4
        %v2581 = vor.u32 %v2580, %v2576
        %v2582 = vrot.slane %v2581, 4
        %v2584 = vshll.u32 %v2470, 16
        %v2586 = vrot.slane %v2584, 5
        %v2587 = vsel %vm871, %v2582, %v2586
        %v2588 = vshrl.u32 %v2470, 16
        %v2590 = vrot.slane %v2588, 4
        %v2591 = vor.u32 %v2590, %v2586
        %v2592 = vrot.slane %v2591, 4
        %v2594 = vshll.u32 %v2471, 16
        %v2596 = vrot.slane %v2594, 5
        %v2597 = vsel %vm871, %v2592, %v2596
        %v2598 = vshrl.u32 %v2471, 16
        %v2600 = vrot.slane %v2598, 4
        %v2601 = vor.u32 %v2600, %v2596
        %v2602 = vrot.slane %v2601, 4
        %v2604 = vshll.u32 %v2472, 16
        %v2606 = vrot.slane %v2604, 5
        %v2607 = vsel %vm871, %v2602, %v2606
        %v2608 = vshrl.u32 %v2472, 16
        %v2610 = vrot.slane %v2608, 4
        %v2611 = vor.u32 %v2610, %v2606
        %v2612 = vrot.slane %v2611, 4
        %v2614 = vshll.u32 %v2473, 16
        %v2616 = vrot.slane %v2614, 5
        %v2617 = vsel %vm871, %v2612, %v2616
        %v2618 = vshrl.u32 %v2473, 16
        %v2620 = vrot.slane %v2618, 4
        %v2621 = vor.u32 %v2620, %v2616
        %v2622 = vrot.slane %v2621, 4
        %v2624 = vshll.u32 %v2474, 16
        %v2626 = vrot.slane %v2624, 5
        %v2627 = vsel %vm871, %v2622, %v2626
        %v2628 = vshrl.u32 %v2474, 16
        %v2630 = vrot.slane %v2628, 4
        %v2631 = vor.u32 %v2630, %v2626
        %v2632 = vrot.slane %v2631, 4
        %v2634 = vshll.u32 %v2475, 16
        %v2636 = vrot.slane %v2634, 5
        %v2637 = vsel %vm871, %v2632, %v2636
        %v2638 = vshrl.u32 %v2475, 16
        %v2640 = vrot.slane %v2638, 4
        %v2641 = vor.u32 %v2640, %v2636
        %v2642 = vrot.slane %v2641, 4
        %v2644 = vshll.u32 %v2476, 16
        %v2646 = vrot.slane %v2644, 5
        %v2647 = vsel %vm871, %v2642, %v2646
        %v2648 = vshrl.u32 %v2476, 16
        %v2650 = vrot.slane %v2648, 4
        %v2651 = vor.u32 %v2650, %v2646
        %v2652 = vrot.slane %v2651, 4
        %v2654 = vshll.u32 %v2477, 16
        %v2656 = vrot.slane %v2654, 5
        %v2657 = vsel %vm871, %v2652, %v2656
        %v2658 = vshrl.u32 %v2477, 16
        %v2660 = vrot.slane %v2658, 4
        %v2661 = vor.u32 %v2660, %v2656
        %v2662 = vrot.slane %v2661, 4
        %v2664 = vshll.u32 %v2478, 16
        %v2666 = vrot.slane %v2664, 5
        %v2667 = vsel %vm871, %v2662, %v2666
        %v2668 = vshrl.u32 %v2478, 16
        %v2670 = vrot.slane %v2668, 4
        %v2671 = vor.u32 %v2670, %v2666
        %v2672 = vrot.slane %v2671, 4
        %v2674 = vshll.u32 %v2479, 16
        %v2676 = vrot.slane %v2674, 5
        %v2677 = vsel %vm871, %v2672, %v2676
        %v2678 = vshrl.u32 %v2479, 16
        %v2680 = vrot.slane %v2678, 4
        %v2681 = vor.u32 %v2680, %v2676
        %v2682 = vrot.slane %v2681, 4
        %v2684 = vshll.u32 %v2480, 16
        %v2686 = vrot.slane %v2684, 5
        %v2687 = vsel %vm871, %v2682, %v2686
        %v2688 = vshrl.u32 %v2480, 16
        %v2690 = vrot.slane %v2688, 4
        %v2691 = vor.u32 %v2690, %v2686
        %v2692 = vrot.slane %v2691, 4
        %v2694 = vshll.u32 %v2481, 16
        %v2696 = vrot.slane %v2694, 5
        %v2697 = vsel %vm871, %v2692, %v2696
        %v2698 = vshrl.u32 %v2481, 16
        %v2700 = vrot.slane %v2698, 4
        %v2701 = vor.u32 %v2700, %v2696
        %v2702 = vrot.slane %v2701, 4
        %v2704 = vshll.u32 %v2482, 16
        %v2706 = vrot.slane %v2704, 5
        %v2707 = vsel %vm871, %v2702, %v2706
        %v2708 = vshrl.u32 %v2482, 16
        %v2710 = vrot.slane %v2708, 4
        %v2711 = vor.u32 %v2710, %v2706
        %v2712 = vrot.slane %v2711, 4
        %v2714 = vshll.u32 %v2483, 16
        %v2716 = vrot.slane %v2714, 5
        %v2717 = vsel %vm871, %v2712, %v2716
        %v2718 = vshrl.u32 %v2483, 16
        %v2720 = vrot.slane %v2718, 4
        %v2721 = vor.u32 %v2720, %v2716
        %v2722 = vrot.slane %v2721, 4
        %v2724 = vshll.u32 %v2484, 16
        %v2726 = vrot.slane %v2724, 5
        %v2727 = vsel %vm871, %v2722, %v2726
        %v2728 = vshrl.u32 %v2484, 16
        %v2730 = vrot.slane %v2728, 4
        %v2731 = vor.u32 %v2730, %v2726
        %v2732 = vrot.slane %v2731, 4
        %v2734 = vshll.u32 %v2485, 16
        %v2736 = vrot.slane %v2734, 5
        %v2737 = vsel %vm871, %v2732, %v2736
        %v2738 = vshrl.u32 %v2485, 16
        %v2740 = vrot.slane %v2738, 4
        %v2741 = vor.u32 %v2740, %v2736
        %v2742 = vrot.slane %v2741, 4
        %v2744 = vshll.u32 %v2486, 16
        %v2746 = vrot.slane %v2744, 5
        %v2747 = vsel %vm871, %v2742, %v2746
        %v2748 = vshrl.u32 %v2486, 16
        %v2750 = vrot.slane %v2748, 4
        %v2751 = vor.u32 %v2750, %v2746
        %v2752 = vrot.slane %v2751, 4
        %v2754 = vshll.u32 %v2487, 16
        %v2756 = vrot.slane %v2754, 5
        %v2757 = vsel %vm871, %v2752, %v2756
        %v2758 = vshrl.u32 %v2487, 16
        %v2760 = vrot.slane %v2758, 4
        %v2761 = vor.u32 %v2760, %v2756
        %v2762 = vrot.slane %v2761, 4
        %v2764 = vshll.u32 %v2488, 16
        %v2766 = vrot.slane %v2764, 5
        %v2767 = vsel %vm871, %v2762, %v2766
        %v2768 = vshrl.u32 %v2488, 16
        %v2770 = vrot.slane %v2768, 4
        %v2771 = vor.u32 %v2770, %v2766
        %v2772 = vrot.slane %v2771, 4
        %v2774 = vshll.u32 %v2489, 16
        %v2776 = vrot.slane %v2774, 5
        %v2777 = vsel %vm871, %v2772, %v2776
        %v2778 = vshrl.u32 %v2489, 16
        %v2780 = vrot.slane %v2778, 4
        %v2781 = vor.u32 %v2780, %v2776
        %v2782 = vrot.slane %v2781, 4
        %v2784 = vshll.u32 %v2490, 16
        %v2786 = vrot.slane %v2784, 5
        %v2787 = vsel %vm871, %v2782, %v2786
        %v2788 = vshrl.u32 %v2490, 16
        %v2790 = vrot.slane %v2788, 4
        %v2791 = vor.u32 %v2790, %v2786
        %v2792 = vrot.slane %v2791, 4
        %v2794 = vshll.u32 %v2491, 16
        %v2796 = vrot.slane %v2794, 5
        %v2797 = vsel %vm871, %v2792, %v2796
        %v2798 = vshrl.u32 %v2491, 16
        %v2800 = vrot.slane %v2798, 4
        %v2801 = vor.u32 %v2800, %v2796
        %v2802 = vrot.slane %v2801, 4
        %v2804 = vshll.u32 %v2492, 16
        %v2806 = vrot.slane %v2804, 5
        %v2807 = vsel %vm871, %v2802, %v2806
        %v2808 = vshrl.u32 %v2492, 16
        %v2810 = vrot.slane %v2808, 4
        %v2811 = vor.u32 %v2810, %v2806
        %v2812 = vrot.slane %v2811, 4
        %v2814 = vshll.u32 %v2493, 16
        %v2816 = vrot.slane %v2814, 5
        %v2817 = vsel %vm871, %v2812, %v2816
        %s2850 = scalar_lea.vmem [#allocation2], 288
        %2851 = vst [vmem:[%s2850 + $0x8] sm:$0xf] %v2507
        %2852 = vst [vmem:[%s2850 + $0xc] sm:$0xf] %v2517
        %2853 = vst [vmem:[%s2850 + $0x10] sm:$0xf] %v2527
        %2854 = vst [vmem:[%s2850 + $0x14] sm:$0xf] %v2537
        %2855 = vst [vmem:[%s2850 + $0x18] sm:$0xf] %v2547
        %2856 = vst [vmem:[%s2850 + $0x1c] sm:$0xf] %v2557
        %2857 = vst [vmem:[%s2850 + $0x20] sm:$0xf] %v2567
        %2858 = vst [vmem:[%s2850 + $0x24] sm:$0xf] %v2577
        %2859 = vst [vmem:[%s2850 + $0x28] sm:$0xf] %v2587
        %2860 = vst [vmem:[%s2850 + $0x2c] sm:$0xf] %v2597
        %2861 = vst [vmem:[%s2850 + $0x30] sm:$0xf] %v2607
        %2862 = vst [vmem:[%s2850 + $0x34] sm:$0xf] %v2617
        %2863 = vst [vmem:[%s2850 + $0x38] sm:$0xf] %v2627
        %2864 = vst [vmem:[%s2850 + $0x3c] sm:$0xf] %v2637
        %2865 = vst [vmem:[%s2850 + $0x40] sm:$0xf] %v2647
        %2866 = vst [vmem:[%s2850 + $0x44] sm:$0xf] %v2657
        %2867 = vst [vmem:[%s2850 + $0x48] sm:$0xf] %v2667
        %2868 = vst [vmem:[%s2850 + $0x4c] sm:$0xf] %v2677
        %2869 = vst [vmem:[%s2850 + $0x50] sm:$0xf] %v2687
        %2870 = vst [vmem:[%s2850 + $0x54] sm:$0xf] %v2697
        %2871 = vst [vmem:[%s2850 + $0x58] sm:$0xf] %v2707
        %2872 = vst [vmem:[%s2850 + $0x5c] sm:$0xf] %v2717
        %2873 = vst [vmem:[%s2850 + $0x60] sm:$0xf] %v2727
        %2874 = vst [vmem:[%s2850 + $0x64] sm:$0xf] %v2737
        %2875 = vst [vmem:[%s2850 + $0x68] sm:$0xf] %v2747
        %2876 = vst [vmem:[%s2850 + $0x6c] sm:$0xf] %v2757
        %2877 = vst [vmem:[%s2850 + $0x70] sm:$0xf] %v2767
        %2878 = vst [vmem:[%s2850 + $0x74] sm:$0xf] %v2777
        %2879 = vst [vmem:[%s2850 + $0x78] sm:$0xf] %v2787
        %2880 = vst [vmem:[%s2850 + $0x7c] sm:$0xf] %v2797
        %2881 = vst [vmem:[%s2850 + $0x80] sm:$0xf] %v2807
        %2882 = vst [vmem:[%s2850 + $0x84] sm:$0xf] %v2817
        %v2883 = vld [vmem:[%s242] sm:$0x1]
        %v2884 = vld [vmem:[#allocation2] sm:$0xf]
        %v2885 = vld [vmem:[#allocation2 + $0x4] sm:$0xf]
        %v2886 = vld [vmem:[#allocation2 + $0x8] sm:$0xf]
        %v2887 = vld [vmem:[#allocation2 + $0xc] sm:$0xf]
        %v2888 = vld [vmem:[#allocation2 + $0x10] sm:$0xf]
        %v2889 = vld [vmem:[#allocation2 + $0x14] sm:$0xf]
        %v2890 = vld [vmem:[#allocation2 + $0x18] sm:$0xf]
        %v2891 = vld [vmem:[#allocation2 + $0x1c] sm:$0xf]
        %v2892 = vld [vmem:[#allocation2 + $0x20] sm:$0xf]
        %v2893 = vld [vmem:[#allocation2 + $0x24] sm:$0xf]
        %v2894 = vld [vmem:[#allocation2 + $0x28] sm:$0xf]
        %v2895 = vld [vmem:[#allocation2 + $0x2c] sm:$0xf]
        %v2896 = vld [vmem:[#allocation2 + $0x30] sm:$0xf]
        %v2897 = vld [vmem:[#allocation2 + $0x34] sm:$0xf]
        %v2898 = vld [vmem:[#allocation2 + $0x38] sm:$0xf]
        %v2899 = vld [vmem:[#allocation2 + $0x3c] sm:$0xf]
        %v2900 = vld [vmem:[#allocation2 + $0x40] sm:$0xf]
        %v2901 = vld [vmem:[#allocation2 + $0x44] sm:$0xf]
        %v2902 = vld [vmem:[#allocation2 + $0x48] sm:$0xf]
        %v2903 = vld [vmem:[#allocation2 + $0x4c] sm:$0xf]
        %v2904 = vld [vmem:[#allocation2 + $0x50] sm:$0xf]
        %v2905 = vld [vmem:[#allocation2 + $0x54] sm:$0xf]
        %v2906 = vld [vmem:[#allocation2 + $0x58] sm:$0xf]
        %v2907 = vld [vmem:[#allocation2 + $0x5c] sm:$0xf]
        %v2908 = vld [vmem:[#allocation2 + $0x60] sm:$0xf]
        %v2909 = vld [vmem:[#allocation2 + $0x64] sm:$0xf]
        %v2910 = vld [vmem:[#allocation2 + $0x68] sm:$0xf]
        %v2911 = vld [vmem:[#allocation2 + $0x6c] sm:$0xf]
        %v2912 = vld [vmem:[#allocation2 + $0x70] sm:$0xf]
        %v2913 = vld [vmem:[#allocation2 + $0x74] sm:$0xf]
        %v2914 = vld [vmem:[#allocation2 + $0x78] sm:$0xf]
        %v2915 = vld [vmem:[#allocation2 + $0x7c] sm:$0xf]
        %v2916 = vld [vmem:[#allocation6] sm:$0xf]
        %v2917 = vld [vmem:[#allocation6 + $0x4] sm:$0xf]
        %v2918 = vld [vmem:[#allocation6 + $0x8] sm:$0xf]
        %v2919 = vld [vmem:[#allocation6 + $0xc] sm:$0xf]
        %v2920 = vld [vmem:[#allocation6 + $0x10] sm:$0xf]
        %v2921 = vld [vmem:[#allocation6 + $0x14] sm:$0xf]
        %v2922 = vld [vmem:[#allocation6 + $0x18] sm:$0xf]
        %v2923 = vld [vmem:[#allocation6 + $0x1c] sm:$0xf]
        %v2924 = vld [vmem:[#allocation6 + $0x20] sm:$0xf]
        %v2925 = vld [vmem:[#allocation6 + $0x24] sm:$0xf]
        %v2926 = vld [vmem:[#allocation6 + $0x28] sm:$0xf]
        %v2927 = vld [vmem:[#allocation6 + $0x2c] sm:$0xf]
        %v2928 = vld [vmem:[#allocation6 + $0x30] sm:$0xf]
        %v2929 = vld [vmem:[#allocation6 + $0x34] sm:$0xf]
        %v2930 = vld [vmem:[#allocation6 + $0x38] sm:$0xf]
        %v2931 = vld [vmem:[#allocation6 + $0x3c] sm:$0xf]
        %v2932 = vld [vmem:[%s290] sm:$0xf]
        %v2933 = vld [vmem:[%s290 + $0x4] sm:$0xf]
        %v2934 = vld [vmem:[%s290 + $0x8] sm:$0xf]
        %v2935 = vld [vmem:[%s290 + $0xc] sm:$0xf]
        %v2936 = vld [vmem:[%s290 + $0x10] sm:$0xf]
        %v2937 = vld [vmem:[%s290 + $0x14] sm:$0xf]
        %v2938 = vld [vmem:[%s290 + $0x18] sm:$0xf]
        %v2939 = vld [vmem:[%s290 + $0x1c] sm:$0xf]
        %v2940 = vld [vmem:[%s290 + $0x20] sm:$0xf]
        %v2941 = vld [vmem:[%s290 + $0x24] sm:$0xf]
        %v2942 = vld [vmem:[%s290 + $0x28] sm:$0xf]
        %v2943 = vld [vmem:[%s290 + $0x2c] sm:$0xf]
        %v2944 = vld [vmem:[%s290 + $0x30] sm:$0xf]
        %v2945 = vld [vmem:[%s290 + $0x34] sm:$0xf]
        %v2946 = vld [vmem:[%s290 + $0x38] sm:$0xf]
        %v2947 = vld [vmem:[%s290 + $0x3c] sm:$0xf]
        %v2948 = vld [vmem:[%s290 + $0x40] sm:$0xf]
        %v2949 = vld [vmem:[%s290 + $0x44] sm:$0xf]
        %v2950 = vld [vmem:[%s290 + $0x48] sm:$0xf]
        %v2951 = vld [vmem:[%s290 + $0x4c] sm:$0xf]
        %v2952 = vld [vmem:[%s290 + $0x50] sm:$0xf]
        %v2953 = vld [vmem:[%s290 + $0x54] sm:$0xf]
        %v2954 = vld [vmem:[%s290 + $0x58] sm:$0xf]
        %v2955 = vld [vmem:[%s290 + $0x5c] sm:$0xf]
        %v2956 = vld [vmem:[%s290 + $0x60] sm:$0xf]
        %v2957 = vld [vmem:[%s290 + $0x64] sm:$0xf]
        %v2958 = vld [vmem:[%s290 + $0x68] sm:$0xf]
        %v2959 = vld [vmem:[%s290 + $0x6c] sm:$0xf]
        %v2960 = vld [vmem:[%s290 + $0x70] sm:$0xf]
        %v2961 = vld [vmem:[%s290 + $0x74] sm:$0xf]
        %v2962 = vld [vmem:[%s290 + $0x78] sm:$0xf]
        %v2963 = vld [vmem:[%s290 + $0x7c] sm:$0xf]
        %s2964 = scalar_lea.vmem [#allocation6], 64
        %v2965 = vld [vmem:[%s2964] sm:$0xf]
        %v2966 = vld [vmem:[%s2964 + $0x4] sm:$0xf]
        %v2967 = vld [vmem:[%s2964 + $0x8] sm:$0xf]
        %v2968 = vld [vmem:[%s2964 + $0xc] sm:$0xf]
        %v2969 = vld [vmem:[%s2964 + $0x10] sm:$0xf]
        %v2970 = vld [vmem:[%s2964 + $0x14] sm:$0xf]
        %v2971 = vld [vmem:[%s2964 + $0x18] sm:$0xf]
        %v2972 = vld [vmem:[%s2964 + $0x1c] sm:$0xf]
        %v2973 = vld [vmem:[%s2964 + $0x20] sm:$0xf]
        %v2974 = vld [vmem:[%s2964 + $0x24] sm:$0xf]
        %v2975 = vld [vmem:[%s2964 + $0x28] sm:$0xf]
        %v2976 = vld [vmem:[%s2964 + $0x2c] sm:$0xf]
        %v2977 = vld [vmem:[%s2964 + $0x30] sm:$0xf]
        %v2978 = vld [vmem:[%s2964 + $0x34] sm:$0xf]
        %v2979 = vld [vmem:[%s2964 + $0x38] sm:$0xf]
        %v2980 = vld [vmem:[%s2964 + $0x3c] sm:$0xf]
        %v3013 = vunpack.c.l.b16 %v2932
        %v3014 = vunpack.c.l.b16 %v2933
        %v3015 = vunpack.c.l.b16 %v2934
        %v3016 = vunpack.c.l.b16 %v2935
        %v3017 = vunpack.c.l.b16 %v2936
        %v3018 = vunpack.c.l.b16 %v2937
        %v3019 = vunpack.c.l.b16 %v2938
        %v3020 = vunpack.c.l.b16 %v2939
        %v3021 = vunpack.c.l.b16 %v2940
        %v3022 = vunpack.c.l.b16 %v2941
        %v3023 = vunpack.c.l.b16 %v2942
        %v3024 = vunpack.c.l.b16 %v2943
        %v3025 = vunpack.c.l.b16 %v2944
        %v3026 = vunpack.c.l.b16 %v2945
        %v3027 = vunpack.c.l.b16 %v2946
        %v3028 = vunpack.c.l.b16 %v2947
        %v3029 = vunpack.c.l.b16 %v2948
        %v3030 = vunpack.c.l.b16 %v2949
        %v3031 = vunpack.c.l.b16 %v2950
        %v3032 = vunpack.c.l.b16 %v2951
        %v3033 = vunpack.c.l.b16 %v2952
        %v3034 = vunpack.c.l.b16 %v2953
        %v3035 = vunpack.c.l.b16 %v2954
        %v3036 = vunpack.c.l.b16 %v2955
        %v3037 = vunpack.c.l.b16 %v2956
        %v3038 = vunpack.c.l.b16 %v2957
        %v3039 = vunpack.c.l.b16 %v2958
        %v3040 = vunpack.c.l.b16 %v2959
        %v3041 = vunpack.c.l.b16 %v2960
        %v3042 = vunpack.c.l.b16 %v2961
        %v3043 = vunpack.c.l.b16 %v2962
        %v3044 = vunpack.c.l.b16 %v2963
        %v3045 = vpack.c.b16 %v3014, %v3013
        %v3046 = vpack.c.b16 %v3016, %v3015
        %v3047 = vpack.c.b16 %v3018, %v3017
        %v3048 = vpack.c.b16 %v3020, %v3019
        %v3049 = vpack.c.b16 %v3022, %v3021
        %v3050 = vpack.c.b16 %v3024, %v3023
        %v3051 = vpack.c.b16 %v3026, %v3025
        %v3052 = vpack.c.b16 %v3028, %v3027
        %v3053 = vpack.c.b16 %v3030, %v3029
        %v3054 = vpack.c.b16 %v3032, %v3031
        %v3055 = vpack.c.b16 %v3034, %v3033
        %v3056 = vpack.c.b16 %v3036, %v3035
        %v3057 = vpack.c.b16 %v3038, %v3037
        %v3058 = vpack.c.b16 %v3040, %v3039
        %v3059 = vpack.c.b16 %v3042, %v3041
        %v3060 = vpack.c.b16 %v3044, %v3043
        %v3093 = vunpack.c.l.b16 %v2965
        %v3094 = vunpack.c.l.b16 %v2966
        %v3095 = vunpack.c.l.b16 %v2967
        %v3096 = vunpack.c.l.b16 %v2968
        %v3097 = vunpack.c.l.b16 %v2969
        %v3098 = vunpack.c.l.b16 %v2970
        %v3099 = vunpack.c.l.b16 %v2971
        %v3100 = vunpack.c.l.b16 %v2972
        %v3101 = vunpack.c.l.b16 %v2973
        %v3102 = vunpack.c.l.b16 %v2974
        %v3103 = vunpack.c.l.b16 %v2975
        %v3104 = vunpack.c.l.b16 %v2976
        %v3105 = vunpack.c.l.b16 %v2977
        %v3106 = vunpack.c.l.b16 %v2978
        %v3107 = vunpack.c.l.b16 %v2979
        %v3108 = vunpack.c.l.b16 %v2980
        %v3109 = vpack.c.b16 %v3094, %v3093
        %v3110 = vpack.c.b16 %v3096, %v3095
        %v3111 = vpack.c.b16 %v3098, %v3097
        %v3112 = vpack.c.b16 %v3100, %v3099
        %v3113 = vpack.c.b16 %v3102, %v3101
        %v3114 = vpack.c.b16 %v3104, %v3103
        %v3115 = vpack.c.b16 %v3106, %v3105
        %v3116 = vpack.c.b16 %v3108, %v3107
        %3125 = vmatpush.bf16.msra.mxu0 %v3116
        %3126 = vmatpush.bf16.msra.mxu0 %v3115
        %3127 = vmatpush.bf16.msra.mxu0 %v3114
        %3128 = vmatpush.bf16.msra.mxu0 %v3113
        %3129 = vmatpush.bf16.msra.mxu0 %v3112
        %3130 = vmatpush.bf16.msra.mxu0 %v3111
        %3131 = vmatpush.bf16.msra.mxu0 %v3110
        %3132 = vmatpush.bf16.msra.mxu0 %v3109
        %3133 = vmatmul.bf16.gmra.mxu0 %v3045
        %v3134 = vpop.f32.mrf.mxu0
        %v3135 = vadd.f32 0.0, %v3134
        %v3136 = vpop.f32.mrf.mxu0
        %v3137 = vadd.f32 0.0, %v3136
        %3138 = vmatmul.bf16.gmra.mxu0 %v3046
        %v3139 = vpop.f32.mrf.mxu0
        %v3140 = vadd.f32 0.0, %v3139
        %v3141 = vpop.f32.mrf.mxu0
        %v3142 = vadd.f32 0.0, %v3141
        %3143 = vmatmul.bf16.gmra.mxu0 %v3047
        %v3144 = vpop.f32.mrf.mxu0
        %v3145 = vadd.f32 0.0, %v3144
        %v3146 = vpop.f32.mrf.mxu0
        %v3147 = vadd.f32 0.0, %v3146
        %3148 = vmatmul.bf16.gmra.mxu0 %v3048
        %v3149 = vpop.f32.mrf.mxu0
        %v3150 = vadd.f32 0.0, %v3149
        %v3151 = vpop.f32.mrf.mxu0
        %v3152 = vadd.f32 0.0, %v3151
        %3153 = vmatmul.bf16.gmra.mxu0 %v3049
        %v3154 = vpop.f32.mrf.mxu0
        %v3155 = vadd.f32 0.0, %v3154
        %v3156 = vpop.f32.mrf.mxu0
        %v3157 = vadd.f32 0.0, %v3156
        %3158 = vmatmul.bf16.gmra.mxu0 %v3050
        %v3159 = vpop.f32.mrf.mxu0
        %v3160 = vadd.f32 0.0, %v3159
        %v3161 = vpop.f32.mrf.mxu0
        %v3162 = vadd.f32 0.0, %v3161
        %3163 = vmatmul.bf16.gmra.mxu0 %v3051
        %v3164 = vpop.f32.mrf.mxu0
        %v3165 = vadd.f32 0.0, %v3164
        %v3166 = vpop.f32.mrf.mxu0
        %v3167 = vadd.f32 0.0, %v3166
        %3168 = vmatmul.bf16.gmra.mxu0 %v3052
        %v3169 = vpop.f32.mrf.mxu0
        %v3170 = vadd.f32 0.0, %v3169
        %v3171 = vpop.f32.mrf.mxu0
        %v3172 = vadd.f32 0.0, %v3171
        %3173 = vmatmul.bf16.gmra.mxu0 %v3053
        %v3174 = vpop.f32.mrf.mxu0
        %v3175 = vadd.f32 0.0, %v3174
        %v3176 = vpop.f32.mrf.mxu0
        %v3177 = vadd.f32 0.0, %v3176
        %3178 = vmatmul.bf16.gmra.mxu0 %v3054
        %v3179 = vpop.f32.mrf.mxu0
        %v3180 = vadd.f32 0.0, %v3179
        %v3181 = vpop.f32.mrf.mxu0
        %v3182 = vadd.f32 0.0, %v3181
        %3183 = vmatmul.bf16.gmra.mxu0 %v3055
        %v3184 = vpop.f32.mrf.mxu0
        %v3185 = vadd.f32 0.0, %v3184
        %v3186 = vpop.f32.mrf.mxu0
        %v3187 = vadd.f32 0.0, %v3186
        %3188 = vmatmul.bf16.gmra.mxu0 %v3056
        %v3189 = vpop.f32.mrf.mxu0
        %v3190 = vadd.f32 0.0, %v3189
        %v3191 = vpop.f32.mrf.mxu0
        %v3192 = vadd.f32 0.0, %v3191
        %3193 = vmatmul.bf16.gmra.mxu0 %v3057
        %v3194 = vpop.f32.mrf.mxu0
        %v3195 = vadd.f32 0.0, %v3194
        %v3196 = vpop.f32.mrf.mxu0
        %v3197 = vadd.f32 0.0, %v3196
        %3198 = vmatmul.bf16.gmra.mxu0 %v3058
        %v3199 = vpop.f32.mrf.mxu0
        %v3200 = vadd.f32 0.0, %v3199
        %v3201 = vpop.f32.mrf.mxu0
        %v3202 = vadd.f32 0.0, %v3201
        %3203 = vmatmul.bf16.gmra.mxu0 %v3059
        %v3204 = vpop.f32.mrf.mxu0
        %v3205 = vadd.f32 0.0, %v3204
        %v3206 = vpop.f32.mrf.mxu0
        %v3207 = vadd.f32 0.0, %v3206
        %3208 = vmatmul.bf16.gmra.mxu0 %v3060
        %v3209 = vpop.f32.mrf.mxu0
        %v3210 = vadd.f32 0.0, %v3209
        %v3211 = vpop.f32.mrf.mxu0
        %v3212 = vadd.f32 0.0, %v3211
        %3213 = vdwg.mxu0
        %v3246 = vunpack.c.l.b16 %v2884
        %v3247 = vunpack.c.l.b16 %v2885
        %v3248 = vunpack.c.l.b16 %v2886
        %v3249 = vunpack.c.l.b16 %v2887
        %v3250 = vunpack.c.l.b16 %v2888
        %v3251 = vunpack.c.l.b16 %v2889
        %v3252 = vunpack.c.l.b16 %v2890
        %v3253 = vunpack.c.l.b16 %v2891
        %v3254 = vunpack.c.l.b16 %v2892
        %v3255 = vunpack.c.l.b16 %v2893
        %v3256 = vunpack.c.l.b16 %v2894
        %v3257 = vunpack.c.l.b16 %v2895
        %v3258 = vunpack.c.l.b16 %v2896
        %v3259 = vunpack.c.l.b16 %v2897
        %v3260 = vunpack.c.l.b16 %v2898
        %v3261 = vunpack.c.l.b16 %v2899
        %v3262 = vunpack.c.l.b16 %v2900
        %v3263 = vunpack.c.l.b16 %v2901
        %v3264 = vunpack.c.l.b16 %v2902
        %v3265 = vunpack.c.l.b16 %v2903
        %v3266 = vunpack.c.l.b16 %v2904
        %v3267 = vunpack.c.l.b16 %v2905
        %v3268 = vunpack.c.l.b16 %v2906
        %v3269 = vunpack.c.l.b16 %v2907
        %v3270 = vunpack.c.l.b16 %v2908
        %v3271 = vunpack.c.l.b16 %v2909
        %v3272 = vunpack.c.l.b16 %v2910
        %v3273 = vunpack.c.l.b16 %v2911
        %v3274 = vunpack.c.l.b16 %v2912
        %v3275 = vunpack.c.l.b16 %v2913
        %v3276 = vunpack.c.l.b16 %v2914
        %v3277 = vunpack.c.l.b16 %v2915
        %v3278 = vpack.c.b16 %v3247, %v3246
        %v3279 = vpack.c.b16 %v3249, %v3248
        %v3280 = vpack.c.b16 %v3251, %v3250
        %v3281 = vpack.c.b16 %v3253, %v3252
        %v3282 = vpack.c.b16 %v3255, %v3254
        %v3283 = vpack.c.b16 %v3257, %v3256
        %v3284 = vpack.c.b16 %v3259, %v3258
        %v3285 = vpack.c.b16 %v3261, %v3260
        %v3286 = vpack.c.b16 %v3263, %v3262
        %v3287 = vpack.c.b16 %v3265, %v3264
        %v3288 = vpack.c.b16 %v3267, %v3266
        %v3289 = vpack.c.b16 %v3269, %v3268
        %v3290 = vpack.c.b16 %v3271, %v3270
        %v3291 = vpack.c.b16 %v3273, %v3272
        %v3292 = vpack.c.b16 %v3275, %v3274
        %v3293 = vpack.c.b16 %v3277, %v3276
        %v3326 = vunpack.c.l.b16 %v2916
        %v3327 = vunpack.c.l.b16 %v2917
        %v3328 = vunpack.c.l.b16 %v2918
        %v3329 = vunpack.c.l.b16 %v2919
        %v3330 = vunpack.c.l.b16 %v2920
        %v3331 = vunpack.c.l.b16 %v2921
        %v3332 = vunpack.c.l.b16 %v2922
        %v3333 = vunpack.c.l.b16 %v2923
        %v3334 = vunpack.c.l.b16 %v2924
        %v3335 = vunpack.c.l.b16 %v2925
        %v3336 = vunpack.c.l.b16 %v2926
        %v3337 = vunpack.c.l.b16 %v2927
        %v3338 = vunpack.c.l.b16 %v2928
        %v3339 = vunpack.c.l.b16 %v2929
        %v3340 = vunpack.c.l.b16 %v2930
        %v3341 = vunpack.c.l.b16 %v2931
        %v3342 = vpack.c.b16 %v3327, %v3326
        %v3343 = vpack.c.b16 %v3329, %v3328
        %v3344 = vpack.c.b16 %v3331, %v3330
        %v3345 = vpack.c.b16 %v3333, %v3332
        %v3346 = vpack.c.b16 %v3335, %v3334
        %v3347 = vpack.c.b16 %v3337, %v3336
        %v3348 = vpack.c.b16 %v3339, %v3338
        %v3349 = vpack.c.b16 %v3341, %v3340
        %3358 = vmatpush.bf16.msra.mxu0 %v3349
        %3359 = vmatpush.bf16.msra.mxu0 %v3348
        %3360 = vmatpush.bf16.msra.mxu0 %v3347
        %3361 = vmatpush.bf16.msra.mxu0 %v3346
        %3362 = vmatpush.bf16.msra.mxu0 %v3345
        %3363 = vmatpush.bf16.msra.mxu0 %v3344
        %3364 = vmatpush.bf16.msra.mxu0 %v3343
        %3365 = vmatpush.bf16.msra.mxu0 %v3342
        %3366 = vmatmul.bf16.gmra.mxu0 %v3278
        %v3367 = vpop.f32.mrf.mxu0
        %v3368 = vadd.f32 %v3135, %v3367
        %v3369 = vpop.f32.mrf.mxu0
        %v3370 = vadd.f32 %v3137, %v3369
        %3371 = vmatmul.bf16.gmra.mxu0 %v3279
        %v3372 = vpop.f32.mrf.mxu0
        %v3373 = vadd.f32 %v3140, %v3372
        %v3374 = vpop.f32.mrf.mxu0
        %v3375 = vadd.f32 %v3142, %v3374
        %3376 = vmatmul.bf16.gmra.mxu0 %v3280
        %v3377 = vpop.f32.mrf.mxu0
        %v3378 = vadd.f32 %v3145, %v3377
        %v3379 = vpop.f32.mrf.mxu0
        %v3380 = vadd.f32 %v3147, %v3379
        %3381 = vmatmul.bf16.gmra.mxu0 %v3281
        %v3382 = vpop.f32.mrf.mxu0
        %v3383 = vadd.f32 %v3150, %v3382
        %v3384 = vpop.f32.mrf.mxu0
        %v3385 = vadd.f32 %v3152, %v3384
        %3386 = vmatmul.bf16.gmra.mxu0 %v3282
        %v3387 = vpop.f32.mrf.mxu0
        %v3388 = vadd.f32 %v3155, %v3387
        %v3389 = vpop.f32.mrf.mxu0
        %v3390 = vadd.f32 %v3157, %v3389
        %3391 = vmatmul.bf16.gmra.mxu0 %v3283
        %v3392 = vpop.f32.mrf.mxu0
        %v3393 = vadd.f32 %v3160, %v3392
        %v3394 = vpop.f32.mrf.mxu0
        %v3395 = vadd.f32 %v3162, %v3394
        %3396 = vmatmul.bf16.gmra.mxu0 %v3284
        %v3397 = vpop.f32.mrf.mxu0
        %v3398 = vadd.f32 %v3165, %v3397
        %v3399 = vpop.f32.mrf.mxu0
        %v3400 = vadd.f32 %v3167, %v3399
        %3401 = vmatmul.bf16.gmra.mxu0 %v3285
        %v3402 = vpop.f32.mrf.mxu0
        %v3403 = vadd.f32 %v3170, %v3402
        %v3404 = vpop.f32.mrf.mxu0
        %v3405 = vadd.f32 %v3172, %v3404
        %3406 = vmatmul.bf16.gmra.mxu0 %v3286
        %v3407 = vpop.f32.mrf.mxu0
        %v3408 = vadd.f32 %v3175, %v3407
        %v3409 = vpop.f32.mrf.mxu0
        %v3410 = vadd.f32 %v3177, %v3409
        %3411 = vmatmul.bf16.gmra.mxu0 %v3287
        %v3412 = vpop.f32.mrf.mxu0
        %v3413 = vadd.f32 %v3180, %v3412
        %v3414 = vpop.f32.mrf.mxu0
        %v3415 = vadd.f32 %v3182, %v3414
        %3416 = vmatmul.bf16.gmra.mxu0 %v3288
        %v3417 = vpop.f32.mrf.mxu0
        %v3418 = vadd.f32 %v3185, %v3417
        %v3419 = vpop.f32.mrf.mxu0
        %v3420 = vadd.f32 %v3187, %v3419
        %3421 = vmatmul.bf16.gmra.mxu0 %v3289
        %v3422 = vpop.f32.mrf.mxu0
        %v3423 = vadd.f32 %v3190, %v3422
        %v3424 = vpop.f32.mrf.mxu0
        %v3425 = vadd.f32 %v3192, %v3424
        %3426 = vmatmul.bf16.gmra.mxu0 %v3290
        %v3427 = vpop.f32.mrf.mxu0
        %v3428 = vadd.f32 %v3195, %v3427
        %v3429 = vpop.f32.mrf.mxu0
        %v3430 = vadd.f32 %v3197, %v3429
        %3431 = vmatmul.bf16.gmra.mxu0 %v3291
        %v3432 = vpop.f32.mrf.mxu0
        %v3433 = vadd.f32 %v3200, %v3432
        %v3434 = vpop.f32.mrf.mxu0
        %v3435 = vadd.f32 %v3202, %v3434
        %3436 = vmatmul.bf16.gmra.mxu0 %v3292
        %v3437 = vpop.f32.mrf.mxu0
        %v3438 = vadd.f32 %v3205, %v3437
        %v3439 = vpop.f32.mrf.mxu0
        %v3440 = vadd.f32 %v3207, %v3439
        %3441 = vmatmul.bf16.gmra.mxu0 %v3293
        %v3442 = vpop.f32.mrf.mxu0
        %v3443 = vadd.f32 %v3210, %v3442
        %v3444 = vpop.f32.mrf.mxu0
        %v3445 = vadd.f32 %v3212, %v3444
        %3446 = vdwg.mxu0
        %v3447 = vld [vmem:[%s2850] sm:$0xf]
        %v3448 = vld [vmem:[%s2850 + $0x4] sm:$0xf]
        %v3449 = vld [vmem:[%s2850 + $0x8] sm:$0xf]
        %v3450 = vld [vmem:[%s2850 + $0xc] sm:$0xf]
        %v3451 = vld [vmem:[%s2850 + $0x10] sm:$0xf]
        %v3452 = vld [vmem:[%s2850 + $0x14] sm:$0xf]
        %v3453 = vld [vmem:[%s2850 + $0x18] sm:$0xf]
        %v3454 = vld [vmem:[%s2850 + $0x1c] sm:$0xf]
        %v3455 = vld [vmem:[%s2850 + $0x20] sm:$0xf]
        %v3456 = vld [vmem:[%s2850 + $0x24] sm:$0xf]
        %v3457 = vld [vmem:[%s2850 + $0x28] sm:$0xf]
        %v3458 = vld [vmem:[%s2850 + $0x2c] sm:$0xf]
        %v3459 = vld [vmem:[%s2850 + $0x30] sm:$0xf]
        %v3460 = vld [vmem:[%s2850 + $0x34] sm:$0xf]
        %v3461 = vld [vmem:[%s2850 + $0x38] sm:$0xf]
        %v3462 = vld [vmem:[%s2850 + $0x3c] sm:$0xf]
        %v3463 = vld [vmem:[%s2850 + $0x40] sm:$0xf]
        %v3464 = vld [vmem:[%s2850 + $0x44] sm:$0xf]
        %v3465 = vld [vmem:[%s2850 + $0x48] sm:$0xf]
        %v3466 = vld [vmem:[%s2850 + $0x4c] sm:$0xf]
        %v3467 = vld [vmem:[%s2850 + $0x50] sm:$0xf]
        %v3468 = vld [vmem:[%s2850 + $0x54] sm:$0xf]
        %v3469 = vld [vmem:[%s2850 + $0x58] sm:$0xf]
        %v3470 = vld [vmem:[%s2850 + $0x5c] sm:$0xf]
        %v3471 = vld [vmem:[%s2850 + $0x60] sm:$0xf]
        %v3472 = vld [vmem:[%s2850 + $0x64] sm:$0xf]
        %v3473 = vld [vmem:[%s2850 + $0x68] sm:$0xf]
        %v3474 = vld [vmem:[%s2850 + $0x6c] sm:$0xf]
        %v3475 = vld [vmem:[%s2850 + $0x70] sm:$0xf]
        %v3476 = vld [vmem:[%s2850 + $0x74] sm:$0xf]
        %v3477 = vld [vmem:[%s2850 + $0x78] sm:$0xf]
        %v3478 = vld [vmem:[%s2850 + $0x7c] sm:$0xf]
        %s3479 = scalar_lea.vmem [#allocation6], 128
        %v3480 = vld [vmem:[%s3479] sm:$0xf]
        %v3481 = vld [vmem:[%s3479 + $0x4] sm:$0xf]
        %v3482 = vld [vmem:[%s3479 + $0x8] sm:$0xf]
        %v3483 = vld [vmem:[%s3479 + $0xc] sm:$0xf]
        %v3484 = vld [vmem:[%s3479 + $0x10] sm:$0xf]
        %v3485 = vld [vmem:[%s3479 + $0x14] sm:$0xf]
        %v3486 = vld [vmem:[%s3479 + $0x18] sm:$0xf]
        %v3487 = vld [vmem:[%s3479 + $0x1c] sm:$0xf]
        %v3488 = vld [vmem:[%s3479 + $0x20] sm:$0xf]
        %v3489 = vld [vmem:[%s3479 + $0x24] sm:$0xf]
        %v3490 = vld [vmem:[%s3479 + $0x28] sm:$0xf]
        %v3491 = vld [vmem:[%s3479 + $0x2c] sm:$0xf]
        %v3492 = vld [vmem:[%s3479 + $0x30] sm:$0xf]
        %v3493 = vld [vmem:[%s3479 + $0x34] sm:$0xf]
        %v3494 = vld [vmem:[%s3479 + $0x38] sm:$0xf]
        %v3495 = vld [vmem:[%s3479 + $0x3c] sm:$0xf]
        %v3528 = vunpack.c.l.b16 %v3447
        %v3529 = vunpack.c.l.b16 %v3448
        %v3530 = vunpack.c.l.b16 %v3449
        %v3531 = vunpack.c.l.b16 %v3450
        %v3532 = vunpack.c.l.b16 %v3451
        %v3533 = vunpack.c.l.b16 %v3452
        %v3534 = vunpack.c.l.b16 %v3453
        %v3535 = vunpack.c.l.b16 %v3454
        %v3536 = vunpack.c.l.b16 %v3455
        %v3537 = vunpack.c.l.b16 %v3456
        %v3538 = vunpack.c.l.b16 %v3457
        %v3539 = vunpack.c.l.b16 %v3458
        %v3540 = vunpack.c.l.b16 %v3459
        %v3541 = vunpack.c.l.b16 %v3460
        %v3542 = vunpack.c.l.b16 %v3461
        %v3543 = vunpack.c.l.b16 %v3462
        %v3544 = vunpack.c.l.b16 %v3463
        %v3545 = vunpack.c.l.b16 %v3464
        %v3546 = vunpack.c.l.b16 %v3465
        %v3547 = vunpack.c.l.b16 %v3466
        %v3548 = vunpack.c.l.b16 %v3467
        %v3549 = vunpack.c.l.b16 %v3468
        %v3550 = vunpack.c.l.b16 %v3469
        %v3551 = vunpack.c.l.b16 %v3470
        %v3552 = vunpack.c.l.b16 %v3471
        %v3553 = vunpack.c.l.b16 %v3472
        %v3554 = vunpack.c.l.b16 %v3473
        %v3555 = vunpack.c.l.b16 %v3474
        %v3556 = vunpack.c.l.b16 %v3475
        %v3557 = vunpack.c.l.b16 %v3476
        %v3558 = vunpack.c.l.b16 %v3477
        %v3559 = vunpack.c.l.b16 %v3478
        %v3560 = vpack.c.b16 %v3529, %v3528
        %v3561 = vpack.c.b16 %v3531, %v3530
        %v3562 = vpack.c.b16 %v3533, %v3532
        %v3563 = vpack.c.b16 %v3535, %v3534
        %v3564 = vpack.c.b16 %v3537, %v3536
        %v3565 = vpack.c.b16 %v3539, %v3538
        %v3566 = vpack.c.b16 %v3541, %v3540
        %v3567 = vpack.c.b16 %v3543, %v3542
        %v3568 = vpack.c.b16 %v3545, %v3544
        %v3569 = vpack.c.b16 %v3547, %v3546
        %v3570 = vpack.c.b16 %v3549, %v3548
        %v3571 = vpack.c.b16 %v3551, %v3550
        %v3572 = vpack.c.b16 %v3553, %v3552
        %v3573 = vpack.c.b16 %v3555, %v3554
        %v3574 = vpack.c.b16 %v3557, %v3556
        %v3575 = vpack.c.b16 %v3559, %v3558
        %v3608 = vunpack.c.l.b16 %v3480
        %v3609 = vunpack.c.l.b16 %v3481
        %v3610 = vunpack.c.l.b16 %v3482
        %v3611 = vunpack.c.l.b16 %v3483
        %v3612 = vunpack.c.l.b16 %v3484
        %v3613 = vunpack.c.l.b16 %v3485
        %v3614 = vunpack.c.l.b16 %v3486
        %v3615 = vunpack.c.l.b16 %v3487
        %v3616 = vunpack.c.l.b16 %v3488
        %v3617 = vunpack.c.l.b16 %v3489
        %v3618 = vunpack.c.l.b16 %v3490
        %v3619 = vunpack.c.l.b16 %v3491
        %v3620 = vunpack.c.l.b16 %v3492
        %v3621 = vunpack.c.l.b16 %v3493
        %v3622 = vunpack.c.l.b16 %v3494
        %v3623 = vunpack.c.l.b16 %v3495
        %v3624 = vpack.c.b16 %v3609, %v3608
        %v3625 = vpack.c.b16 %v3611, %v3610
        %v3626 = vpack.c.b16 %v3613, %v3612
        %v3627 = vpack.c.b16 %v3615, %v3614
        %v3628 = vpack.c.b16 %v3617, %v3616
        %v3629 = vpack.c.b16 %v3619, %v3618
        %v3630 = vpack.c.b16 %v3621, %v3620
        %v3631 = vpack.c.b16 %v3623, %v3622
        %3640 = vmatpush.bf16.msra.mxu0 %v3631
        %3641 = vmatpush.bf16.msra.mxu0 %v3630
        %3642 = vmatpush.bf16.msra.mxu0 %v3629
        %3643 = vmatpush.bf16.msra.mxu0 %v3628
        %3644 = vmatpush.bf16.msra.mxu0 %v3627
        %3645 = vmatpush.bf16.msra.mxu0 %v3626
        %3646 = vmatpush.bf16.msra.mxu0 %v3625
        %3647 = vmatpush.bf16.msra.mxu0 %v3624
        %3648 = vmatmul.bf16.gmra.mxu0 %v3560
        %v3649 = vpop.f32.mrf.mxu0
        %v3650 = vadd.f32 0.0, %v3649
        %v3651 = vpop.f32.mrf.mxu0
        %v3652 = vadd.f32 0.0, %v3651
        %3653 = vmatmul.bf16.gmra.mxu0 %v3561
        %v3654 = vpop.f32.mrf.mxu0
        %v3655 = vadd.f32 0.0, %v3654
        %v3656 = vpop.f32.mrf.mxu0
        %v3657 = vadd.f32 0.0, %v3656
        %3658 = vmatmul.bf16.gmra.mxu0 %v3562
        %v3659 = vpop.f32.mrf.mxu0
        %v3660 = vadd.f32 0.0, %v3659
        %v3661 = vpop.f32.mrf.mxu0
        %v3662 = vadd.f32 0.0, %v3661
        %3663 = vmatmul.bf16.gmra.mxu0 %v3563
        %v3664 = vpop.f32.mrf.mxu0
        %v3665 = vadd.f32 0.0, %v3664
        %v3666 = vpop.f32.mrf.mxu0
        %v3667 = vadd.f32 0.0, %v3666
        %3668 = vmatmul.bf16.gmra.mxu0 %v3564
        %v3669 = vpop.f32.mrf.mxu0
        %v3670 = vadd.f32 0.0, %v3669
        %v3671 = vpop.f32.mrf.mxu0
        %v3672 = vadd.f32 0.0, %v3671
        %3673 = vmatmul.bf16.gmra.mxu0 %v3565
        %v3674 = vpop.f32.mrf.mxu0
        %v3675 = vadd.f32 0.0, %v3674
        %v3676 = vpop.f32.mrf.mxu0
        %v3677 = vadd.f32 0.0, %v3676
        %3678 = vmatmul.bf16.gmra.mxu0 %v3566
        %v3679 = vpop.f32.mrf.mxu0
        %v3680 = vadd.f32 0.0, %v3679
        %v3681 = vpop.f32.mrf.mxu0
        %v3682 = vadd.f32 0.0, %v3681
        %3683 = vmatmul.bf16.gmra.mxu0 %v3567
        %v3684 = vpop.f32.mrf.mxu0
        %v3685 = vadd.f32 0.0, %v3684
        %v3686 = vpop.f32.mrf.mxu0
        %v3687 = vadd.f32 0.0, %v3686
        %3688 = vmatmul.bf16.gmra.mxu0 %v3568
        %v3689 = vpop.f32.mrf.mxu0
        %v3690 = vadd.f32 0.0, %v3689
        %v3691 = vpop.f32.mrf.mxu0
        %v3692 = vadd.f32 0.0, %v3691
        %3693 = vmatmul.bf16.gmra.mxu0 %v3569
        %v3694 = vpop.f32.mrf.mxu0
        %v3695 = vadd.f32 0.0, %v3694
        %v3696 = vpop.f32.mrf.mxu0
        %v3697 = vadd.f32 0.0, %v3696
        %3698 = vmatmul.bf16.gmra.mxu0 %v3570
        %v3699 = vpop.f32.mrf.mxu0
        %v3700 = vadd.f32 0.0, %v3699
        %v3701 = vpop.f32.mrf.mxu0
        %v3702 = vadd.f32 0.0, %v3701
        %3703 = vmatmul.bf16.gmra.mxu0 %v3571
        %v3704 = vpop.f32.mrf.mxu0
        %v3705 = vadd.f32 0.0, %v3704
        %v3706 = vpop.f32.mrf.mxu0
        %v3707 = vadd.f32 0.0, %v3706
        %3708 = vmatmul.bf16.gmra.mxu0 %v3572
        %v3709 = vpop.f32.mrf.mxu0
        %v3710 = vadd.f32 0.0, %v3709
        %v3711 = vpop.f32.mrf.mxu0
        %v3712 = vadd.f32 0.0, %v3711
        %3713 = vmatmul.bf16.gmra.mxu0 %v3573
        %v3714 = vpop.f32.mrf.mxu0
        %v3715 = vadd.f32 0.0, %v3714
        %v3716 = vpop.f32.mrf.mxu0
        %v3717 = vadd.f32 0.0, %v3716
        %3718 = vmatmul.bf16.gmra.mxu0 %v3574
        %v3719 = vpop.f32.mrf.mxu0
        %v3720 = vadd.f32 0.0, %v3719
        %v3721 = vpop.f32.mrf.mxu0
        %v3722 = vadd.f32 0.0, %v3721
        %3723 = vmatmul.bf16.gmra.mxu0 %v3575
        %v3724 = vpop.f32.mrf.mxu0
        %v3725 = vadd.f32 0.0, %v3724
        %v3726 = vpop.f32.mrf.mxu0
        %v3727 = vadd.f32 0.0, %v3726
        %3728 = vdwg.mxu0
        %v3729 = vadd.f32 %v3368, %v3650
        %v3730 = vadd.f32 %v3370, %v3652
        %v3731 = vadd.f32 %v3373, %v3655
        %v3732 = vadd.f32 %v3375, %v3657
        %v3733 = vadd.f32 %v3378, %v3660
        %v3734 = vadd.f32 %v3380, %v3662
        %v3735 = vadd.f32 %v3383, %v3665
        %v3736 = vadd.f32 %v3385, %v3667
        %v3737 = vadd.f32 %v3388, %v3670
        %v3738 = vadd.f32 %v3390, %v3672
        %v3739 = vadd.f32 %v3393, %v3675
        %v3740 = vadd.f32 %v3395, %v3677
        %v3741 = vadd.f32 %v3398, %v3680
        %v3742 = vadd.f32 %v3400, %v3682
        %v3743 = vadd.f32 %v3403, %v3685
        %v3744 = vadd.f32 %v3405, %v3687
        %v3745 = vadd.f32 %v3408, %v3690
        %v3746 = vadd.f32 %v3410, %v3692
        %v3747 = vadd.f32 %v3413, %v3695
        %v3748 = vadd.f32 %v3415, %v3697
        %v3749 = vadd.f32 %v3418, %v3700
        %v3750 = vadd.f32 %v3420, %v3702
        %v3751 = vadd.f32 %v3423, %v3705
        %v3752 = vadd.f32 %v3425, %v3707
        %v3753 = vadd.f32 %v3428, %v3710
        %v3754 = vadd.f32 %v3430, %v3712
        %v3755 = vadd.f32 %v3433, %v3715
        %v3756 = vadd.f32 %v3435, %v3717
        %v3757 = vadd.f32 %v3438, %v3720
        %v3758 = vadd.f32 %v3440, %v3722
        %v3759 = vadd.f32 %v3443, %v3725
        %v3760 = vadd.f32 %v3445, %v3727
        %v3761 = vld [vmem:[#allocation2 + $0x8] sm:$0xf]
        %v3762 = vld [vmem:[#allocation2 + $0xc] sm:$0xf]
        %v3763 = vld [vmem:[#allocation2 + $0x10] sm:$0xf]
        %v3764 = vld [vmem:[#allocation2 + $0x14] sm:$0xf]
        %v3765 = vld [vmem:[#allocation2 + $0x18] sm:$0xf]
        %v3766 = vld [vmem:[#allocation2 + $0x1c] sm:$0xf]
        %v3767 = vld [vmem:[#allocation2 + $0x20] sm:$0xf]
        %v3768 = vld [vmem:[#allocation2 + $0x24] sm:$0xf]
        %v3769 = vld [vmem:[#allocation2 + $0x28] sm:$0xf]
        %v3770 = vld [vmem:[#allocation2 + $0x2c] sm:$0xf]
        %v3771 = vld [vmem:[#allocation2 + $0x30] sm:$0xf]
        %v3772 = vld [vmem:[#allocation2 + $0x34] sm:$0xf]
        %v3773 = vld [vmem:[#allocation2 + $0x38] sm:$0xf]
        %v3774 = vld [vmem:[#allocation2 + $0x3c] sm:$0xf]
        %v3775 = vld [vmem:[#allocation2 + $0x40] sm:$0xf]
        %v3776 = vld [vmem:[#allocation2 + $0x44] sm:$0xf]
        %v3777 = vld [vmem:[#allocation2 + $0x48] sm:$0xf]
        %v3778 = vld [vmem:[#allocation2 + $0x4c] sm:$0xf]
        %v3779 = vld [vmem:[#allocation2 + $0x50] sm:$0xf]
        %v3780 = vld [vmem:[#allocation2 + $0x54] sm:$0xf]
        %v3781 = vld [vmem:[#allocation2 + $0x58] sm:$0xf]
        %v3782 = vld [vmem:[#allocation2 + $0x5c] sm:$0xf]
        %v3783 = vld [vmem:[#allocation2 + $0x60] sm:$0xf]
        %v3784 = vld [vmem:[#allocation2 + $0x64] sm:$0xf]
        %v3785 = vld [vmem:[#allocation2 + $0x68] sm:$0xf]
        %v3786 = vld [vmem:[#allocation2 + $0x6c] sm:$0xf]
        %v3787 = vld [vmem:[#allocation2 + $0x70] sm:$0xf]
        %v3788 = vld [vmem:[#allocation2 + $0x74] sm:$0xf]
        %v3789 = vld [vmem:[#allocation2 + $0x78] sm:$0xf]
        %v3790 = vld [vmem:[#allocation2 + $0x7c] sm:$0xf]
        %v3791 = vld [vmem:[#allocation2 + $0x80] sm:$0xf]
        %v3792 = vld [vmem:[#allocation2 + $0x84] sm:$0xf]
        %s3793 = scalar_lea.vmem [#allocation6], 192
        %v3794 = vld [vmem:[%s3793] sm:$0xf]
        %v3795 = vld [vmem:[%s3793 + $0x4] sm:$0xf]
        %v3796 = vld [vmem:[%s3793 + $0x8] sm:$0xf]
        %v3797 = vld [vmem:[%s3793 + $0xc] sm:$0xf]
        %v3798 = vld [vmem:[%s3793 + $0x10] sm:$0xf]
        %v3799 = vld [vmem:[%s3793 + $0x14] sm:$0xf]
        %v3800 = vld [vmem:[%s3793 + $0x18] sm:$0xf]
        %v3801 = vld [vmem:[%s3793 + $0x1c] sm:$0xf]
        %v3802 = vld [vmem:[%s3793 + $0x20] sm:$0xf]
        %v3803 = vld [vmem:[%s3793 + $0x24] sm:$0xf]
        %v3804 = vld [vmem:[%s3793 + $0x28] sm:$0xf]
        %v3805 = vld [vmem:[%s3793 + $0x2c] sm:$0xf]
        %v3806 = vld [vmem:[%s3793 + $0x30] sm:$0xf]
        %v3807 = vld [vmem:[%s3793 + $0x34] sm:$0xf]
        %v3808 = vld [vmem:[%s3793 + $0x38] sm:$0xf]
        %v3809 = vld [vmem:[%s3793 + $0x3c] sm:$0xf]
        %v3842 = vunpack.c.l.b16 %v3761
        %v3843 = vunpack.c.l.b16 %v3762
        %v3844 = vunpack.c.l.b16 %v3763
        %v3845 = vunpack.c.l.b16 %v3764
        %v3846 = vunpack.c.l.b16 %v3765
        %v3847 = vunpack.c.l.b16 %v3766
        %v3848 = vunpack.c.l.b16 %v3767
        %v3849 = vunpack.c.l.b16 %v3768
        %v3850 = vunpack.c.l.b16 %v3769
        %v3851 = vunpack.c.l.b16 %v3770
        %v3852 = vunpack.c.l.b16 %v3771
        %v3853 = vunpack.c.l.b16 %v3772
        %v3854 = vunpack.c.l.b16 %v3773
        %v3855 = vunpack.c.l.b16 %v3774
        %v3856 = vunpack.c.l.b16 %v3775
        %v3857 = vunpack.c.l.b16 %v3776
        %v3858 = vunpack.c.l.b16 %v3777
        %v3859 = vunpack.c.l.b16 %v3778
        %v3860 = vunpack.c.l.b16 %v3779
        %v3861 = vunpack.c.l.b16 %v3780
        %v3862 = vunpack.c.l.b16 %v3781
        %v3863 = vunpack.c.l.b16 %v3782
        %v3864 = vunpack.c.l.b16 %v3783
        %v3865 = vunpack.c.l.b16 %v3784
        %v3866 = vunpack.c.l.b16 %v3785
        %v3867 = vunpack.c.l.b16 %v3786
        %v3868 = vunpack.c.l.b16 %v3787
        %v3869 = vunpack.c.l.b16 %v3788
        %v3870 = vunpack.c.l.b16 %v3789
        %v3871 = vunpack.c.l.b16 %v3790
        %v3872 = vunpack.c.l.b16 %v3791
        %v3873 = vunpack.c.l.b16 %v3792
        %v3874 = vpack.c.b16 %v3843, %v3842
        %v3875 = vpack.c.b16 %v3845, %v3844
        %v3876 = vpack.c.b16 %v3847, %v3846
        %v3877 = vpack.c.b16 %v3849, %v3848
        %v3878 = vpack.c.b16 %v3851, %v3850
        %v3879 = vpack.c.b16 %v3853, %v3852
        %v3880 = vpack.c.b16 %v3855, %v3854
        %v3881 = vpack.c.b16 %v3857, %v3856
        %v3882 = vpack.c.b16 %v3859, %v3858
        %v3883 = vpack.c.b16 %v3861, %v3860
        %v3884 = vpack.c.b16 %v3863, %v3862
        %v3885 = vpack.c.b16 %v3865, %v3864
        %v3886 = vpack.c.b16 %v3867, %v3866
        %v3887 = vpack.c.b16 %v3869, %v3868
        %v3888 = vpack.c.b16 %v3871, %v3870
        %v3889 = vpack.c.b16 %v3873, %v3872
        %v3922 = vunpack.c.l.b16 %v3794
        %v3923 = vunpack.c.l.b16 %v3795
        %v3924 = vunpack.c.l.b16 %v3796
        %v3925 = vunpack.c.l.b16 %v3797
        %v3926 = vunpack.c.l.b16 %v3798
        %v3927 = vunpack.c.l.b16 %v3799
        %v3928 = vunpack.c.l.b16 %v3800
        %v3929 = vunpack.c.l.b16 %v3801
        %v3930 = vunpack.c.l.b16 %v3802
        %v3931 = vunpack.c.l.b16 %v3803
        %v3932 = vunpack.c.l.b16 %v3804
        %v3933 = vunpack.c.l.b16 %v3805
        %v3934 = vunpack.c.l.b16 %v3806
        %v3935 = vunpack.c.l.b16 %v3807
        %v3936 = vunpack.c.l.b16 %v3808
        %v3937 = vunpack.c.l.b16 %v3809
        %v3938 = vpack.c.b16 %v3923, %v3922
        %v3939 = vpack.c.b16 %v3925, %v3924
        %v3940 = vpack.c.b16 %v3927, %v3926
        %v3941 = vpack.c.b16 %v3929, %v3928
        %v3942 = vpack.c.b16 %v3931, %v3930
        %v3943 = vpack.c.b16 %v3933, %v3932
        %v3944 = vpack.c.b16 %v3935, %v3934
        %v3945 = vpack.c.b16 %v3937, %v3936
        %3954 = vmatpush.bf16.msra.mxu0 %v3945
        %3955 = vmatpush.bf16.msra.mxu0 %v3944
        %3956 = vmatpush.bf16.msra.mxu0 %v3943
        %3957 = vmatpush.bf16.msra.mxu0 %v3942
        %3958 = vmatpush.bf16.msra.mxu0 %v3941
        %3959 = vmatpush.bf16.msra.mxu0 %v3940
        %3960 = vmatpush.bf16.msra.mxu0 %v3939
        %3961 = vmatpush.bf16.msra.mxu0 %v3938
        %3962 = vmatmul.bf16.gmra.mxu0 %v3874
        %v3963 = vpop.f32.mrf.mxu0
        %v3964 = vadd.f32 0.0, %v3963
        %v3965 = vpop.f32.mrf.mxu0
        %v3966 = vadd.f32 0.0, %v3965
        %3967 = vmatmul.bf16.gmra.mxu0 %v3875
        %v3968 = vpop.f32.mrf.mxu0
        %v3969 = vadd.f32 0.0, %v3968
        %v3970 = vpop.f32.mrf.mxu0
        %v3971 = vadd.f32 0.0, %v3970
        %3972 = vmatmul.bf16.gmra.mxu0 %v3876
        %v3973 = vpop.f32.mrf.mxu0
        %v3974 = vadd.f32 0.0, %v3973
        %v3975 = vpop.f32.mrf.mxu0
        %v3976 = vadd.f32 0.0, %v3975
        %3977 = vmatmul.bf16.gmra.mxu0 %v3877
        %v3978 = vpop.f32.mrf.mxu0
        %v3979 = vadd.f32 0.0, %v3978
        %v3980 = vpop.f32.mrf.mxu0
        %v3981 = vadd.f32 0.0, %v3980
        %3982 = vmatmul.bf16.gmra.mxu0 %v3878
        %v3983 = vpop.f32.mrf.mxu0
        %v3984 = vadd.f32 0.0, %v3983
        %v3985 = vpop.f32.mrf.mxu0
        %v3986 = vadd.f32 0.0, %v3985
        %3987 = vmatmul.bf16.gmra.mxu0 %v3879
        %v3988 = vpop.f32.mrf.mxu0
        %v3989 = vadd.f32 0.0, %v3988
        %v3990 = vpop.f32.mrf.mxu0
        %v3991 = vadd.f32 0.0, %v3990
        %3992 = vmatmul.bf16.gmra.mxu0 %v3880
        %v3993 = vpop.f32.mrf.mxu0
        %v3994 = vadd.f32 0.0, %v3993
        %v3995 = vpop.f32.mrf.mxu0
        %v3996 = vadd.f32 0.0, %v3995
        %3997 = vmatmul.bf16.gmra.mxu0 %v3881
        %v3998 = vpop.f32.mrf.mxu0
        %v3999 = vadd.f32 0.0, %v3998
        %v4000 = vpop.f32.mrf.mxu0
        %v4001 = vadd.f32 0.0, %v4000
        %4002 = vmatmul.bf16.gmra.mxu0 %v3882
        %v4003 = vpop.f32.mrf.mxu0
        %v4004 = vadd.f32 0.0, %v4003
        %v4005 = vpop.f32.mrf.mxu0
        %v4006 = vadd.f32 0.0, %v4005
        %4007 = vmatmul.bf16.gmra.mxu0 %v3883
        %v4008 = vpop.f32.mrf.mxu0
        %v4009 = vadd.f32 0.0, %v4008
        %v4010 = vpop.f32.mrf.mxu0
        %v4011 = vadd.f32 0.0, %v4010
        %4012 = vmatmul.bf16.gmra.mxu0 %v3884
        %v4013 = vpop.f32.mrf.mxu0
        %v4014 = vadd.f32 0.0, %v4013
        %v4015 = vpop.f32.mrf.mxu0
        %v4016 = vadd.f32 0.0, %v4015
        %4017 = vmatmul.bf16.gmra.mxu0 %v3885
        %v4018 = vpop.f32.mrf.mxu0
        %v4019 = vadd.f32 0.0, %v4018
        %v4020 = vpop.f32.mrf.mxu0
        %v4021 = vadd.f32 0.0, %v4020
        %4022 = vmatmul.bf16.gmra.mxu0 %v3886
        %v4023 = vpop.f32.mrf.mxu0
        %v4024 = vadd.f32 0.0, %v4023
        %v4025 = vpop.f32.mrf.mxu0
        %v4026 = vadd.f32 0.0, %v4025
        %4027 = vmatmul.bf16.gmra.mxu0 %v3887
        %v4028 = vpop.f32.mrf.mxu0
        %v4029 = vadd.f32 0.0, %v4028
        %v4030 = vpop.f32.mrf.mxu0
        %v4031 = vadd.f32 0.0, %v4030
        %4032 = vmatmul.bf16.gmra.mxu0 %v3888
        %v4033 = vpop.f32.mrf.mxu0
        %v4034 = vadd.f32 0.0, %v4033
        %v4035 = vpop.f32.mrf.mxu0
        %v4036 = vadd.f32 0.0, %v4035
        %4037 = vmatmul.bf16.gmra.mxu0 %v3889
        %v4038 = vpop.f32.mrf.mxu0
        %v4039 = vadd.f32 0.0, %v4038
        %v4040 = vpop.f32.mrf.mxu0
        %v4041 = vadd.f32 0.0, %v4040
        %4042 = vdwg.mxu0
        %v4043 = vadd.f32 %v3729, %v3964
        %v4044 = vadd.f32 %v3730, %v3966
        %v4045 = vadd.f32 %v3731, %v3969
        %v4046 = vadd.f32 %v3732, %v3971
        %v4047 = vadd.f32 %v3733, %v3974
        %v4048 = vadd.f32 %v3734, %v3976
        %v4049 = vadd.f32 %v3735, %v3979
        %v4050 = vadd.f32 %v3736, %v3981
        %v4051 = vadd.f32 %v3737, %v3984
        %v4052 = vadd.f32 %v3738, %v3986
        %v4053 = vadd.f32 %v3739, %v3989
        %v4054 = vadd.f32 %v3740, %v3991
        %v4055 = vadd.f32 %v3741, %v3994
        %v4056 = vadd.f32 %v3742, %v3996
        %v4057 = vadd.f32 %v3743, %v3999
        %v4058 = vadd.f32 %v3744, %v4001
        %v4059 = vadd.f32 %v3745, %v4004
        %v4060 = vadd.f32 %v3746, %v4006
        %v4061 = vadd.f32 %v3747, %v4009
        %v4062 = vadd.f32 %v3748, %v4011
        %v4063 = vadd.f32 %v3749, %v4014
        %v4064 = vadd.f32 %v3750, %v4016
        %v4065 = vadd.f32 %v3751, %v4019
        %v4066 = vadd.f32 %v3752, %v4021
        %v4067 = vadd.f32 %v3753, %v4024
        %v4068 = vadd.f32 %v3754, %v4026
        %v4069 = vadd.f32 %v3755, %v4029
        %v4070 = vadd.f32 %v3756, %v4031
        %v4071 = vadd.f32 %v3757, %v4034
        %v4072 = vadd.f32 %v3758, %v4036
        %v4073 = vadd.f32 %v3759, %v4039
        %v4074 = vadd.f32 %v3760, %v4041
        %v4075 = vld [vmem:[%s290 + $0x8] sm:$0xf]
        %v4076 = vld [vmem:[%s290 + $0xc] sm:$0xf]
        %v4077 = vld [vmem:[%s290 + $0x10] sm:$0xf]
        %v4078 = vld [vmem:[%s290 + $0x14] sm:$0xf]
        %v4079 = vld [vmem:[%s290 + $0x18] sm:$0xf]
        %v4080 = vld [vmem:[%s290 + $0x1c] sm:$0xf]
        %v4081 = vld [vmem:[%s290 + $0x20] sm:$0xf]
        %v4082 = vld [vmem:[%s290 + $0x24] sm:$0xf]
        %v4083 = vld [vmem:[%s290 + $0x28] sm:$0xf]
        %v4084 = vld [vmem:[%s290 + $0x2c] sm:$0xf]
        %v4085 = vld [vmem:[%s290 + $0x30] sm:$0xf]
        %v4086 = vld [vmem:[%s290 + $0x34] sm:$0xf]
        %v4087 = vld [vmem:[%s290 + $0x38] sm:$0xf]
        %v4088 = vld [vmem:[%s290 + $0x3c] sm:$0xf]
        %v4089 = vld [vmem:[%s290 + $0x40] sm:$0xf]
        %v4090 = vld [vmem:[%s290 + $0x44] sm:$0xf]
        %v4091 = vld [vmem:[%s290 + $0x48] sm:$0xf]
        %v4092 = vld [vmem:[%s290 + $0x4c] sm:$0xf]
        %v4093 = vld [vmem:[%s290 + $0x50] sm:$0xf]
        %v4094 = vld [vmem:[%s290 + $0x54] sm:$0xf]
        %v4095 = vld [vmem:[%s290 + $0x58] sm:$0xf]
        %v4096 = vld [vmem:[%s290 + $0x5c] sm:$0xf]
        %v4097 = vld [vmem:[%s290 + $0x60] sm:$0xf]
        %v4098 = vld [vmem:[%s290 + $0x64] sm:$0xf]
        %v4099 = vld [vmem:[%s290 + $0x68] sm:$0xf]
        %v4100 = vld [vmem:[%s290 + $0x6c] sm:$0xf]
        %v4101 = vld [vmem:[%s290 + $0x70] sm:$0xf]
        %v4102 = vld [vmem:[%s290 + $0x74] sm:$0xf]
        %v4103 = vld [vmem:[%s290 + $0x78] sm:$0xf]
        %v4104 = vld [vmem:[%s290 + $0x7c] sm:$0xf]
        %v4105 = vld [vmem:[%s290 + $0x80] sm:$0xf]
        %v4106 = vld [vmem:[%s290 + $0x84] sm:$0xf]
        %s4107 = scalar_lea.vmem [#allocation6], 256
        %v4108 = vld [vmem:[%s4107] sm:$0xf]
        %v4109 = vld [vmem:[%s4107 + $0x4] sm:$0xf]
        %v4110 = vld [vmem:[%s4107 + $0x8] sm:$0xf]
        %v4111 = vld [vmem:[%s4107 + $0xc] sm:$0xf]
        %v4112 = vld [vmem:[%s4107 + $0x10] sm:$0xf]
        %v4113 = vld [vmem:[%s4107 + $0x14] sm:$0xf]
        %v4114 = vld [vmem:[%s4107 + $0x18] sm:$0xf]
        %v4115 = vld [vmem:[%s4107 + $0x1c] sm:$0xf]
        %v4116 = vld [vmem:[%s4107 + $0x20] sm:$0xf]
        %v4117 = vld [vmem:[%s4107 + $0x24] sm:$0xf]
        %v4118 = vld [vmem:[%s4107 + $0x28] sm:$0xf]
        %v4119 = vld [vmem:[%s4107 + $0x2c] sm:$0xf]
        %v4120 = vld [vmem:[%s4107 + $0x30] sm:$0xf]
        %v4121 = vld [vmem:[%s4107 + $0x34] sm:$0xf]
        %v4122 = vld [vmem:[%s4107 + $0x38] sm:$0xf]
        %v4123 = vld [vmem:[%s4107 + $0x3c] sm:$0xf]
        %v4156 = vunpack.c.l.b16 %v4075
        %v4157 = vunpack.c.l.b16 %v4076
        %v4158 = vunpack.c.l.b16 %v4077
        %v4159 = vunpack.c.l.b16 %v4078
        %v4160 = vunpack.c.l.b16 %v4079
        %v4161 = vunpack.c.l.b16 %v4080
        %v4162 = vunpack.c.l.b16 %v4081
        %v4163 = vunpack.c.l.b16 %v4082
        %v4164 = vunpack.c.l.b16 %v4083
        %v4165 = vunpack.c.l.b16 %v4084
        %v4166 = vunpack.c.l.b16 %v4085
        %v4167 = vunpack.c.l.b16 %v4086
        %v4168 = vunpack.c.l.b16 %v4087
        %v4169 = vunpack.c.l.b16 %v4088
        %v4170 = vunpack.c.l.b16 %v4089
        %v4171 = vunpack.c.l.b16 %v4090
        %v4172 = vunpack.c.l.b16 %v4091
        %v4173 = vunpack.c.l.b16 %v4092
        %v4174 = vunpack.c.l.b16 %v4093
        %v4175 = vunpack.c.l.b16 %v4094
        %v4176 = vunpack.c.l.b16 %v4095
        %v4177 = vunpack.c.l.b16 %v4096
        %v4178 = vunpack.c.l.b16 %v4097
        %v4179 = vunpack.c.l.b16 %v4098
        %v4180 = vunpack.c.l.b16 %v4099
        %v4181 = vunpack.c.l.b16 %v4100
        %v4182 = vunpack.c.l.b16 %v4101
        %v4183 = vunpack.c.l.b16 %v4102
        %v4184 = vunpack.c.l.b16 %v4103
        %v4185 = vunpack.c.l.b16 %v4104
        %v4186 = vunpack.c.l.b16 %v4105
        %v4187 = vunpack.c.l.b16 %v4106
        %v4188 = vpack.c.b16 %v4157, %v4156
        %v4189 = vpack.c.b16 %v4159, %v4158
        %v4190 = vpack.c.b16 %v4161, %v4160
        %v4191 = vpack.c.b16 %v4163, %v4162
        %v4192 = vpack.c.b16 %v4165, %v4164
        %v4193 = vpack.c.b16 %v4167, %v4166
        %v4194 = vpack.c.b16 %v4169, %v4168
        %v4195 = vpack.c.b16 %v4171, %v4170
        %v4196 = vpack.c.b16 %v4173, %v4172
        %v4197 = vpack.c.b16 %v4175, %v4174
        %v4198 = vpack.c.b16 %v4177, %v4176
        %v4199 = vpack.c.b16 %v4179, %v4178
        %v4200 = vpack.c.b16 %v4181, %v4180
        %v4201 = vpack.c.b16 %v4183, %v4182
        %v4202 = vpack.c.b16 %v4185, %v4184
        %v4203 = vpack.c.b16 %v4187, %v4186
        %v4236 = vunpack.c.l.b16 %v4108
        %v4237 = vunpack.c.l.b16 %v4109
        %v4238 = vunpack.c.l.b16 %v4110
        %v4239 = vunpack.c.l.b16 %v4111
        %v4240 = vunpack.c.l.b16 %v4112
        %v4241 = vunpack.c.l.b16 %v4113
        %v4242 = vunpack.c.l.b16 %v4114
        %v4243 = vunpack.c.l.b16 %v4115
        %v4244 = vunpack.c.l.b16 %v4116
        %v4245 = vunpack.c.l.b16 %v4117
        %v4246 = vunpack.c.l.b16 %v4118
        %v4247 = vunpack.c.l.b16 %v4119
        %v4248 = vunpack.c.l.b16 %v4120
        %v4249 = vunpack.c.l.b16 %v4121
        %v4250 = vunpack.c.l.b16 %v4122
        %v4251 = vunpack.c.l.b16 %v4123
        %v4252 = vpack.c.b16 %v4237, %v4236
        %v4253 = vpack.c.b16 %v4239, %v4238
        %v4254 = vpack.c.b16 %v4241, %v4240
        %v4255 = vpack.c.b16 %v4243, %v4242
        %v4256 = vpack.c.b16 %v4245, %v4244
        %v4257 = vpack.c.b16 %v4247, %v4246
        %v4258 = vpack.c.b16 %v4249, %v4248
        %v4259 = vpack.c.b16 %v4251, %v4250
        %4268 = vmatpush.bf16.msra.mxu0 %v4259
        %4269 = vmatpush.bf16.msra.mxu0 %v4258
        %4270 = vmatpush.bf16.msra.mxu0 %v4257
        %4271 = vmatpush.bf16.msra.mxu0 %v4256
        %4272 = vmatpush.bf16.msra.mxu0 %v4255
        %4273 = vmatpush.bf16.msra.mxu0 %v4254
        %4274 = vmatpush.bf16.msra.mxu0 %v4253
        %4275 = vmatpush.bf16.msra.mxu0 %v4252
        %4276 = vmatmul.bf16.gmra.mxu0 %v4188
        %v4277 = vpop.f32.mrf.mxu0
        %v4278 = vadd.f32 0.0, %v4277
        %v4279 = vpop.f32.mrf.mxu0
        %v4280 = vadd.f32 0.0, %v4279
        %4281 = vmatmul.bf16.gmra.mxu0 %v4189
        %v4282 = vpop.f32.mrf.mxu0
        %v4283 = vadd.f32 0.0, %v4282
        %v4284 = vpop.f32.mrf.mxu0
        %v4285 = vadd.f32 0.0, %v4284
        %4286 = vmatmul.bf16.gmra.mxu0 %v4190
        %v4287 = vpop.f32.mrf.mxu0
        %v4288 = vadd.f32 0.0, %v4287
        %v4289 = vpop.f32.mrf.mxu0
        %v4290 = vadd.f32 0.0, %v4289
        %4291 = vmatmul.bf16.gmra.mxu0 %v4191
        %v4292 = vpop.f32.mrf.mxu0
        %v4293 = vadd.f32 0.0, %v4292
        %v4294 = vpop.f32.mrf.mxu0
        %v4295 = vadd.f32 0.0, %v4294
        %4296 = vmatmul.bf16.gmra.mxu0 %v4192
        %v4297 = vpop.f32.mrf.mxu0
        %v4298 = vadd.f32 0.0, %v4297
        %v4299 = vpop.f32.mrf.mxu0
        %v4300 = vadd.f32 0.0, %v4299
        %4301 = vmatmul.bf16.gmra.mxu0 %v4193
        %v4302 = vpop.f32.mrf.mxu0
        %v4303 = vadd.f32 0.0, %v4302
        %v4304 = vpop.f32.mrf.mxu0
        %v4305 = vadd.f32 0.0, %v4304
        %4306 = vmatmul.bf16.gmra.mxu0 %v4194
        %v4307 = vpop.f32.mrf.mxu0
        %v4308 = vadd.f32 0.0, %v4307
        %v4309 = vpop.f32.mrf.mxu0
        %v4310 = vadd.f32 0.0, %v4309
        %4311 = vmatmul.bf16.gmra.mxu0 %v4195
        %v4312 = vpop.f32.mrf.mxu0
        %v4313 = vadd.f32 0.0, %v4312
        %v4314 = vpop.f32.mrf.mxu0
        %v4315 = vadd.f32 0.0, %v4314
        %4316 = vmatmul.bf16.gmra.mxu0 %v4196
        %v4317 = vpop.f32.mrf.mxu0
        %v4318 = vadd.f32 0.0, %v4317
        %v4319 = vpop.f32.mrf.mxu0
        %v4320 = vadd.f32 0.0, %v4319
        %4321 = vmatmul.bf16.gmra.mxu0 %v4197
        %v4322 = vpop.f32.mrf.mxu0
        %v4323 = vadd.f32 0.0, %v4322
        %v4324 = vpop.f32.mrf.mxu0
        %v4325 = vadd.f32 0.0, %v4324
        %4326 = vmatmul.bf16.gmra.mxu0 %v4198
        %v4327 = vpop.f32.mrf.mxu0
        %v4328 = vadd.f32 0.0, %v4327
        %v4329 = vpop.f32.mrf.mxu0
        %v4330 = vadd.f32 0.0, %v4329
        %4331 = vmatmul.bf16.gmra.mxu0 %v4199
        %v4332 = vpop.f32.mrf.mxu0
        %v4333 = vadd.f32 0.0, %v4332
        %v4334 = vpop.f32.mrf.mxu0
        %v4335 = vadd.f32 0.0, %v4334
        %4336 = vmatmul.bf16.gmra.mxu0 %v4200
        %v4337 = vpop.f32.mrf.mxu0
        %v4338 = vadd.f32 0.0, %v4337
        %v4339 = vpop.f32.mrf.mxu0
        %v4340 = vadd.f32 0.0, %v4339
        %4341 = vmatmul.bf16.gmra.mxu0 %v4201
        %v4342 = vpop.f32.mrf.mxu0
        %v4343 = vadd.f32 0.0, %v4342
        %v4344 = vpop.f32.mrf.mxu0
        %v4345 = vadd.f32 0.0, %v4344
        %4346 = vmatmul.bf16.gmra.mxu0 %v4202
        %v4347 = vpop.f32.mrf.mxu0
        %v4348 = vadd.f32 0.0, %v4347
        %v4349 = vpop.f32.mrf.mxu0
        %v4350 = vadd.f32 0.0, %v4349
        %4351 = vmatmul.bf16.gmra.mxu0 %v4203
        %v4352 = vpop.f32.mrf.mxu0
        %v4353 = vadd.f32 0.0, %v4352
        %v4354 = vpop.f32.mrf.mxu0
        %v4355 = vadd.f32 0.0, %v4354
        %4356 = vdwg.mxu0
        %v4357 = vadd.f32 %v4043, %v4278
        %v4358 = vadd.f32 %v4044, %v4280
        %v4359 = vadd.f32 %v4045, %v4283
        %v4360 = vadd.f32 %v4046, %v4285
        %v4361 = vadd.f32 %v4047, %v4288
        %v4362 = vadd.f32 %v4048, %v4290
        %v4363 = vadd.f32 %v4049, %v4293
        %v4364 = vadd.f32 %v4050, %v4295
        %v4365 = vadd.f32 %v4051, %v4298
        %v4366 = vadd.f32 %v4052, %v4300
        %v4367 = vadd.f32 %v4053, %v4303
        %v4368 = vadd.f32 %v4054, %v4305
        %v4369 = vadd.f32 %v4055, %v4308
        %v4370 = vadd.f32 %v4056, %v4310
        %v4371 = vadd.f32 %v4057, %v4313
        %v4372 = vadd.f32 %v4058, %v4315
        %v4373 = vadd.f32 %v4059, %v4318
        %v4374 = vadd.f32 %v4060, %v4320
        %v4375 = vadd.f32 %v4061, %v4323
        %v4376 = vadd.f32 %v4062, %v4325
        %v4377 = vadd.f32 %v4063, %v4328
        %v4378 = vadd.f32 %v4064, %v4330
        %v4379 = vadd.f32 %v4065, %v4333
        %v4380 = vadd.f32 %v4066, %v4335
        %v4381 = vadd.f32 %v4067, %v4338
        %v4382 = vadd.f32 %v4068, %v4340
        %v4383 = vadd.f32 %v4069, %v4343
        %v4384 = vadd.f32 %v4070, %v4345
        %v4385 = vadd.f32 %v4071, %v4348
        %v4386 = vadd.f32 %v4072, %v4350
        %v4387 = vadd.f32 %v4073, %v4353
        %v4388 = vadd.f32 %v4074, %v4355
        %v4389 = vld [vmem:[%s2850 + $0x8] sm:$0xf]
        %v4390 = vld [vmem:[%s2850 + $0xc] sm:$0xf]
        %v4391 = vld [vmem:[%s2850 + $0x10] sm:$0xf]
        %v4392 = vld [vmem:[%s2850 + $0x14] sm:$0xf]
        %v4393 = vld [vmem:[%s2850 + $0x18] sm:$0xf]
        %v4394 = vld [vmem:[%s2850 + $0x1c] sm:$0xf]
        %v4395 = vld [vmem:[%s2850 + $0x20] sm:$0xf]
        %v4396 = vld [vmem:[%s2850 + $0x24] sm:$0xf]
        %v4397 = vld [vmem:[%s2850 + $0x28] sm:$0xf]
        %v4398 = vld [vmem:[%s2850 + $0x2c] sm:$0xf]
        %v4399 = vld [vmem:[%s2850 + $0x30] sm:$0xf]
        %v4400 = vld [vmem:[%s2850 + $0x34] sm:$0xf]
        %v4401 = vld [vmem:[%s2850 + $0x38] sm:$0xf]
        %v4402 = vld [vmem:[%s2850 + $0x3c] sm:$0xf]
        %v4403 = vld [vmem:[%s2850 + $0x40] sm:$0xf]
        %v4404 = vld [vmem:[%s2850 + $0x44] sm:$0xf]
        %v4405 = vld [vmem:[%s2850 + $0x48] sm:$0xf]
        %v4406 = vld [vmem:[%s2850 + $0x4c] sm:$0xf]
        %v4407 = vld [vmem:[%s2850 + $0x50] sm:$0xf]
        %v4408 = vld [vmem:[%s2850 + $0x54] sm:$0xf]
        %v4409 = vld [vmem:[%s2850 + $0x58] sm:$0xf]
        %v4410 = vld [vmem:[%s2850 + $0x5c] sm:$0xf]
        %v4411 = vld [vmem:[%s2850 + $0x60] sm:$0xf]
        %v4412 = vld [vmem:[%s2850 + $0x64] sm:$0xf]
        %v4413 = vld [vmem:[%s2850 + $0x68] sm:$0xf]
        %v4414 = vld [vmem:[%s2850 + $0x6c] sm:$0xf]
        %v4415 = vld [vmem:[%s2850 + $0x70] sm:$0xf]
        %v4416 = vld [vmem:[%s2850 + $0x74] sm:$0xf]
        %v4417 = vld [vmem:[%s2850 + $0x78] sm:$0xf]
        %v4418 = vld [vmem:[%s2850 + $0x7c] sm:$0xf]
        %v4419 = vld [vmem:[%s2850 + $0x80] sm:$0xf]
        %v4420 = vld [vmem:[%s2850 + $0x84] sm:$0xf]
        %s4421 = scalar_lea.vmem [#allocation6], 320
        %v4422 = vld [vmem:[%s4421] sm:$0xf]
        %v4423 = vld [vmem:[%s4421 + $0x4] sm:$0xf]
        %v4424 = vld [vmem:[%s4421 + $0x8] sm:$0xf]
        %v4425 = vld [vmem:[%s4421 + $0xc] sm:$0xf]
        %v4426 = vld [vmem:[%s4421 + $0x10] sm:$0xf]
        %v4427 = vld [vmem:[%s4421 + $0x14] sm:$0xf]
        %v4428 = vld [vmem:[%s4421 + $0x18] sm:$0xf]
        %v4429 = vld [vmem:[%s4421 + $0x1c] sm:$0xf]
        %v4430 = vld [vmem:[%s4421 + $0x20] sm:$0xf]
        %v4431 = vld [vmem:[%s4421 + $0x24] sm:$0xf]
        %v4432 = vld [vmem:[%s4421 + $0x28] sm:$0xf]
        %v4433 = vld [vmem:[%s4421 + $0x2c] sm:$0xf]
        %v4434 = vld [vmem:[%s4421 + $0x30] sm:$0xf]
        %v4435 = vld [vmem:[%s4421 + $0x34] sm:$0xf]
        %v4436 = vld [vmem:[%s4421 + $0x38] sm:$0xf]
        %v4437 = vld [vmem:[%s4421 + $0x3c] sm:$0xf]
        %v4470 = vunpack.c.l.b16 %v4389
        %v4471 = vunpack.c.l.b16 %v4390
        %v4472 = vunpack.c.l.b16 %v4391
        %v4473 = vunpack.c.l.b16 %v4392
        %v4474 = vunpack.c.l.b16 %v4393
        %v4475 = vunpack.c.l.b16 %v4394
        %v4476 = vunpack.c.l.b16 %v4395
        %v4477 = vunpack.c.l.b16 %v4396
        %v4478 = vunpack.c.l.b16 %v4397
        %v4479 = vunpack.c.l.b16 %v4398
        %v4480 = vunpack.c.l.b16 %v4399
        %v4481 = vunpack.c.l.b16 %v4400
        %v4482 = vunpack.c.l.b16 %v4401
        %v4483 = vunpack.c.l.b16 %v4402
        %v4484 = vunpack.c.l.b16 %v4403
        %v4485 = vunpack.c.l.b16 %v4404
        %v4486 = vunpack.c.l.b16 %v4405
        %v4487 = vunpack.c.l.b16 %v4406
        %v4488 = vunpack.c.l.b16 %v4407
        %v4489 = vunpack.c.l.b16 %v4408
        %v4490 = vunpack.c.l.b16 %v4409
        %v4491 = vunpack.c.l.b16 %v4410
        %v4492 = vunpack.c.l.b16 %v4411
        %v4493 = vunpack.c.l.b16 %v4412
        %v4494 = vunpack.c.l.b16 %v4413
        %v4495 = vunpack.c.l.b16 %v4414
        %v4496 = vunpack.c.l.b16 %v4415
        %v4497 = vunpack.c.l.b16 %v4416
        %v4498 = vunpack.c.l.b16 %v4417
        %v4499 = vunpack.c.l.b16 %v4418
        %v4500 = vunpack.c.l.b16 %v4419
        %v4501 = vunpack.c.l.b16 %v4420
        %v4502 = vpack.c.b16 %v4471, %v4470
        %v4503 = vpack.c.b16 %v4473, %v4472
        %v4504 = vpack.c.b16 %v4475, %v4474
        %v4505 = vpack.c.b16 %v4477, %v4476
        %v4506 = vpack.c.b16 %v4479, %v4478
        %v4507 = vpack.c.b16 %v4481, %v4480
        %v4508 = vpack.c.b16 %v4483, %v4482
        %v4509 = vpack.c.b16 %v4485, %v4484
        %v4510 = vpack.c.b16 %v4487, %v4486
        %v4511 = vpack.c.b16 %v4489, %v4488
        %v4512 = vpack.c.b16 %v4491, %v4490
        %v4513 = vpack.c.b16 %v4493, %v4492
        %v4514 = vpack.c.b16 %v4495, %v4494
        %v4515 = vpack.c.b16 %v4497, %v4496
        %v4516 = vpack.c.b16 %v4499, %v4498
        %v4517 = vpack.c.b16 %v4501, %v4500
        %v4550 = vunpack.c.l.b16 %v4422
        %v4551 = vunpack.c.l.b16 %v4423
        %v4552 = vunpack.c.l.b16 %v4424
        %v4553 = vunpack.c.l.b16 %v4425
        %v4554 = vunpack.c.l.b16 %v4426
        %v4555 = vunpack.c.l.b16 %v4427
        %v4556 = vunpack.c.l.b16 %v4428
        %v4557 = vunpack.c.l.b16 %v4429
        %v4558 = vunpack.c.l.b16 %v4430
        %v4559 = vunpack.c.l.b16 %v4431
        %v4560 = vunpack.c.l.b16 %v4432
        %v4561 = vunpack.c.l.b16 %v4433
        %v4562 = vunpack.c.l.b16 %v4434
        %v4563 = vunpack.c.l.b16 %v4435
        %v4564 = vunpack.c.l.b16 %v4436
        %v4565 = vunpack.c.l.b16 %v4437
        %v4566 = vpack.c.b16 %v4551, %v4550
        %v4567 = vpack.c.b16 %v4553, %v4552
        %v4568 = vpack.c.b16 %v4555, %v4554
        %v4569 = vpack.c.b16 %v4557, %v4556
        %v4570 = vpack.c.b16 %v4559, %v4558
        %v4571 = vpack.c.b16 %v4561, %v4560
        %v4572 = vpack.c.b16 %v4563, %v4562
        %v4573 = vpack.c.b16 %v4565, %v4564
        %4582 = vmatpush.bf16.msra.mxu0 %v4573
        %4583 = vmatpush.bf16.msra.mxu0 %v4572
        %4584 = vmatpush.bf16.msra.mxu0 %v4571
        %4585 = vmatpush.bf16.msra.mxu0 %v4570
        %4586 = vmatpush.bf16.msra.mxu0 %v4569
        %4587 = vmatpush.bf16.msra.mxu0 %v4568
        %4588 = vmatpush.bf16.msra.mxu0 %v4567
        %4589 = vmatpush.bf16.msra.mxu0 %v4566
        %4590 = vmatmul.bf16.gmra.mxu0 %v4502
        %v4591 = vpop.f32.mrf.mxu0
        %v4592 = vadd.f32 0.0, %v4591
        %v4593 = vpop.f32.mrf.mxu0
        %v4594 = vadd.f32 0.0, %v4593
        %4595 = vmatmul.bf16.gmra.mxu0 %v4503
        %v4596 = vpop.f32.mrf.mxu0
        %v4597 = vadd.f32 0.0, %v4596
        %v4598 = vpop.f32.mrf.mxu0
        %v4599 = vadd.f32 0.0, %v4598
        %4600 = vmatmul.bf16.gmra.mxu0 %v4504
        %v4601 = vpop.f32.mrf.mxu0
        %v4602 = vadd.f32 0.0, %v4601
        %v4603 = vpop.f32.mrf.mxu0
        %v4604 = vadd.f32 0.0, %v4603
        %4605 = vmatmul.bf16.gmra.mxu0 %v4505
        %v4606 = vpop.f32.mrf.mxu0
        %v4607 = vadd.f32 0.0, %v4606
        %v4608 = vpop.f32.mrf.mxu0
        %v4609 = vadd.f32 0.0, %v4608
        %4610 = vmatmul.bf16.gmra.mxu0 %v4506
        %v4611 = vpop.f32.mrf.mxu0
        %v4612 = vadd.f32 0.0, %v4611
        %v4613 = vpop.f32.mrf.mxu0
        %v4614 = vadd.f32 0.0, %v4613
        %4615 = vmatmul.bf16.gmra.mxu0 %v4507
        %v4616 = vpop.f32.mrf.mxu0
        %v4617 = vadd.f32 0.0, %v4616
        %v4618 = vpop.f32.mrf.mxu0
        %v4619 = vadd.f32 0.0, %v4618
        %4620 = vmatmul.bf16.gmra.mxu0 %v4508
        %v4621 = vpop.f32.mrf.mxu0
        %v4622 = vadd.f32 0.0, %v4621
        %v4623 = vpop.f32.mrf.mxu0
        %v4624 = vadd.f32 0.0, %v4623
        %4625 = vmatmul.bf16.gmra.mxu0 %v4509
        %v4626 = vpop.f32.mrf.mxu0
        %v4627 = vadd.f32 0.0, %v4626
        %v4628 = vpop.f32.mrf.mxu0
        %v4629 = vadd.f32 0.0, %v4628
        %4630 = vmatmul.bf16.gmra.mxu0 %v4510
        %v4631 = vpop.f32.mrf.mxu0
        %v4632 = vadd.f32 0.0, %v4631
        %v4633 = vpop.f32.mrf.mxu0
        %v4634 = vadd.f32 0.0, %v4633
        %4635 = vmatmul.bf16.gmra.mxu0 %v4511
        %v4636 = vpop.f32.mrf.mxu0
        %v4637 = vadd.f32 0.0, %v4636
        %v4638 = vpop.f32.mrf.mxu0
        %v4639 = vadd.f32 0.0, %v4638
        %4640 = vmatmul.bf16.gmra.mxu0 %v4512
        %v4641 = vpop.f32.mrf.mxu0
        %v4642 = vadd.f32 0.0, %v4641
        %v4643 = vpop.f32.mrf.mxu0
        %v4644 = vadd.f32 0.0, %v4643
        %4645 = vmatmul.bf16.gmra.mxu0 %v4513
        %v4646 = vpop.f32.mrf.mxu0
        %v4647 = vadd.f32 0.0, %v4646
        %v4648 = vpop.f32.mrf.mxu0
        %v4649 = vadd.f32 0.0, %v4648
        %4650 = vmatmul.bf16.gmra.mxu0 %v4514
        %v4651 = vpop.f32.mrf.mxu0
        %v4652 = vadd.f32 0.0, %v4651
        %v4653 = vpop.f32.mrf.mxu0
        %v4654 = vadd.f32 0.0, %v4653
        %4655 = vmatmul.bf16.gmra.mxu0 %v4515
        %v4656 = vpop.f32.mrf.mxu0
        %v4657 = vadd.f32 0.0, %v4656
        %v4658 = vpop.f32.mrf.mxu0
        %v4659 = vadd.f32 0.0, %v4658
        %4660 = vmatmul.bf16.gmra.mxu0 %v4516
        %v4661 = vpop.f32.mrf.mxu0
        %v4662 = vadd.f32 0.0, %v4661
        %v4663 = vpop.f32.mrf.mxu0
        %v4664 = vadd.f32 0.0, %v4663
        %4665 = vmatmul.bf16.gmra.mxu0 %v4517
        %v4666 = vpop.f32.mrf.mxu0
        %v4667 = vadd.f32 0.0, %v4666
        %v4668 = vpop.f32.mrf.mxu0
        %v4669 = vadd.f32 0.0, %v4668
        %4670 = vdwg.mxu0
        %v4671 = vadd.f32 %v4357, %v4592
        %v4672 = vadd.f32 %v4358, %v4594
        %v4673 = vadd.f32 %v4359, %v4597
        %v4674 = vadd.f32 %v4360, %v4599
        %v4675 = vadd.f32 %v4361, %v4602
        %v4676 = vadd.f32 %v4362, %v4604
        %v4677 = vadd.f32 %v4363, %v4607
        %v4678 = vadd.f32 %v4364, %v4609
        %v4679 = vadd.f32 %v4365, %v4612
        %v4680 = vadd.f32 %v4366, %v4614
        %v4681 = vadd.f32 %v4367, %v4617
        %v4682 = vadd.f32 %v4368, %v4619
        %v4683 = vadd.f32 %v4369, %v4622
        %v4684 = vadd.f32 %v4370, %v4624
        %v4685 = vadd.f32 %v4371, %v4627
        %v4686 = vadd.f32 %v4372, %v4629
        %v4687 = vadd.f32 %v4373, %v4632
        %v4688 = vadd.f32 %v4374, %v4634
        %v4689 = vadd.f32 %v4375, %v4637
        %v4690 = vadd.f32 %v4376, %v4639
        %v4691 = vadd.f32 %v4377, %v4642
        %v4692 = vadd.f32 %v4378, %v4644
        %v4693 = vadd.f32 %v4379, %v4647
        %v4694 = vadd.f32 %v4380, %v4649
        %v4695 = vadd.f32 %v4381, %v4652
        %v4696 = vadd.f32 %v4382, %v4654
        %v4697 = vadd.f32 %v4383, %v4657
        %v4698 = vadd.f32 %v4384, %v4659
        %v4699 = vadd.f32 %v4385, %v4662
        %v4700 = vadd.f32 %v4386, %v4664
        %v4701 = vadd.f32 %v4387, %v4667
        %v4702 = vadd.f32 %v4388, %v4669
        %v4703 = vld [vmem:[#allocation2 + $0x10] sm:$0xf]
        %v4704 = vld [vmem:[#allocation2 + $0x14] sm:$0xf]
        %v4705 = vld [vmem:[#allocation2 + $0x18] sm:$0xf]
        %v4706 = vld [vmem:[#allocation2 + $0x1c] sm:$0xf]
        %v4707 = vld [vmem:[#allocation2 + $0x20] sm:$0xf]
        %v4708 = vld [vmem:[#allocation2 + $0x24] sm:$0xf]
        %v4709 = vld [vmem:[#allocation2 + $0x28] sm:$0xf]
        %v4710 = vld [vmem:[#allocation2 + $0x2c] sm:$0xf]
        %v4711 = vld [vmem:[#allocation2 + $0x30] sm:$0xf]
        %v4712 = vld [vmem:[#allocation2 + $0x34] sm:$0xf]
        %v4713 = vld [vmem:[#allocation2 + $0x38] sm:$0xf]
        %v4714 = vld [vmem:[#allocation2 + $0x3c] sm:$0xf]
        %v4715 = vld [vmem:[#allocation2 + $0x40] sm:$0xf]
        %v4716 = vld [vmem:[#allocation2 + $0x44] sm:$0xf]
        %v4717 = vld [vmem:[#allocation2 + $0x48] sm:$0xf]
        %v4718 = vld [vmem:[#allocation2 + $0x4c] sm:$0xf]
        %v4719 = vld [vmem:[#allocation2 + $0x50] sm:$0xf]
        %v4720 = vld [vmem:[#allocation2 + $0x54] sm:$0xf]
        %v4721 = vld [vmem:[#allocation2 + $0x58] sm:$0xf]
        %v4722 = vld [vmem:[#allocation2 + $0x5c] sm:$0xf]
        %v4723 = vld [vmem:[#allocation2 + $0x60] sm:$0xf]
        %v4724 = vld [vmem:[#allocation2 + $0x64] sm:$0xf]
        %v4725 = vld [vmem:[#allocation2 + $0x68] sm:$0xf]
        %v4726 = vld [vmem:[#allocation2 + $0x6c] sm:$0xf]
        %v4727 = vld [vmem:[#allocation2 + $0x70] sm:$0xf]
        %v4728 = vld [vmem:[#allocation2 + $0x74] sm:$0xf]
        %v4729 = vld [vmem:[#allocation2 + $0x78] sm:$0xf]
        %v4730 = vld [vmem:[#allocation2 + $0x7c] sm:$0xf]
        %v4731 = vld [vmem:[#allocation2 + $0x80] sm:$0xf]
        %v4732 = vld [vmem:[#allocation2 + $0x84] sm:$0xf]
        %v4733 = vld [vmem:[#allocation2 + $0x88] sm:$0xf]
        %v4734 = vld [vmem:[#allocation2 + $0x8c] sm:$0xf]
        %s4735 = scalar_lea.vmem [#allocation6], 384
        %v4736 = vld [vmem:[%s4735] sm:$0xf]
        %v4737 = vld [vmem:[%s4735 + $0x4] sm:$0xf]
        %v4738 = vld [vmem:[%s4735 + $0x8] sm:$0xf]
        %v4739 = vld [vmem:[%s4735 + $0xc] sm:$0xf]
        %v4740 = vld [vmem:[%s4735 + $0x10] sm:$0xf]
        %v4741 = vld [vmem:[%s4735 + $0x14] sm:$0xf]
        %v4742 = vld [vmem:[%s4735 + $0x18] sm:$0xf]
        %v4743 = vld [vmem:[%s4735 + $0x1c] sm:$0xf]
        %v4744 = vld [vmem:[%s4735 + $0x20] sm:$0xf]
        %v4745 = vld [vmem:[%s4735 + $0x24] sm:$0xf]
        %v4746 = vld [vmem:[%s4735 + $0x28] sm:$0xf]
        %v4747 = vld [vmem:[%s4735 + $0x2c] sm:$0xf]
        %v4748 = vld [vmem:[%s4735 + $0x30] sm:$0xf]
        %v4749 = vld [vmem:[%s4735 + $0x34] sm:$0xf]
        %v4750 = vld [vmem:[%s4735 + $0x38] sm:$0xf]
        %v4751 = vld [vmem:[%s4735 + $0x3c] sm:$0xf]
        %v4784 = vunpack.c.l.b16 %v4703
        %v4785 = vunpack.c.l.b16 %v4704
        %v4786 = vunpack.c.l.b16 %v4705
        %v4787 = vunpack.c.l.b16 %v4706
        %v4788 = vunpack.c.l.b16 %v4707
        %v4789 = vunpack.c.l.b16 %v4708
        %v4790 = vunpack.c.l.b16 %v4709
        %v4791 = vunpack.c.l.b16 %v4710
        %v4792 = vunpack.c.l.b16 %v4711
        %v4793 = vunpack.c.l.b16 %v4712
        %v4794 = vunpack.c.l.b16 %v4713
        %v4795 = vunpack.c.l.b16 %v4714
        %v4796 = vunpack.c.l.b16 %v4715
        %v4797 = vunpack.c.l.b16 %v4716
        %v4798 = vunpack.c.l.b16 %v4717
        %v4799 = vunpack.c.l.b16 %v4718
        %v4800 = vunpack.c.l.b16 %v4719
        %v4801 = vunpack.c.l.b16 %v4720
        %v4802 = vunpack.c.l.b16 %v4721
        %v4803 = vunpack.c.l.b16 %v4722
        %v4804 = vunpack.c.l.b16 %v4723
        %v4805 = vunpack.c.l.b16 %v4724
        %v4806 = vunpack.c.l.b16 %v4725
        %v4807 = vunpack.c.l.b16 %v4726
        %v4808 = vunpack.c.l.b16 %v4727
        %v4809 = vunpack.c.l.b16 %v4728
        %v4810 = vunpack.c.l.b16 %v4729
        %v4811 = vunpack.c.l.b16 %v4730
        %v4812 = vunpack.c.l.b16 %v4731
        %v4813 = vunpack.c.l.b16 %v4732
        %v4814 = vunpack.c.l.b16 %v4733
        %v4815 = vunpack.c.l.b16 %v4734
        %v4816 = vpack.c.b16 %v4785, %v4784
        %v4817 = vpack.c.b16 %v4787, %v4786
        %v4818 = vpack.c.b16 %v4789, %v4788
        %v4819 = vpack.c.b16 %v4791, %v4790
        %v4820 = vpack.c.b16 %v4793, %v4792
        %v4821 = vpack.c.b16 %v4795, %v4794
        %v4822 = vpack.c.b16 %v4797, %v4796
        %v4823 = vpack.c.b16 %v4799, %v4798
        %v4824 = vpack.c.b16 %v4801, %v4800
        %v4825 = vpack.c.b16 %v4803, %v4802
        %v4826 = vpack.c.b16 %v4805, %v4804
        %v4827 = vpack.c.b16 %v4807, %v4806
        %v4828 = vpack.c.b16 %v4809, %v4808
        %v4829 = vpack.c.b16 %v4811, %v4810
        %v4830 = vpack.c.b16 %v4813, %v4812
        %v4831 = vpack.c.b16 %v4815, %v4814
        %v4864 = vunpack.c.l.b16 %v4736
        %v4865 = vunpack.c.l.b16 %v4737
        %v4866 = vunpack.c.l.b16 %v4738
        %v4867 = vunpack.c.l.b16 %v4739
        %v4868 = vunpack.c.l.b16 %v4740
        %v4869 = vunpack.c.l.b16 %v4741
        %v4870 = vunpack.c.l.b16 %v4742
        %v4871 = vunpack.c.l.b16 %v4743
        %v4872 = vunpack.c.l.b16 %v4744
        %v4873 = vunpack.c.l.b16 %v4745
        %v4874 = vunpack.c.l.b16 %v4746
        %v4875 = vunpack.c.l.b16 %v4747
        %v4876 = vunpack.c.l.b16 %v4748
        %v4877 = vunpack.c.l.b16 %v4749
        %v4878 = vunpack.c.l.b16 %v4750
        %v4879 = vunpack.c.l.b16 %v4751
        %v4880 = vpack.c.b16 %v4865, %v4864
        %v4881 = vpack.c.b16 %v4867, %v4866
        %v4882 = vpack.c.b16 %v4869, %v4868
        %v4883 = vpack.c.b16 %v4871, %v4870
        %v4884 = vpack.c.b16 %v4873, %v4872
        %v4885 = vpack.c.b16 %v4875, %v4874
        %v4886 = vpack.c.b16 %v4877, %v4876
        %v4887 = vpack.c.b16 %v4879, %v4878
        %4896 = vmatpush.bf16.msra.mxu0 %v4887
        %4897 = vmatpush.bf16.msra.mxu0 %v4886
        %4898 = vmatpush.bf16.msra.mxu0 %v4885
        %4899 = vmatpush.bf16.msra.mxu0 %v4884
        %4900 = vmatpush.bf16.msra.mxu0 %v4883
        %4901 = vmatpush.bf16.msra.mxu0 %v4882
        %4902 = vmatpush.bf16.msra.mxu0 %v4881
        %4903 = vmatpush.bf16.msra.mxu0 %v4880
        %4904 = vmatmul.bf16.gmra.mxu0 %v4816
        %v4905 = vpop.f32.mrf.mxu0
        %v4906 = vadd.f32 0.0, %v4905
        %v4907 = vpop.f32.mrf.mxu0
        %v4908 = vadd.f32 0.0, %v4907
        %4909 = vmatmul.bf16.gmra.mxu0 %v4817
        %v4910 = vpop.f32.mrf.mxu0
        %v4911 = vadd.f32 0.0, %v4910
        %v4912 = vpop.f32.mrf.mxu0
        %v4913 = vadd.f32 0.0, %v4912
        %4914 = vmatmul.bf16.gmra.mxu0 %v4818
        %v4915 = vpop.f32.mrf.mxu0
        %v4916 = vadd.f32 0.0, %v4915
        %v4917 = vpop.f32.mrf.mxu0
        %v4918 = vadd.f32 0.0, %v4917
        %4919 = vmatmul.bf16.gmra.mxu0 %v4819
        %v4920 = vpop.f32.mrf.mxu0
        %v4921 = vadd.f32 0.0, %v4920
        %v4922 = vpop.f32.mrf.mxu0
        %v4923 = vadd.f32 0.0, %v4922
        %4924 = vmatmul.bf16.gmra.mxu0 %v4820
        %v4925 = vpop.f32.mrf.mxu0
        %v4926 = vadd.f32 0.0, %v4925
        %v4927 = vpop.f32.mrf.mxu0
        %v4928 = vadd.f32 0.0, %v4927
        %4929 = vmatmul.bf16.gmra.mxu0 %v4821
        %v4930 = vpop.f32.mrf.mxu0
        %v4931 = vadd.f32 0.0, %v4930
        %v4932 = vpop.f32.mrf.mxu0
        %v4933 = vadd.f32 0.0, %v4932
        %4934 = vmatmul.bf16.gmra.mxu0 %v4822
        %v4935 = vpop.f32.mrf.mxu0
        %v4936 = vadd.f32 0.0, %v4935
        %v4937 = vpop.f32.mrf.mxu0
        %v4938 = vadd.f32 0.0, %v4937
        %4939 = vmatmul.bf16.gmra.mxu0 %v4823
        %v4940 = vpop.f32.mrf.mxu0
        %v4941 = vadd.f32 0.0, %v4940
        %v4942 = vpop.f32.mrf.mxu0
        %v4943 = vadd.f32 0.0, %v4942
        %4944 = vmatmul.bf16.gmra.mxu0 %v4824
        %v4945 = vpop.f32.mrf.mxu0
        %v4946 = vadd.f32 0.0, %v4945
        %v4947 = vpop.f32.mrf.mxu0
        %v4948 = vadd.f32 0.0, %v4947
        %4949 = vmatmul.bf16.gmra.mxu0 %v4825
        %v4950 = vpop.f32.mrf.mxu0
        %v4951 = vadd.f32 0.0, %v4950
        %v4952 = vpop.f32.mrf.mxu0
        %v4953 = vadd.f32 0.0, %v4952
        %4954 = vmatmul.bf16.gmra.mxu0 %v4826
        %v4955 = vpop.f32.mrf.mxu0
        %v4956 = vadd.f32 0.0, %v4955
        %v4957 = vpop.f32.mrf.mxu0
        %v4958 = vadd.f32 0.0, %v4957
        %4959 = vmatmul.bf16.gmra.mxu0 %v4827
        %v4960 = vpop.f32.mrf.mxu0
        %v4961 = vadd.f32 0.0, %v4960
        %v4962 = vpop.f32.mrf.mxu0
        %v4963 = vadd.f32 0.0, %v4962
        %4964 = vmatmul.bf16.gmra.mxu0 %v4828
        %v4965 = vpop.f32.mrf.mxu0
        %v4966 = vadd.f32 0.0, %v4965
        %v4967 = vpop.f32.mrf.mxu0
        %v4968 = vadd.f32 0.0, %v4967
        %4969 = vmatmul.bf16.gmra.mxu0 %v4829
        %v4970 = vpop.f32.mrf.mxu0
        %v4971 = vadd.f32 0.0, %v4970
        %v4972 = vpop.f32.mrf.mxu0
        %v4973 = vadd.f32 0.0, %v4972
        %4974 = vmatmul.bf16.gmra.mxu0 %v4830
        %v4975 = vpop.f32.mrf.mxu0
        %v4976 = vadd.f32 0.0, %v4975
        %v4977 = vpop.f32.mrf.mxu0
        %v4978 = vadd.f32 0.0, %v4977
        %4979 = vmatmul.bf16.gmra.mxu0 %v4831
        %v4980 = vpop.f32.mrf.mxu0
        %v4981 = vadd.f32 0.0, %v4980
        %v4982 = vpop.f32.mrf.mxu0
        %v4983 = vadd.f32 0.0, %v4982
        %4984 = vdwg.mxu0
        %v4985 = vadd.f32 %v4671, %v4906
        %v4986 = vadd.f32 %v4672, %v4908
        %v4987 = vadd.f32 %v4673, %v4911
        %v4988 = vadd.f32 %v4674, %v4913
        %v4989 = vadd.f32 %v4675, %v4916
        %v4990 = vadd.f32 %v4676, %v4918
        %v4991 = vadd.f32 %v4677, %v4921
        %v4992 = vadd.f32 %v4678, %v4923
        %v4993 = vadd.f32 %v4679, %v4926
        %v4994 = vadd.f32 %v4680, %v4928
        %v4995 = vadd.f32 %v4681, %v4931
        %v4996 = vadd.f32 %v4682, %v4933
        %v4997 = vadd.f32 %v4683, %v4936
        %v4998 = vadd.f32 %v4684, %v4938
        %v4999 = vadd.f32 %v4685, %v4941
        %v5000 = vadd.f32 %v4686, %v4943
        %v5001 = vadd.f32 %v4687, %v4946
        %v5002 = vadd.f32 %v4688, %v4948
        %v5003 = vadd.f32 %v4689, %v4951
        %v5004 = vadd.f32 %v4690, %v4953
        %v5005 = vadd.f32 %v4691, %v4956
        %v5006 = vadd.f32 %v4692, %v4958
        %v5007 = vadd.f32 %v4693, %v4961
        %v5008 = vadd.f32 %v4694, %v4963
        %v5009 = vadd.f32 %v4695, %v4966
        %v5010 = vadd.f32 %v4696, %v4968
        %v5011 = vadd.f32 %v4697, %v4971
        %v5012 = vadd.f32 %v4698, %v4973
        %v5013 = vadd.f32 %v4699, %v4976
        %v5014 = vadd.f32 %v4700, %v4978
        %v5015 = vadd.f32 %v4701, %v4981
        %v5016 = vadd.f32 %v4702, %v4983
        %v5017 = vld [vmem:[%s290 + $0x10] sm:$0xf]
        %v5018 = vld [vmem:[%s290 + $0x14] sm:$0xf]
        %v5019 = vld [vmem:[%s290 + $0x18] sm:$0xf]
        %v5020 = vld [vmem:[%s290 + $0x1c] sm:$0xf]
        %v5021 = vld [vmem:[%s290 + $0x20] sm:$0xf]
        %v5022 = vld [vmem:[%s290 + $0x24] sm:$0xf]
        %v5023 = vld [vmem:[%s290 + $0x28] sm:$0xf]
        %v5024 = vld [vmem:[%s290 + $0x2c] sm:$0xf]
        %v5025 = vld [vmem:[%s290 + $0x30] sm:$0xf]
        %v5026 = vld [vmem:[%s290 + $0x34] sm:$0xf]
        %v5027 = vld [vmem:[%s290 + $0x38] sm:$0xf]
        %v5028 = vld [vmem:[%s290 + $0x3c] sm:$0xf]
        %v5029 = vld [vmem:[%s290 + $0x40] sm:$0xf]
        %v5030 = vld [vmem:[%s290 + $0x44] sm:$0xf]
        %v5031 = vld [vmem:[%s290 + $0x48] sm:$0xf]
        %v5032 = vld [vmem:[%s290 + $0x4c] sm:$0xf]
        %v5033 = vld [vmem:[%s290 + $0x50] sm:$0xf]
        %v5034 = vld [vmem:[%s290 + $0x54] sm:$0xf]
        %v5035 = vld [vmem:[%s290 + $0x58] sm:$0xf]
        %v5036 = vld [vmem:[%s290 + $0x5c] sm:$0xf]
        %v5037 = vld [vmem:[%s290 + $0x60] sm:$0xf]
        %v5038 = vld [vmem:[%s290 + $0x64] sm:$0xf]
        %v5039 = vld [vmem:[%s290 + $0x68] sm:$0xf]
        %v5040 = vld [vmem:[%s290 + $0x6c] sm:$0xf]
        %v5041 = vld [vmem:[%s290 + $0x70] sm:$0xf]
        %v5042 = vld [vmem:[%s290 + $0x74] sm:$0xf]
        %v5043 = vld [vmem:[%s290 + $0x78] sm:$0xf]
        %v5044 = vld [vmem:[%s290 + $0x7c] sm:$0xf]
        %v5045 = vld [vmem:[%s290 + $0x80] sm:$0xf]
        %v5046 = vld [vmem:[%s290 + $0x84] sm:$0xf]
        %v5047 = vld [vmem:[%s290 + $0x88] sm:$0xf]
        %v5048 = vld [vmem:[%s290 + $0x8c] sm:$0xf]
        %s5049 = scalar_lea.vmem [#allocation6], 448
        %v5050 = vld [vmem:[%s5049] sm:$0xf]
        %v5051 = vld [vmem:[%s5049 + $0x4] sm:$0xf]
        %v5052 = vld [vmem:[%s5049 + $0x8] sm:$0xf]
        %v5053 = vld [vmem:[%s5049 + $0xc] sm:$0xf]
        %v5054 = vld [vmem:[%s5049 + $0x10] sm:$0xf]
        %v5055 = vld [vmem:[%s5049 + $0x14] sm:$0xf]
        %v5056 = vld [vmem:[%s5049 + $0x18] sm:$0xf]
        %v5057 = vld [vmem:[%s5049 + $0x1c] sm:$0xf]
        %v5058 = vld [vmem:[%s5049 + $0x20] sm:$0xf]
        %v5059 = vld [vmem:[%s5049 + $0x24] sm:$0xf]
        %v5060 = vld [vmem:[%s5049 + $0x28] sm:$0xf]
        %v5061 = vld [vmem:[%s5049 + $0x2c] sm:$0xf]
        %v5062 = vld [vmem:[%s5049 + $0x30] sm:$0xf]
        %v5063 = vld [vmem:[%s5049 + $0x34] sm:$0xf]
        %v5064 = vld [vmem:[%s5049 + $0x38] sm:$0xf]
        %v5065 = vld [vmem:[%s5049 + $0x3c] sm:$0xf]
        %v5098 = vunpack.c.l.b16 %v5017
        %v5099 = vunpack.c.l.b16 %v5018
        %v5100 = vunpack.c.l.b16 %v5019
        %v5101 = vunpack.c.l.b16 %v5020
        %v5102 = vunpack.c.l.b16 %v5021
        %v5103 = vunpack.c.l.b16 %v5022
        %v5104 = vunpack.c.l.b16 %v5023
        %v5105 = vunpack.c.l.b16 %v5024
        %v5106 = vunpack.c.l.b16 %v5025
        %v5107 = vunpack.c.l.b16 %v5026
        %v5108 = vunpack.c.l.b16 %v5027
        %v5109 = vunpack.c.l.b16 %v5028
        %v5110 = vunpack.c.l.b16 %v5029
        %v5111 = vunpack.c.l.b16 %v5030
        %v5112 = vunpack.c.l.b16 %v5031
        %v5113 = vunpack.c.l.b16 %v5032
        %v5114 = vunpack.c.l.b16 %v5033
        %v5115 = vunpack.c.l.b16 %v5034
        %v5116 = vunpack.c.l.b16 %v5035
        %v5117 = vunpack.c.l.b16 %v5036
        %v5118 = vunpack.c.l.b16 %v5037
        %v5119 = vunpack.c.l.b16 %v5038
        %v5120 = vunpack.c.l.b16 %v5039
        %v5121 = vunpack.c.l.b16 %v5040
        %v5122 = vunpack.c.l.b16 %v5041
        %v5123 = vunpack.c.l.b16 %v5042
        %v5124 = vunpack.c.l.b16 %v5043
        %v5125 = vunpack.c.l.b16 %v5044
        %v5126 = vunpack.c.l.b16 %v5045
        %v5127 = vunpack.c.l.b16 %v5046
        %v5128 = vunpack.c.l.b16 %v5047
        %v5129 = vunpack.c.l.b16 %v5048
        %v5130 = vpack.c.b16 %v5099, %v5098
        %v5131 = vpack.c.b16 %v5101, %v5100
        %v5132 = vpack.c.b16 %v5103, %v5102
        %v5133 = vpack.c.b16 %v5105, %v5104
        %v5134 = vpack.c.b16 %v5107, %v5106
        %v5135 = vpack.c.b16 %v5109, %v5108
        %v5136 = vpack.c.b16 %v5111, %v5110
        %v5137 = vpack.c.b16 %v5113, %v5112
        %v5138 = vpack.c.b16 %v5115, %v5114
        %v5139 = vpack.c.b16 %v5117, %v5116
        %v5140 = vpack.c.b16 %v5119, %v5118
        %v5141 = vpack.c.b16 %v5121, %v5120
        %v5142 = vpack.c.b16 %v5123, %v5122
        %v5143 = vpack.c.b16 %v5125, %v5124
        %v5144 = vpack.c.b16 %v5127, %v5126
        %v5145 = vpack.c.b16 %v5129, %v5128
        %v5178 = vunpack.c.l.b16 %v5050
        %v5179 = vunpack.c.l.b16 %v5051
        %v5180 = vunpack.c.l.b16 %v5052
        %v5181 = vunpack.c.l.b16 %v5053
        %v5182 = vunpack.c.l.b16 %v5054
        %v5183 = vunpack.c.l.b16 %v5055
        %v5184 = vunpack.c.l.b16 %v5056
        %v5185 = vunpack.c.l.b16 %v5057
        %v5186 = vunpack.c.l.b16 %v5058
        %v5187 = vunpack.c.l.b16 %v5059
        %v5188 = vunpack.c.l.b16 %v5060
        %v5189 = vunpack.c.l.b16 %v5061
        %v5190 = vunpack.c.l.b16 %v5062
        %v5191 = vunpack.c.l.b16 %v5063
        %v5192 = vunpack.c.l.b16 %v5064
        %v5193 = vunpack.c.l.b16 %v5065
        %v5194 = vpack.c.b16 %v5179, %v5178
        %v5195 = vpack.c.b16 %v5181, %v5180
        %v5196 = vpack.c.b16 %v5183, %v5182
        %v5197 = vpack.c.b16 %v5185, %v5184
        %v5198 = vpack.c.b16 %v5187, %v5186
        %v5199 = vpack.c.b16 %v5189, %v5188
        %v5200 = vpack.c.b16 %v5191, %v5190
        %v5201 = vpack.c.b16 %v5193, %v5192
        %5210 = vmatpush.bf16.msra.mxu0 %v5201
        %5211 = vmatpush.bf16.msra.mxu0 %v5200
        %5212 = vmatpush.bf16.msra.mxu0 %v5199
        %5213 = vmatpush.bf16.msra.mxu0 %v5198
        %5214 = vmatpush.bf16.msra.mxu0 %v5197
        %5215 = vmatpush.bf16.msra.mxu0 %v5196
        %5216 = vmatpush.bf16.msra.mxu0 %v5195
        %5217 = vmatpush.bf16.msra.mxu0 %v5194
        %5218 = vmatmul.bf16.gmra.mxu0 %v5130
        %v5219 = vpop.f32.mrf.mxu0
        %v5220 = vadd.f32 0.0, %v5219
        %v5221 = vpop.f32.mrf.mxu0
        %v5222 = vadd.f32 0.0, %v5221
        %5223 = vmatmul.bf16.gmra.mxu0 %v5131
        %v5224 = vpop.f32.mrf.mxu0
        %v5225 = vadd.f32 0.0, %v5224
        %v5226 = vpop.f32.mrf.mxu0
        %v5227 = vadd.f32 0.0, %v5226
        %5228 = vmatmul.bf16.gmra.mxu0 %v5132
        %v5229 = vpop.f32.mrf.mxu0
        %v5230 = vadd.f32 0.0, %v5229
        %v5231 = vpop.f32.mrf.mxu0
        %v5232 = vadd.f32 0.0, %v5231
        %5233 = vmatmul.bf16.gmra.mxu0 %v5133
        %v5234 = vpop.f32.mrf.mxu0
        %v5235 = vadd.f32 0.0, %v5234
        %v5236 = vpop.f32.mrf.mxu0
        %v5237 = vadd.f32 0.0, %v5236
        %5238 = vmatmul.bf16.gmra.mxu0 %v5134
        %v5239 = vpop.f32.mrf.mxu0
        %v5240 = vadd.f32 0.0, %v5239
        %v5241 = vpop.f32.mrf.mxu0
        %v5242 = vadd.f32 0.0, %v5241
        %5243 = vmatmul.bf16.gmra.mxu0 %v5135
        %v5244 = vpop.f32.mrf.mxu0
        %v5245 = vadd.f32 0.0, %v5244
        %v5246 = vpop.f32.mrf.mxu0
        %v5247 = vadd.f32 0.0, %v5246
        %5248 = vmatmul.bf16.gmra.mxu0 %v5136
        %v5249 = vpop.f32.mrf.mxu0
        %v5250 = vadd.f32 0.0, %v5249
        %v5251 = vpop.f32.mrf.mxu0
        %v5252 = vadd.f32 0.0, %v5251
        %5253 = vmatmul.bf16.gmra.mxu0 %v5137
        %v5254 = vpop.f32.mrf.mxu0
        %v5255 = vadd.f32 0.0, %v5254
        %v5256 = vpop.f32.mrf.mxu0
        %v5257 = vadd.f32 0.0, %v5256
        %5258 = vmatmul.bf16.gmra.mxu0 %v5138
        %v5259 = vpop.f32.mrf.mxu0
        %v5260 = vadd.f32 0.0, %v5259
        %v5261 = vpop.f32.mrf.mxu0
        %v5262 = vadd.f32 0.0, %v5261
        %5263 = vmatmul.bf16.gmra.mxu0 %v5139
        %v5264 = vpop.f32.mrf.mxu0
        %v5265 = vadd.f32 0.0, %v5264
        %v5266 = vpop.f32.mrf.mxu0
        %v5267 = vadd.f32 0.0, %v5266
        %5268 = vmatmul.bf16.gmra.mxu0 %v5140
        %v5269 = vpop.f32.mrf.mxu0
        %v5270 = vadd.f32 0.0, %v5269
        %v5271 = vpop.f32.mrf.mxu0
        %v5272 = vadd.f32 0.0, %v5271
        %5273 = vmatmul.bf16.gmra.mxu0 %v5141
        %v5274 = vpop.f32.mrf.mxu0
        %v5275 = vadd.f32 0.0, %v5274
        %v5276 = vpop.f32.mrf.mxu0
        %v5277 = vadd.f32 0.0, %v5276
        %5278 = vmatmul.bf16.gmra.mxu0 %v5142
        %v5279 = vpop.f32.mrf.mxu0
        %v5280 = vadd.f32 0.0, %v5279
        %v5281 = vpop.f32.mrf.mxu0
        %v5282 = vadd.f32 0.0, %v5281
        %5283 = vmatmul.bf16.gmra.mxu0 %v5143
        %v5284 = vpop.f32.mrf.mxu0
        %v5285 = vadd.f32 0.0, %v5284
        %v5286 = vpop.f32.mrf.mxu0
        %v5287 = vadd.f32 0.0, %v5286
        %5288 = vmatmul.bf16.gmra.mxu0 %v5144
        %v5289 = vpop.f32.mrf.mxu0
        %v5290 = vadd.f32 0.0, %v5289
        %v5291 = vpop.f32.mrf.mxu0
        %v5292 = vadd.f32 0.0, %v5291
        %5293 = vmatmul.bf16.gmra.mxu0 %v5145
        %v5294 = vpop.f32.mrf.mxu0
        %v5295 = vadd.f32 0.0, %v5294
        %v5296 = vpop.f32.mrf.mxu0
        %v5297 = vadd.f32 0.0, %v5296
        %5298 = vdwg.mxu0
        %v5299 = vadd.f32 %v4985, %v5220
        %v5300 = vadd.f32 %v4986, %v5222
        %v5301 = vadd.f32 %v4987, %v5225
        %v5302 = vadd.f32 %v4988, %v5227
        %v5303 = vadd.f32 %v4989, %v5230
        %v5304 = vadd.f32 %v4990, %v5232
        %v5305 = vadd.f32 %v4991, %v5235
        %v5306 = vadd.f32 %v4992, %v5237
        %v5307 = vadd.f32 %v4993, %v5240
        %v5308 = vadd.f32 %v4994, %v5242
        %v5309 = vadd.f32 %v4995, %v5245
        %v5310 = vadd.f32 %v4996, %v5247
        %v5311 = vadd.f32 %v4997, %v5250
        %v5312 = vadd.f32 %v4998, %v5252
        %v5313 = vadd.f32 %v4999, %v5255
        %v5314 = vadd.f32 %v5000, %v5257
        %v5315 = vadd.f32 %v5001, %v5260
        %v5316 = vadd.f32 %v5002, %v5262
        %v5317 = vadd.f32 %v5003, %v5265
        %v5318 = vadd.f32 %v5004, %v5267
        %v5319 = vadd.f32 %v5005, %v5270
        %v5320 = vadd.f32 %v5006, %v5272
        %v5321 = vadd.f32 %v5007, %v5275
        %v5322 = vadd.f32 %v5008, %v5277
        %v5323 = vadd.f32 %v5009, %v5280
        %v5324 = vadd.f32 %v5010, %v5282
        %v5325 = vadd.f32 %v5011, %v5285
        %v5326 = vadd.f32 %v5012, %v5287
        %v5327 = vadd.f32 %v5013, %v5290
        %v5328 = vadd.f32 %v5014, %v5292
        %v5329 = vadd.f32 %v5015, %v5295
        %v5330 = vadd.f32 %v5016, %v5297
        %v5331 = vld [vmem:[%s2850 + $0x10] sm:$0xf]
        %v5332 = vld [vmem:[%s2850 + $0x14] sm:$0xf]
        %v5333 = vld [vmem:[%s2850 + $0x18] sm:$0xf]
        %v5334 = vld [vmem:[%s2850 + $0x1c] sm:$0xf]
        %v5335 = vld [vmem:[%s2850 + $0x20] sm:$0xf]
        %v5336 = vld [vmem:[%s2850 + $0x24] sm:$0xf]
        %v5337 = vld [vmem:[%s2850 + $0x28] sm:$0xf]
        %v5338 = vld [vmem:[%s2850 + $0x2c] sm:$0xf]
        %v5339 = vld [vmem:[%s2850 + $0x30] sm:$0xf]
        %v5340 = vld [vmem:[%s2850 + $0x34] sm:$0xf]
        %v5341 = vld [vmem:[%s2850 + $0x38] sm:$0xf]
        %v5342 = vld [vmem:[%s2850 + $0x3c] sm:$0xf]
        %v5343 = vld [vmem:[%s2850 + $0x40] sm:$0xf]
        %v5344 = vld [vmem:[%s2850 + $0x44] sm:$0xf]
        %v5345 = vld [vmem:[%s2850 + $0x48] sm:$0xf]
        %v5346 = vld [vmem:[%s2850 + $0x4c] sm:$0xf]
        %v5347 = vld [vmem:[%s2850 + $0x50] sm:$0xf]
        %v5348 = vld [vmem:[%s2850 + $0x54] sm:$0xf]
        %v5349 = vld [vmem:[%s2850 + $0x58] sm:$0xf]
        %v5350 = vld [vmem:[%s2850 + $0x5c] sm:$0xf]
        %v5351 = vld [vmem:[%s2850 + $0x60] sm:$0xf]
        %v5352 = vld [vmem:[%s2850 + $0x64] sm:$0xf]
        %v5353 = vld [vmem:[%s2850 + $0x68] sm:$0xf]
        %v5354 = vld [vmem:[%s2850 + $0x6c] sm:$0xf]
        %v5355 = vld [vmem:[%s2850 + $0x70] sm:$0xf]
        %v5356 = vld [vmem:[%s2850 + $0x74] sm:$0xf]
        %v5357 = vld [vmem:[%s2850 + $0x78] sm:$0xf]
        %v5358 = vld [vmem:[%s2850 + $0x7c] sm:$0xf]
        %v5359 = vld [vmem:[%s2850 + $0x80] sm:$0xf]
        %v5360 = vld [vmem:[%s2850 + $0x84] sm:$0xf]
        %v5361 = vld [vmem:[%s2850 + $0x88] sm:$0xf]
        %v5362 = vld [vmem:[%s2850 + $0x8c] sm:$0xf]
        %s5363 = scalar_lea.vmem [#allocation6], 512
        %v5364 = vld [vmem:[%s5363] sm:$0xf]
        %v5365 = vld [vmem:[%s5363 + $0x4] sm:$0xf]
        %v5366 = vld [vmem:[%s5363 + $0x8] sm:$0xf]
        %v5367 = vld [vmem:[%s5363 + $0xc] sm:$0xf]
        %v5368 = vld [vmem:[%s5363 + $0x10] sm:$0xf]
        %v5369 = vld [vmem:[%s5363 + $0x14] sm:$0xf]
        %v5370 = vld [vmem:[%s5363 + $0x18] sm:$0xf]
        %v5371 = vld [vmem:[%s5363 + $0x1c] sm:$0xf]
        %v5372 = vld [vmem:[%s5363 + $0x20] sm:$0xf]
        %v5373 = vld [vmem:[%s5363 + $0x24] sm:$0xf]
        %v5374 = vld [vmem:[%s5363 + $0x28] sm:$0xf]
        %v5375 = vld [vmem:[%s5363 + $0x2c] sm:$0xf]
        %v5376 = vld [vmem:[%s5363 + $0x30] sm:$0xf]
        %v5377 = vld [vmem:[%s5363 + $0x34] sm:$0xf]
        %v5378 = vld [vmem:[%s5363 + $0x38] sm:$0xf]
        %v5379 = vld [vmem:[%s5363 + $0x3c] sm:$0xf]
        %v5412 = vunpack.c.l.b16 %v5331
        %v5413 = vunpack.c.l.b16 %v5332
        %v5414 = vunpack.c.l.b16 %v5333
        %v5415 = vunpack.c.l.b16 %v5334
        %v5416 = vunpack.c.l.b16 %v5335
        %v5417 = vunpack.c.l.b16 %v5336
        %v5418 = vunpack.c.l.b16 %v5337
        %v5419 = vunpack.c.l.b16 %v5338
        %v5420 = vunpack.c.l.b16 %v5339
        %v5421 = vunpack.c.l.b16 %v5340
        %v5422 = vunpack.c.l.b16 %v5341
        %v5423 = vunpack.c.l.b16 %v5342
        %v5424 = vunpack.c.l.b16 %v5343
        %v5425 = vunpack.c.l.b16 %v5344
        %v5426 = vunpack.c.l.b16 %v5345
        %v5427 = vunpack.c.l.b16 %v5346
        %v5428 = vunpack.c.l.b16 %v5347
        %v5429 = vunpack.c.l.b16 %v5348
        %v5430 = vunpack.c.l.b16 %v5349
        %v5431 = vunpack.c.l.b16 %v5350
        %v5432 = vunpack.c.l.b16 %v5351
        %v5433 = vunpack.c.l.b16 %v5352
        %v5434 = vunpack.c.l.b16 %v5353
        %v5435 = vunpack.c.l.b16 %v5354
        %v5436 = vunpack.c.l.b16 %v5355
        %v5437 = vunpack.c.l.b16 %v5356
        %v5438 = vunpack.c.l.b16 %v5357
        %v5439 = vunpack.c.l.b16 %v5358
        %v5440 = vunpack.c.l.b16 %v5359
        %v5441 = vunpack.c.l.b16 %v5360
        %v5442 = vunpack.c.l.b16 %v5361
        %v5443 = vunpack.c.l.b16 %v5362
        %v5444 = vpack.c.b16 %v5413, %v5412
        %v5445 = vpack.c.b16 %v5415, %v5414
        %v5446 = vpack.c.b16 %v5417, %v5416
        %v5447 = vpack.c.b16 %v5419, %v5418
        %v5448 = vpack.c.b16 %v5421, %v5420
        %v5449 = vpack.c.b16 %v5423, %v5422
        %v5450 = vpack.c.b16 %v5425, %v5424
        %v5451 = vpack.c.b16 %v5427, %v5426
        %v5452 = vpack.c.b16 %v5429, %v5428
        %v5453 = vpack.c.b16 %v5431, %v5430
        %v5454 = vpack.c.b16 %v5433, %v5432
        %v5455 = vpack.c.b16 %v5435, %v5434
        %v5456 = vpack.c.b16 %v5437, %v5436
        %v5457 = vpack.c.b16 %v5439, %v5438
        %v5458 = vpack.c.b16 %v5441, %v5440
        %v5459 = vpack.c.b16 %v5443, %v5442
        %v5492 = vunpack.c.l.b16 %v5364
        %v5493 = vunpack.c.l.b16 %v5365
        %v5494 = vunpack.c.l.b16 %v5366
        %v5495 = vunpack.c.l.b16 %v5367
        %v5496 = vunpack.c.l.b16 %v5368
        %v5497 = vunpack.c.l.b16 %v5369
        %v5498 = vunpack.c.l.b16 %v5370
        %v5499 = vunpack.c.l.b16 %v5371
        %v5500 = vunpack.c.l.b16 %v5372
        %v5501 = vunpack.c.l.b16 %v5373
        %v5502 = vunpack.c.l.b16 %v5374
        %v5503 = vunpack.c.l.b16 %v5375
        %v5504 = vunpack.c.l.b16 %v5376
        %v5505 = vunpack.c.l.b16 %v5377
        %v5506 = vunpack.c.l.b16 %v5378
        %v5507 = vunpack.c.l.b16 %v5379
        %v5508 = vpack.c.b16 %v5493, %v5492
        %v5509 = vpack.c.b16 %v5495, %v5494
        %v5510 = vpack.c.b16 %v5497, %v5496
        %v5511 = vpack.c.b16 %v5499, %v5498
        %v5512 = vpack.c.b16 %v5501, %v5500
        %v5513 = vpack.c.b16 %v5503, %v5502
        %v5514 = vpack.c.b16 %v5505, %v5504
        %v5515 = vpack.c.b16 %v5507, %v5506
        %5524 = vmatpush.bf16.msra.mxu0 %v5515
        %5525 = vmatpush.bf16.msra.mxu0 %v5514
        %5526 = vmatpush.bf16.msra.mxu0 %v5513
        %5527 = vmatpush.bf16.msra.mxu0 %v5512
        %5528 = vmatpush.bf16.msra.mxu0 %v5511
        %5529 = vmatpush.bf16.msra.mxu0 %v5510
        %5530 = vmatpush.bf16.msra.mxu0 %v5509
        %5531 = vmatpush.bf16.msra.mxu0 %v5508
        %5532 = vmatmul.bf16.gmra.mxu0 %v5444
        %v5533 = vpop.f32.mrf.mxu0
        %v5534 = vadd.f32 0.0, %v5533
        %v5535 = vpop.f32.mrf.mxu0
        %v5536 = vadd.f32 0.0, %v5535
        %5537 = vmatmul.bf16.gmra.mxu0 %v5445
        %v5538 = vpop.f32.mrf.mxu0
        %v5539 = vadd.f32 0.0, %v5538
        %v5540 = vpop.f32.mrf.mxu0
        %v5541 = vadd.f32 0.0, %v5540
        %5542 = vmatmul.bf16.gmra.mxu0 %v5446
        %v5543 = vpop.f32.mrf.mxu0
        %v5544 = vadd.f32 0.0, %v5543
        %v5545 = vpop.f32.mrf.mxu0
        %v5546 = vadd.f32 0.0, %v5545
        %5547 = vmatmul.bf16.gmra.mxu0 %v5447
        %v5548 = vpop.f32.mrf.mxu0
        %v5549 = vadd.f32 0.0, %v5548
        %v5550 = vpop.f32.mrf.mxu0
        %v5551 = vadd.f32 0.0, %v5550
        %5552 = vmatmul.bf16.gmra.mxu0 %v5448
        %v5553 = vpop.f32.mrf.mxu0
        %v5554 = vadd.f32 0.0, %v5553
        %v5555 = vpop.f32.mrf.mxu0
        %v5556 = vadd.f32 0.0, %v5555
        %5557 = vmatmul.bf16.gmra.mxu0 %v5449
        %v5558 = vpop.f32.mrf.mxu0
        %v5559 = vadd.f32 0.0, %v5558
        %v5560 = vpop.f32.mrf.mxu0
        %v5561 = vadd.f32 0.0, %v5560
        %5562 = vmatmul.bf16.gmra.mxu0 %v5450
        %v5563 = vpop.f32.mrf.mxu0
        %v5564 = vadd.f32 0.0, %v5563
        %v5565 = vpop.f32.mrf.mxu0
        %v5566 = vadd.f32 0.0, %v5565
        %5567 = vmatmul.bf16.gmra.mxu0 %v5451
        %v5568 = vpop.f32.mrf.mxu0
        %v5569 = vadd.f32 0.0, %v5568
        %v5570 = vpop.f32.mrf.mxu0
        %v5571 = vadd.f32 0.0, %v5570
        %5572 = vmatmul.bf16.gmra.mxu0 %v5452
        %v5573 = vpop.f32.mrf.mxu0
        %v5574 = vadd.f32 0.0, %v5573
        %v5575 = vpop.f32.mrf.mxu0
        %v5576 = vadd.f32 0.0, %v5575
        %5577 = vmatmul.bf16.gmra.mxu0 %v5453
        %v5578 = vpop.f32.mrf.mxu0
        %v5579 = vadd.f32 0.0, %v5578
        %v5580 = vpop.f32.mrf.mxu0
        %v5581 = vadd.f32 0.0, %v5580
        %5582 = vmatmul.bf16.gmra.mxu0 %v5454
        %v5583 = vpop.f32.mrf.mxu0
        %v5584 = vadd.f32 0.0, %v5583
        %v5585 = vpop.f32.mrf.mxu0
        %v5586 = vadd.f32 0.0, %v5585
        %5587 = vmatmul.bf16.gmra.mxu0 %v5455
        %v5588 = vpop.f32.mrf.mxu0
        %v5589 = vadd.f32 0.0, %v5588
        %v5590 = vpop.f32.mrf.mxu0
        %v5591 = vadd.f32 0.0, %v5590
        %5592 = vmatmul.bf16.gmra.mxu0 %v5456
        %v5593 = vpop.f32.mrf.mxu0
        %v5594 = vadd.f32 0.0, %v5593
        %v5595 = vpop.f32.mrf.mxu0
        %v5596 = vadd.f32 0.0, %v5595
        %5597 = vmatmul.bf16.gmra.mxu0 %v5457
        %v5598 = vpop.f32.mrf.mxu0
        %v5599 = vadd.f32 0.0, %v5598
        %v5600 = vpop.f32.mrf.mxu0
        %v5601 = vadd.f32 0.0, %v5600
        %5602 = vmatmul.bf16.gmra.mxu0 %v5458
        %v5603 = vpop.f32.mrf.mxu0
        %v5604 = vadd.f32 0.0, %v5603
        %v5605 = vpop.f32.mrf.mxu0
        %v5606 = vadd.f32 0.0, %v5605
        %5607 = vmatmul.bf16.gmra.mxu0 %v5459
        %v5608 = vpop.f32.mrf.mxu0
        %v5609 = vadd.f32 0.0, %v5608
        %v5610 = vpop.f32.mrf.mxu0
        %v5611 = vadd.f32 0.0, %v5610
        %5612 = vdwg.mxu0
        %v5613 = vadd.f32 %v5299, %v5534
        %v5614 = vadd.f32 %v5300, %v5536
        %v5615 = vadd.f32 %v5301, %v5539
        %v5616 = vadd.f32 %v5302, %v5541
        %v5617 = vadd.f32 %v5303, %v5544
        %v5618 = vadd.f32 %v5304, %v5546
        %v5619 = vadd.f32 %v5305, %v5549
        %v5620 = vadd.f32 %v5306, %v5551
        %v5621 = vadd.f32 %v5307, %v5554
        %v5622 = vadd.f32 %v5308, %v5556
        %v5623 = vadd.f32 %v5309, %v5559
        %v5624 = vadd.f32 %v5310, %v5561
        %v5625 = vadd.f32 %v5311, %v5564
        %v5626 = vadd.f32 %v5312, %v5566
        %v5627 = vadd.f32 %v5313, %v5569
        %v5628 = vadd.f32 %v5314, %v5571
        %v5629 = vadd.f32 %v5315, %v5574
        %v5630 = vadd.f32 %v5316, %v5576
        %v5631 = vadd.f32 %v5317, %v5579
        %v5632 = vadd.f32 %v5318, %v5581
        %v5633 = vadd.f32 %v5319, %v5584
        %v5634 = vadd.f32 %v5320, %v5586
        %v5635 = vadd.f32 %v5321, %v5589
        %v5636 = vadd.f32 %v5322, %v5591
        %v5637 = vadd.f32 %v5323, %v5594
        %v5638 = vadd.f32 %v5324, %v5596
        %v5639 = vadd.f32 %v5325, %v5599
        %v5640 = vadd.f32 %v5326, %v5601
        %v5641 = vadd.f32 %v5327, %v5604
        %v5642 = vadd.f32 %v5328, %v5606
        %v5643 = vadd.f32 %v5329, %v5609
        %v5644 = vadd.f32 %v5330, %v5611
        %v5646 = vperm.slane %v2883, 0
        %v5648 = vadd.f32 %v5613, %v5646
        %v5649 = vadd.f32 %v5614, %v5646
        %v5650 = vadd.f32 %v5615, %v5646
        %v5651 = vadd.f32 %v5616, %v5646
        %v5652 = vadd.f32 %v5617, %v5646
        %v5653 = vadd.f32 %v5618, %v5646
        %v5654 = vadd.f32 %v5619, %v5646
        %v5655 = vadd.f32 %v5620, %v5646
        %v5656 = vadd.f32 %v5621, %v5646
        %v5657 = vadd.f32 %v5622, %v5646
        %v5658 = vadd.f32 %v5623, %v5646
        %v5659 = vadd.f32 %v5624, %v5646
        %v5660 = vadd.f32 %v5625, %v5646
        %v5661 = vadd.f32 %v5626, %v5646
        %v5662 = vadd.f32 %v5627, %v5646
        %v5663 = vadd.f32 %v5628, %v5646
        %v5664 = vadd.f32 %v5629, %v5646
        %v5665 = vadd.f32 %v5630, %v5646
        %v5666 = vadd.f32 %v5631, %v5646
        %v5667 = vadd.f32 %v5632, %v5646
        %v5668 = vadd.f32 %v5633, %v5646
        %v5669 = vadd.f32 %v5634, %v5646
        %v5670 = vadd.f32 %v5635, %v5646
        %v5671 = vadd.f32 %v5636, %v5646
        %v5672 = vadd.f32 %v5637, %v5646
        %v5673 = vadd.f32 %v5638, %v5646
        %v5674 = vadd.f32 %v5639, %v5646
        %v5675 = vadd.f32 %v5640, %v5646
        %v5676 = vadd.f32 %v5641, %v5646
        %v5677 = vadd.f32 %v5642, %v5646
        %v5678 = vadd.f32 %v5643, %v5646
        %v5679 = vadd.f32 %v5644, %v5646
        %v5680 = vmax.f32 %v5648, 0.0
        %v5681 = vmax.f32 %v5649, 0.0
        %v5682 = vmax.f32 %v5650, 0.0
        %v5683 = vmax.f32 %v5651, 0.0
        %v5684 = vmax.f32 %v5652, 0.0
        %v5685 = vmax.f32 %v5653, 0.0
        %v5686 = vmax.f32 %v5654, 0.0
        %v5687 = vmax.f32 %v5655, 0.0
        %v5688 = vmax.f32 %v5656, 0.0
        %v5689 = vmax.f32 %v5657, 0.0
        %v5690 = vmax.f32 %v5658, 0.0
        %v5691 = vmax.f32 %v5659, 0.0
        %v5692 = vmax.f32 %v5660, 0.0
        %v5693 = vmax.f32 %v5661, 0.0
        %v5694 = vmax.f32 %v5662, 0.0
        %v5695 = vmax.f32 %v5663, 0.0
        %v5696 = vmax.f32 %v5664, 0.0
        %v5697 = vmax.f32 %v5665, 0.0
        %v5698 = vmax.f32 %v5666, 0.0
        %v5699 = vmax.f32 %v5667, 0.0
        %v5700 = vmax.f32 %v5668, 0.0
        %v5701 = vmax.f32 %v5669, 0.0
        %v5702 = vmax.f32 %v5670, 0.0
        %v5703 = vmax.f32 %v5671, 0.0
        %v5704 = vmax.f32 %v5672, 0.0
        %v5705 = vmax.f32 %v5673, 0.0
        %v5706 = vmax.f32 %v5674, 0.0
        %v5707 = vmax.f32 %v5675, 0.0
        %v5708 = vmax.f32 %v5676, 0.0
        %v5709 = vmax.f32 %v5677, 0.0
        %v5710 = vmax.f32 %v5678, 0.0
        %v5711 = vmax.f32 %v5679, 0.0
        %v5712 = vpack.c.bf16 %v5680, %v5680
        %v5713 = vpack.c.bf16 %v5681, %v5681
        %v5714 = vpack.c.bf16 %v5682, %v5682
        %v5715 = vpack.c.bf16 %v5683, %v5683
        %v5716 = vpack.c.bf16 %v5684, %v5684
        %v5717 = vpack.c.bf16 %v5685, %v5685
        %v5718 = vpack.c.bf16 %v5686, %v5686
        %v5719 = vpack.c.bf16 %v5687, %v5687
        %v5720 = vpack.c.bf16 %v5688, %v5688
        %v5721 = vpack.c.bf16 %v5689, %v5689
        %v5722 = vpack.c.bf16 %v5690, %v5690
        %v5723 = vpack.c.bf16 %v5691, %v5691
        %v5724 = vpack.c.bf16 %v5692, %v5692
        %v5725 = vpack.c.bf16 %v5693, %v5693
        %v5726 = vpack.c.bf16 %v5694, %v5694
        %v5727 = vpack.c.bf16 %v5695, %v5695
        %v5728 = vpack.c.bf16 %v5696, %v5696
        %v5729 = vpack.c.bf16 %v5697, %v5697
        %v5730 = vpack.c.bf16 %v5698, %v5698
        %v5731 = vpack.c.bf16 %v5699, %v5699
        %v5732 = vpack.c.bf16 %v5700, %v5700
        %v5733 = vpack.c.bf16 %v5701, %v5701
        %v5734 = vpack.c.bf16 %v5702, %v5702
        %v5735 = vpack.c.bf16 %v5703, %v5703
        %v5736 = vpack.c.bf16 %v5704, %v5704
        %v5737 = vpack.c.bf16 %v5705, %v5705
        %v5738 = vpack.c.bf16 %v5706, %v5706
        %v5739 = vpack.c.bf16 %v5707, %v5707
        %v5740 = vpack.c.bf16 %v5708, %v5708
        %v5741 = vpack.c.bf16 %v5709, %v5709
        %v5742 = vpack.c.bf16 %v5710, %v5710
        %v5743 = vpack.c.bf16 %v5711, %v5711
        %5744 = vst [vmem:[%s239] sm:$0xf] %v5712
        %5745 = vst [vmem:[%s239 + $0x4] sm:$0xf] %v5713
        %5746 = vst [vmem:[%s239 + $0x8] sm:$0xf] %v5714
        %5747 = vst [vmem:[%s239 + $0xc] sm:$0xf] %v5715
        %5748 = vst [vmem:[%s239 + $0x10] sm:$0xf] %v5716
        %5749 = vst [vmem:[%s239 + $0x14] sm:$0xf] %v5717
        %5750 = vst [vmem:[%s239 + $0x18] sm:$0xf] %v5718
        %5751 = vst [vmem:[%s239 + $0x1c] sm:$0xf] %v5719
        %5752 = vst [vmem:[%s239 + $0x20] sm:$0xf] %v5720
        %5753 = vst [vmem:[%s239 + $0x24] sm:$0xf] %v5721
        %5754 = vst [vmem:[%s239 + $0x28] sm:$0xf] %v5722
        %5755 = vst [vmem:[%s239 + $0x2c] sm:$0xf] %v5723
        %5756 = vst [vmem:[%s239 + $0x30] sm:$0xf] %v5724
        %5757 = vst [vmem:[%s239 + $0x34] sm:$0xf] %v5725
        %5758 = vst [vmem:[%s239 + $0x38] sm:$0xf] %v5726
        %5759 = vst [vmem:[%s239 + $0x3c] sm:$0xf] %v5727
        %5760 = vst [vmem:[%s239 + $0x40] sm:$0xf] %v5728
        %5761 = vst [vmem:[%s239 + $0x44] sm:$0xf] %v5729
        %5762 = vst [vmem:[%s239 + $0x48] sm:$0xf] %v5730
        %5763 = vst [vmem:[%s239 + $0x4c] sm:$0xf] %v5731
        %5764 = vst [vmem:[%s239 + $0x50] sm:$0xf] %v5732
        %5765 = vst [vmem:[%s239 + $0x54] sm:$0xf] %v5733
        %5766 = vst [vmem:[%s239 + $0x58] sm:$0xf] %v5734
        %5767 = vst [vmem:[%s239 + $0x5c] sm:$0xf] %v5735
        %5768 = vst [vmem:[%s239 + $0x60] sm:$0xf] %v5736
        %5769 = vst [vmem:[%s239 + $0x64] sm:$0xf] %v5737
        %5770 = vst [vmem:[%s239 + $0x68] sm:$0xf] %v5738
        %5771 = vst [vmem:[%s239 + $0x6c] sm:$0xf] %v5739
        %5772 = vst [vmem:[%s239 + $0x70] sm:$0xf] %v5740
        %5773 = vst [vmem:[%s239 + $0x74] sm:$0xf] %v5741
        %5774 = vst [vmem:[%s239 + $0x78] sm:$0xf] %v5742
        %5775 = vst [vmem:[%s239 + $0x7c] sm:$0xf] %v5743
        %s5776 = sand.u32 %s121, 1
        %s5777 = scalar_lea.sflag [#allocation5], %s5776
        %s5778 = sand.u32 %s121, 1
        %s5779 = smul.addr %s5778, 128
        %s5780 = scalar_lea.vmem [#allocation8], %s5779
        // Predicated region
        $region41: #{tpu_custom_call.1} parent=31 // pred_check
          %p5781 = pneg %p131
        $region42: #{tpu_custom_call.1} parent=31 // pred_check_branch
          %5783 = sbr.rel (%p5781) target = $region44
        $region43: #{tpu_custom_call.1} parent=31 // pred_region
          %5785 = vsyncadd %s5777, 0
          %s5786 = smul.addr %s26, 32
          %s5787 = sadd.s32 %s25, %s5786
          %s5788 = smul.addr %s5787, 4
          %s5789 = scalar_lea.hbm %s3, %s5788
          %s5790 = sshll.u32 %s5780, 4
          %s5791 = int_to_ptr.vmem [resolvable:$true] %s5790
          %s5792 = sshll.u32 %s5789, 4
          %s5793 = int_to_ptr.hbm [resolvable:$true] %s5792
          %5798 = dma.vmem_to_hbm [thread:$0]  %s5791, 2048, %s5793, %s5777, 64, 64, 4
        $region44: #{tpu_custom_call.1} parent=31 // pred_fallthru
          _
      $region32: #{tpu_custom_call.1} parent=5 // pred_fallthru
        _
      %p5799 = scmp.le.s32.totalorder 2, %s16
      // Predicated region
      $region45: #{tpu_custom_call.1} parent=5 // pred_check
        %p5800 = pneg %p5799
      $region46: #{tpu_custom_call.1} parent=5 // pred_check_branch
        %5802 = sbr.rel (%p5800) target = $region48
      $region47: #{tpu_custom_call.1} parent=5 // pred_region
        %s5803 = ssub.s32 %s16, 2
        // Predicated region
        $region49: #{tpu_custom_call.1} parent=47 // pred_check
          %p5804 = pneg %p137
        $region50: #{tpu_custom_call.1} parent=47 // pred_check_branch
          %5806 = sbr.rel (%p5804) target = $region52
        $region51: #{tpu_custom_call.1} parent=47 // pred_region
          %s5807 = sand.u32 %s122, 1
          %s5808 = scalar_lea.sflag [#allocation5], %s5807
          %s5809 = sand.u32 %s122, 1
          %s5810 = smul.addr %s5809, 128
          %s5811 = scalar_lea.vmem [#allocation8], %s5810
          %5813 = dma.done %s5808, 2048
        $region52: #{tpu_custom_call.1} parent=47 // pred_fallthru
          _
      $region48: #{tpu_custom_call.1} parent=5 // pred_fallthru
        _
    $region6: #{tpu_custom_call.1} parent=1 // loop_footer
      %s20 = sadd.s32 1, %s16
    $region7: #{tpu_custom_call.1} parent=1 // loop_footer_branch
      %15 = sbr.rel target = $region3
    $region8: #{tpu_custom_call.1} parent=1 // loop_exit
      _
    %5814 = vsyncpa [#allocation4], 1
    %s5815 = scalar_lea.sflag [#allocation4], 1
    %5816 = vsyncpa %s5815, 1
    %5817 = vsyncpa [#allocation7], 1
    %5818 = vsyncpa [#allocation5], 1
    %s5819 = scalar_lea.sflag [#allocation5], 1
    %5820 = vsyncpa %s5819, 1

</llo_original>
